<compile_context>
chip_gen: v7x
topology: tpu7x:2x2x1
jax: 0.10.0
libtpu: 0.0.40
codegen_flags: <defaults>
</compile_context>

<pallas_src>
import jax
import jax.numpy as jnp
from jax import lax
from jax.experimental import pallas as pl
from jax.experimental.pallas import tpu as pltpu


def _round_up(x, m):
    return ((x + m - 1) // m) * m


# ----------------------------------------------------------------------------
# Pallas kernel 1: conv as a single matmul per row tile.
#   w_ref : (Cout, KC)   p_ref : (KC, tile)   o_ref : (Cout, tile)
# ----------------------------------------------------------------------------
def _conv_mm_kernel(w_ref, p_ref, o_ref):
    o_ref[...] = jnp.dot(
        w_ref[...], p_ref[...], preferred_element_type=jnp.float32
    ).astype(o_ref.dtype)


def conv3d_pallas(x, w, *, padding=1, tile=2048):
    """3D conv, stride 1, zero padding, no bias (PyTorch cross-correlation).

    x : (N, Cin, D, H, W) float32      w : (Cout, Cin, K, K, K) float32
    returns (N, Cout, Do, Ho, Wo) float32
    """
    N, cin, D, H, W = x.shape
    cout, _, K, _, _ = w.shape
    p = padding
    Do, Ho, Wo = D + 2 * p - K + 1, H + 2 * p - K + 1, W + 2 * p - K + 1
    M = N * Do * Ho * Wo
    KC = K * K * K * cin

    # Channel-major layout so the output-position axis (M) is the lane axis.
    xt = jnp.transpose(x, (1, 0, 2, 3, 4))                       # (Cin, N, D, H, W)
    xt = jnp.pad(xt, ((0, 0), (0, 0), (p, p), (p, p), (p, p)))
    xt = xt.astype(jnp.bfloat16)                                 # halve im2col HBM bytes

    taps = []
    for kd in range(K):
        for kh in range(K):
            for kw in range(K):
                taps.append(
                    xt[:, :, kd:kd + Do, kh:kh + Ho, kw:kw + Wo].reshape(cin, M))
    patches = jnp.concatenate(taps, axis=0)                      # (KC, M) bf16
    wm = jnp.transpose(w, (0, 2, 3, 4, 1)).reshape(cout, KC).astype(jnp.bfloat16)

    # Lane tile (multiple of 128); pad M up to a whole number of tiles.
    tile = int(min(tile, _round_up(M, 128)))
    tile = max(128, (tile // 128) * 128)
    m_pad = _round_up(M, tile)
    if m_pad != M:
        patches = jnp.pad(patches, ((0, 0), (0, m_pad - M)))

    out = pl.pallas_call(
        _conv_mm_kernel,
        out_shape=jax.ShapeDtypeStruct((cout, m_pad), jnp.float32),
        grid_spec=pltpu.PrefetchScalarGridSpec(
            num_scalar_prefetch=0,
            grid=(m_pad // tile,),
            in_specs=[
                pl.BlockSpec((cout, KC), lambda i: (0, 0)),   # resident weights
                pl.BlockSpec((KC, tile), lambda i: (0, i)),   # patch tile (lane-dense)
            ],
            out_specs=pl.BlockSpec((cout, tile), lambda i: (0, i)),
        ),
        compiler_params=pltpu.CompilerParams(
            dimension_semantics=("parallel",)),
        cost_estimate=pl.CostEstimate(
            flops=2 * cout * KC * m_pad,
            transcendentals=0,
            bytes_accessed=KC * m_pad * 2 + cout * KC * 2 + cout * m_pad * 4),
    )(wm, patches)

    out = out[:, :M].reshape(cout, N, Do, Ho, Wo)
    return jnp.transpose(out, (1, 0, 2, 3, 4))                   # (N, Cout, Do, Ho, Wo)


# ----------------------------------------------------------------------------
# Pallas kernel 2: fused InstanceNorm (affine=False, eps=1e-5) + LeakyReLU(0.2).
# Rows = (b, c) instances, lanes = flattened (o, d, h, w).
# ----------------------------------------------------------------------------
def _inorm_lrelu_kernel(x_ref, o_ref):
    x = x_ref[...]
    mean = jnp.mean(x, axis=-1, keepdims=True)
    cent = x - mean
    var = jnp.mean(cent * cent, axis=-1, keepdims=True)
    y = cent * lax.rsqrt(var + 1e-5)
    o_ref[...] = jnp.where(y >= 0.0, y, 0.2 * y)


def instance_norm_leakyrelu_pallas(y, *, row_tile=8):
    # TODO(synk): InstanceNorm4d source not provided; assumed per-(b, channel)
    # normalization over (o, d, h, w) with affine=False, eps=1e-5 (PyTorch defaults).
    b, c = y.shape[0], y.shape[1]
    S = 1
    for s in y.shape[2:]:
        S *= s
    R = b * c
    flat = y.reshape(R, S).astype(jnp.float32)
    R_pad = _round_up(R, row_tile)
    if R_pad != R:
        flat = jnp.pad(flat, ((0, R_pad - R), (0, 0)))

    out = pl.pallas_call(
        _inorm_lrelu_kernel,
        out_shape=jax.ShapeDtypeStruct((R_pad, S), jnp.float32),
        grid_spec=pltpu.PrefetchScalarGridSpec(
            num_scalar_prefetch=0,
            grid=(R_pad // row_tile,),
            in_specs=[pl.BlockSpec((row_tile, S), lambda i: (i, 0))],
            out_specs=pl.BlockSpec((row_tile, S), lambda i: (i, 0)),
        ),
        compiler_params=pltpu.CompilerParams(
            dimension_semantics=("parallel",)),
    )(flat)
    return out[:R].reshape(y.shape)


# ----------------------------------------------------------------------------
# ConvBlock port
# ----------------------------------------------------------------------------
class ConvBlockPallas:
    """Conv3dMod -> InstanceNorm4d -> LeakyReLU(0.2) -> Conv3dMod -> InstanceNorm4d
    -> LeakyReLU(0.2), operating on 6D (b, c, o, d, h, w) input."""

    def __init__(self, in_chans, out_chans, drop_prob=0.0, stride=1, *, key):
        assert drop_prob == 0.0, "reference raises for drop_prob > 0"
        assert stride == 1  # TODO(synk): strided second conv not implemented (demo uses default stride=1)
        self.in_chans, self.out_chans = in_chans, out_chans
        k1, k2 = jax.random.split(key)
        # PyTorch Conv3d weight shape: (Cout, Cin, 3, 3, 3), bias=False in ConvBlock.
        self.w1 = jax.random.normal(k1, (out_chans, in_chans, 3, 3, 3),
                                    jnp.float32) / jnp.sqrt(27.0 * in_chans)
        self.w2 = jax.random.normal(k2, (out_chans, out_chans, 3, 3, 3),
                                    jnp.float32) / jnp.sqrt(27.0 * out_chans)

    def _conv3dmod(self, x6, w):
        b, c, o, d, h, wd = x6.shape
        # Conv3dMod.offset_to_batch_dim
        xb = jnp.transpose(x6, (0, 2, 1, 3, 4, 5)).reshape(b * o, c, d, h, wd)
        y = conv3d_pallas(xb, w)                                  # (b*o, Cout, d, h, w)
        # Conv3dMod.batch_offset_to_third_dim: the reference does a raw
        # `.view(b, c, o, d, h, w)` on the contiguous (b*o, c, ...) tensor — this is a
        # memory reinterpretation, NOT a transpose.  A flat row-major reshape
        # reproduces it exactly; do not "fix" this to jnp.transpose.
        return y.reshape(b, w.shape[0], o, d, h, wd)

    def __call__(self, x):
        y = self._conv3dmod(x, self.w1)
        y = instance_norm_leakyrelu_pallas(y)
        y = self._conv3dmod(y, self.w2)
        y = instance_norm_leakyrelu_pallas(y)
        return y


# Pure-JAX (lax.conv) reference mirroring the PyTorch forward literally.
def reference_forward(x, mod):
    def conv3dmod(x6, w):
        b, c, o, d, h, wd = x6.shape
        xb = jnp.transpose(x6, (0, 2, 1, 3, 4, 5)).reshape(b * o, c, d, h, wd)
        y = lax.conv_general_dilated(
            xb, w, window_strides=(1, 1, 1), padding=[(1, 1)] * 3,
            dimension_numbers=("NCDHW", "OIDHW", "NCDHW"),
            precision=lax.Precision.HIGHEST)
        return y.reshape(b, w.shape[0], o, d, h, wd)

    def inorm_lrelu(y):
        b, c = y.shape[:2]
        flat = y.reshape(b, c, -1)
        mean = jnp.mean(flat, axis=-1, keepdims=True)
        var = jnp.mean((flat - mean) ** 2, axis=-1, keepdims=True)
        z = (flat - mean) * lax.rsqrt(var + 1e-5)
        z = jnp.where(z >= 0, z, 0.2 * z)
        return z.reshape(y.shape)

    y = conv3dmod(x, mod.w1)
    y = inorm_lrelu(y)
    y = conv3dmod(y, mod.w2)
    y = inorm_lrelu(y)
    return y


if __name__ == "__main__":
    key = jax.random.PRNGKey(0)
    kp, kx = jax.random.split(key)
    b, cin, cout, o, d, h, w = 2, 4, 8, 4, 8, 8, 8

    mod = ConvBlockPallas(cin, cout, key=kp)
    x = jax.random.normal(kx, (b, cin, o, d, h, w), jnp.float32)

    out = jax.jit(mod.__call__)(x)
    out = jax.block_until_ready(out)

    assert out.shape == (b, cout, o, d, h, w), out.shape
    ref = reference_forward(x, mod)
    max_err = float(jnp.max(jnp.abs(out - ref)))
    assert max_err < 1e-1, f"max abs error {max_err}"   # bf16 MXU inputs, f32 accumulate
    print("KERNEL_OK")
</pallas_src>

<mosaic_0001>
module attributes {stable_mosaic.version = 11 : i64} {
  func.func @_conv_mm_kernel(%arg0: i32, %arg1: memref<8x108xbf16, #tpu.memory_space<vmem>>, %arg2: memref<108x2048xbf16, #tpu.memory_space<vmem>>, %arg3: memref<8x2048xf32, #tpu.memory_space<vmem>>) attributes {dimension_semantics = [#tpu.dimension_semantics<parallel>], iteration_bounds = array<i64: 2>, scalar_prefetch = 0 : i64, scratch_operands = 0 : i64, tpu.core_type = #tpu.core_type<tc>, window_params = [{pipeline_mode = #tpu.pipeline_mode<synchronous>, transform_indices = @transform_0, window_bounds = array<i64: 8, 108>}, {transform_indices = @transform_1, window_bounds = array<i64: 108, 2048>}, {transform_indices = @transform_2, window_bounds = array<i64: 8, 2048>}]} {
    %c0 = arith.constant 0 : index
    %c0_0 = arith.constant 0 : index
    %0 = vector.load %arg1[%c0, %c0_0] : memref<8x108xbf16, #tpu.memory_space<vmem>>, vector<8x108xbf16>
    %c0_1 = arith.constant 0 : index
    %c0_2 = arith.constant 0 : index
    %1 = vector.load %arg2[%c0_1, %c0_2] : memref<108x2048xbf16, #tpu.memory_space<vmem>>, vector<108x2048xbf16>
    %cst = arith.constant dense<0.000000e+00> : vector<8x2048xf32>
    %2 = tpu.matmul %0, %1, %cst {dimension_numbers = #tpu.dot_dimension_numbers<[1], [0], [0], [1], [0, 0, 1, 1], [], []>} : vector<8x108xbf16>, vector<108x2048xbf16>, vector<8x2048xf32> -> vector<8x2048xf32>
    %c0_3 = arith.constant 0 : index
    %c0_4 = arith.constant 0 : index
    %3 = vector.load %arg3[%c0_3, %c0_4] : memref<8x2048xf32, #tpu.memory_space<vmem>>, vector<8x2048xf32>
    tpu.vector_store %arg3[%c0_3, %c0_4], %2 {strides = array<i32>} : memref<8x2048xf32, #tpu.memory_space<vmem>>, vector<8x2048xf32>,
    return
  }
  func.func @transform_0(%arg0: i32) -> (i32, i32) {
    %c0_i32 = arith.constant 0 : i32
    %c0_i32_0 = arith.constant 0 : i32
    %c0_i32_1 = arith.constant 0 : i32
    return %c0_i32, %c0_i32_0 : i32, i32
  }
  func.func @transform_1(%arg0: i32) -> (i32, i32) {
    %c0_i32 = arith.constant 0 : i32
    %c0_i32_0 = arith.constant 0 : i32
    return %c0_i32, %arg0 : i32, i32
  }
  func.func @transform_2(%arg0: i32) -> (i32, i32) {
    %c0_i32 = arith.constant 0 : i32
    %c0_i32_0 = arith.constant 0 : i32
    return %c0_i32, %arg0 : i32, i32
  }
}

module attributes {stable_mosaic.version = 11 : i64} {
  func.func @_inorm_lrelu_kernel(%arg0: i32, %arg1: memref<8x2048xf32, #tpu.memory_space<vmem>>, %arg2: memref<8x2048xf32, #tpu.memory_space<vmem>>) attributes {dimension_semantics = [#tpu.dimension_semantics<parallel>], iteration_bounds = array<i64: 2>, scalar_prefetch = 0 : i64, scratch_operands = 0 : i64, tpu.core_type = #tpu.core_type<tc>, window_params = [{transform_indices = @transform_0, window_bounds = array<i64: 8, 2048>}, {transform_indices = @transform_1, window_bounds = array<i64: 8, 2048>}]} {
    %c0 = arith.constant 0 : index
    %c0_0 = arith.constant 0 : index
    %0 = vector.load %arg1[%c0, %c0_0] : memref<8x2048xf32, #tpu.memory_space<vmem>>, vector<8x2048xf32>
    %cst = arith.constant dense<0.000000e+00> : vector<8xf32>
    %1 = vector.multi_reduction <add>, %0, %cst [1] : vector<8x2048xf32> to vector<8xf32>
    %2 = vector.shape_cast %1 : vector<8xf32> to vector<8x1xf32>
    %cst_1 = arith.constant 2.048000e+03 : f32
    %3 = vector.broadcast %cst_1 : f32 to vector<8x1xf32>
    %4 = arith.divf %2, %3 : vector<8x1xf32>
    %5 = vector.broadcast %4 : vector<8x1xf32> to vector<8x2048xf32>
    %6 = arith.subf %0, %5 : vector<8x2048xf32>
    %7 = arith.mulf %6, %6 : vector<8x2048xf32>
    %cst_2 = arith.constant dense<0.000000e+00> : vector<8xf32>
    %8 = vector.multi_reduction <add>, %7, %cst_2 [1] : vector<8x2048xf32> to vector<8xf32>
    %9 = vector.shape_cast %8 : vector<8xf32> to vector<8x1xf32>
    %cst_3 = arith.constant 2.048000e+03 : f32
    %10 = vector.broadcast %cst_3 : f32 to vector<8x1xf32>
    %11 = arith.divf %9, %10 : vector<8x1xf32>
    %cst_4 = arith.constant 9.99999974E-6 : f32
    %12 = vector.broadcast %cst_4 : f32 to vector<8x1xf32>
    %13 = arith.addf %11, %12 : vector<8x1xf32>
    %14 = math.rsqrt %13 : vector<8x1xf32>
    %15 = vector.broadcast %14 : vector<8x1xf32> to vector<8x2048xf32>
    %16 = arith.mulf %6, %15 : vector<8x2048xf32>
    %cst_5 = arith.constant 0.000000e+00 : f32
    %17 = vector.broadcast %cst_5 : f32 to vector<8x2048xf32>
    %18 = arith.cmpf oge, %16, %17 : vector<8x2048xf32>
    %cst_6 = arith.constant 2.000000e-01 : f32
    %19 = vector.broadcast %cst_6 : f32 to vector<8x2048xf32>
    %20 = arith.mulf %19, %16 : vector<8x2048xf32>
    %21 = arith.select %18, %16, %20 : vector<8x2048xi1>, vector<8x2048xf32>
    %c0_7 = arith.constant 0 : index
    %c0_8 = arith.constant 0 : index
    %22 = vector.load %arg2[%c0_7, %c0_8] : memref<8x2048xf32, #tpu.memory_space<vmem>>, vector<8x2048xf32>
    tpu.vector_store %arg2[%c0_7, %c0_8], %21 {strides = array<i32>} : memref<8x2048xf32, #tpu.memory_space<vmem>>, vector<8x2048xf32>,
    return
  }
  func.func @transform_0(%arg0: i32) -> (i32, i32) {
    %c0_i32 = arith.constant 0 : i32
    %c0_i32_0 = arith.constant 0 : i32
    return %arg0, %c0_i32 : i32, i32
  }
  func.func @transform_1(%arg0: i32) -> (i32, i32) {
    %c0_i32 = arith.constant 0 : i32
    %c0_i32_0 = arith.constant 0 : i32
    return %arg0, %c0_i32 : i32, i32
  }
}

module attributes {stable_mosaic.version = 11 : i64} {
  func.func @_conv_mm_kernel(%arg0: i32, %arg1: memref<8x216xbf16, #tpu.memory_space<vmem>>, %arg2: memref<216x2048xbf16, #tpu.memory_space<vmem>>, %arg3: memref<8x2048xf32, #tpu.memory_space<vmem>>) attributes {dimension_semantics = [#tpu.dimension_semantics<parallel>], iteration_bounds = array<i64: 2>, scalar_prefetch = 0 : i64, scratch_operands = 0 : i64, tpu.core_type = #tpu.core_type<tc>, window_params = [{pipeline_mode = #tpu.pipeline_mode<synchronous>, transform_indices = @transform_0, window_bounds = array<i64: 8, 216>}, {transform_indices = @transform_1, window_bounds = array<i64: 216, 2048>}, {transform_indices = @transform_2, window_bounds = array<i64: 8, 2048>}]} {
    %c0 = arith.constant 0 : index
    %c0_0 = arith.constant 0 : index
    %0 = vector.load %arg1[%c0, %c0_0] : memref<8x216xbf16, #tpu.memory_space<vmem>>, vector<8x216xbf16>
    %c0_1 = arith.constant 0 : index
    %c0_2 = arith.constant 0 : index
    %1 = vector.load %arg2[%c0_1, %c0_2] : memref<216x2048xbf16, #tpu.memory_space<vmem>>, vector<216x2048xbf16>
    %cst = arith.constant dense<0.000000e+00> : vector<8x2048xf32>
    %2 = tpu.matmul %0, %1, %cst {dimension_numbers = #tpu.dot_dimension_numbers<[1], [0], [0], [1], [0, 0, 1, 1], [], []>} : vector<8x216xbf16>, vector<216x2048xbf16>, vector<8x2048xf32> -> vector<8x2048xf32>
    %c0_3 = arith.constant 0 : index
    %c0_4 = arith.constant 0 : index
    %3 = vector.load %arg3[%c0_3, %c0_4] : memref<8x2048xf32, #tpu.memory_space<vmem>>, vector<8x2048xf32>
    tpu.vector_store %arg3[%c0_3, %c0_4], %2 {strides = array<i32>} : memref<8x2048xf32, #tpu.memory_space<vmem>>, vector<8x2048xf32>,
    return
  }
  func.func @transform_0(%arg0: i32) -> (i32, i32) {
    %c0_i32 = arith.constant 0 : i32
    %c0_i32_0 = arith.constant 0 : i32
    %c0_i32_1 = arith.constant 0 : i32
    return %c0_i32, %c0_i32_0 : i32, i32
  }
  func.func @transform_1(%arg0: i32) -> (i32, i32) {
    %c0_i32 = arith.constant 0 : i32
    %c0_i32_0 = arith.constant 0 : i32
    return %c0_i32, %arg0 : i32, i32
  }
  func.func @transform_2(%arg0: i32) -> (i32, i32) {
    %c0_i32 = arith.constant 0 : i32
    %c0_i32_0 = arith.constant 0 : i32
    return %c0_i32, %arg0 : i32, i32
  }
}

</mosaic_0001>

<llo_original>
// kernel: a_call__.4
$region0: #{a_call__.4}
  #allocation0 [shape = 'u32[]', space=smem, size = 0x4, offset = 0x4, fixed_abs, tag = 'smem constant byte address 0x4 - core index']
  #allocation1 [shape = 'u32[144,128]{1,0:T(1,128)}', space=vmem, size = 0x12000, scoped, tag = 'internal scratch']
  %s0 = inlined_call_operand.vmem [shape: bf16[8,108], index: 0, kind: input, shape index: {}]
  %s1 = inlined_call_operand.vmem [shape: bf16[108,4096], index: 1, kind: input, shape index: {}]
  %s2 = inlined_call_operand.vmem [shape: f32[8,4096], index: 2, kind: output, shape index: {}]
  %s3 = sld [smem:[#allocation0]]
  $region64: #{a_call__.4} parent=0
    _
  %s5 = ssub.s32 1, %s3
  %s6 = scalar_select 0, %s5, %s3
  $region1: #{a_call__.4} parent=0
    #allocation2 [shape = 'u8[917504]{0}', space=vmem, size = 0xe0000, scoped, tag = 'input window, operand 1']
    loop: start=0, step=1, limit=4
    $region2: #{a_call__.4} parent=1 // loop_pre_header
      _
    $region3: #{a_call__.4} parent=1 // loop_header
      %s8 = sphi 0, %s12
      %p9 = scmp.ge.s32.totalorder %s8, 4
      %s16 = sphi 0, %s16
      %s18 = sphi 0, %s16
      %s19 = sphi 0, %s18
      %s33 = sphi 0, %s19
      %s39 = sphi 0, %s41
      %s42 = sphi 0, %s39
      %s43 = sphi 0, %s42
      %s59 = sphi 0, %s43
      %s65 = sphi 0, %s67
      %s68 = sphi 0, %s65
      %s69 = sphi 0, %s68
      %s85 = sphi 0, %s69
    $region4: #{a_call__.4} parent=1 // loop_header_branch
      %11 = sbr.rel (%p9) target = $region8
    $region5: #{a_call__.4} parent=1 // loop_body
      %s13 = ssub.s32 %s8, 1
      %s14 = ssub.s32 %s8, 2
      %s15 = sadd.s32 %s8, 1
      %s17 = sadd.s32 %s16, 1
      %p20 = scmp.eq.s32.totalorder %s8, 1
      %p21 = scmp.ne.s32.totalorder %s16, %s18
      %p22 = scmp.eq.s32.totalorder %s8, 0
      %p23 = por %p21, %p22
      %p24 = scmp.ne.s32.totalorder %s16, %s18
      %p25 = scmp.eq.s32.totalorder %s13, 1
      %p26 = por %p24, %p25
      %p27 = scmp.ne.s32.totalorder %s18, %s19
      %p28 = scmp.eq.s32.totalorder %s13, 0
      %p29 = por %p27, %p28
      %p30 = scmp.ne.s32.totalorder %s18, %s19
      %p31 = scmp.eq.s32.totalorder %s14, 1
      %p32 = por %p30, %p31
      %p34 = scmp.ne.s32.totalorder %s19, %s33
      %p35 = scmp.eq.s32.totalorder %s14, 0
      %p36 = por %p34, %p35
      %s37 = ssub.s32 %s8, %s15
      %p38 = scmp.eq.s32.totalorder %s37, 0
      %s40 = sadd.s32 %s39, 1
      %s41 = scalar_select %p38, %s39, %s40
      %p44 = pneg %p38
      %p45 = scmp.eq.s32.totalorder %s8, 1
      %p46 = por %p44, %p45
      %p47 = scmp.ne.s32.totalorder %s39, %s42
      %p48 = scmp.eq.s32.totalorder %s8, 0
      %p49 = por %p47, %p48
      %p50 = scmp.ne.s32.totalorder %s39, %s42
      %p51 = scmp.eq.s32.totalorder %s13, 1
      %p52 = por %p50, %p51
      %p53 = scmp.ne.s32.totalorder %s42, %s43
      %p54 = scmp.eq.s32.totalorder %s13, 0
      %p55 = por %p53, %p54
      %p56 = scmp.ne.s32.totalorder %s42, %s43
      %p57 = scmp.eq.s32.totalorder %s14, 1
      %p58 = por %p56, %p57
      %p60 = scmp.ne.s32.totalorder %s43, %s59
      %p61 = scmp.eq.s32.totalorder %s14, 0
      %p62 = por %p60, %p61
      %s63 = ssub.s32 %s8, %s15
      %p64 = scmp.eq.s32.totalorder %s63, 0
      %s66 = sadd.s32 %s65, 1
      %s67 = scalar_select %p64, %s65, %s66
      %p70 = pneg %p64
      %p71 = scmp.eq.s32.totalorder %s8, 1
      %p72 = por %p70, %p71
      %p73 = scmp.ne.s32.totalorder %s65, %s68
      %p74 = scmp.eq.s32.totalorder %s8, 0
      %p75 = por %p73, %p74
      %p76 = scmp.ne.s32.totalorder %s65, %s68
      %p77 = scmp.eq.s32.totalorder %s13, 1
      %p78 = por %p76, %p77
      %p79 = scmp.ne.s32.totalorder %s68, %s69
      %p80 = scmp.eq.s32.totalorder %s13, 0
      %p81 = por %p79, %p80
      %p82 = scmp.ne.s32.totalorder %s68, %s69
      %p83 = scmp.eq.s32.totalorder %s14, 1
      %p84 = por %p82, %p83
      %p86 = scmp.ne.s32.totalorder %s69, %s85
      %p87 = scmp.eq.s32.totalorder %s14, 0
      %p88 = por %p86, %p87
      %p89 = scmp.le.s32.totalorder 1, %s8
      %p90 = scmp.lt.s32.totalorder %s8, 3
      %p91 = pnand %p89, %p90
      %p92 = pneg %p91
      // Predicated region
      $region9: #{a_call__.4} parent=5 // pred_check
        _
      $region10: #{a_call__.4} parent=5 // pred_check_branch
        %94 = sbr.rel (%p91) target = $region12
      $region11: #{a_call__.4} parent=5 // pred_region
        %s95 = ssub.s32 %s8, 1
        // Predicated region
        $region13: #{a_call__.4} parent=11 // pred_check
          %p96 = pneg %p29
        $region14: #{a_call__.4} parent=11 // pred_check_branch
          %98 = sbr.rel (%p96) target = $region16
        $region15: #{a_call__.4} parent=11 // pred_region
          _
        $region16: #{a_call__.4} parent=11 // pred_fallthru
          _
      $region12: #{a_call__.4} parent=5 // pred_fallthru
        _
      %p99 = scmp.lt.s32.totalorder %s8, 2
      // Predicated region
      $region17: #{a_call__.4} parent=5 // pred_check
        %p100 = pneg %p99
      $region18: #{a_call__.4} parent=5 // pred_check_branch
        %102 = sbr.rel (%p100) target = $region20
      $region19: #{a_call__.4} parent=5 // pred_region
        // Predicated region
        $region21: #{a_call__.4} parent=19 // pred_check
          %p103 = pneg %p49
        $region22: #{a_call__.4} parent=19 // pred_check_branch
          %105 = sbr.rel (%p103) target = $region24
        $region23: #{a_call__.4} parent=19 // pred_region
          %s106 = sand.u32 %s39, 1
          %s107 = sand.u32 %s39, 1
          %s108 = smul.addr %s107, 896
          %s109 = scalar_lea.vmem [#allocation2], %s108
          %s110 = smul.u32 16, %s8
          %s111 = smul.addr %s110, 4
          %s112 = scalar_lea.vmem %s1, %s111
          // Predicated region
          $region25: #{a_call__.4} parent=23 // pred_check
            _
          $region26: #{a_call__.4} parent=23 // pred_check_branch
            %114 = sbr.rel (0) target = $region28
          $region27: #{a_call__.4} parent=23 // pred_region
            // Predicated region
            $region29: #{a_call__.4} parent=27 // pred_check
              _
            $region30: #{a_call__.4} parent=27 // pred_check_branch
              %116 = sbr.rel (0) target = $region32
            $region31: #{a_call__.4} parent=27 // pred_region
              loop: start=0, step=1, limit=1
              $region33: #{a_call__.4} parent=31 // loop_pre_header
                _
              $region34: #{a_call__.4} parent=31 // loop_header
                %s118 = sphi 0, %s122
                %p119 = scmp.ge.s32.totalorder %s118, 1
                %s123 = sphi %s112, %s112
                %s124 = sphi %s109, %s109
              $region35: #{a_call__.4} parent=31 // loop_header_branch
                %121 = sbr.rel (%p119) target = $region39
              $region36: #{a_call__.4} parent=31 // loop_body
                %v125 = vld [vmem:[%s123] sm:$0xff]
                %126 = vst [vmem:[%s124] sm:$0xff] %v125
                %v127 = vld [vmem:[%s123 + $0x8] sm:$0xff]
                %128 = vst [vmem:[%s124 + $0x8] sm:$0xff] %v127
                %v129 = vld [vmem:[%s123 + $0x10] sm:$0xff]
                %130 = vst [vmem:[%s124 + $0x10] sm:$0xff] %v129
                %v131 = vld [vmem:[%s123 + $0x18] sm:$0xff]
                %132 = vst [vmem:[%s124 + $0x18] sm:$0xff] %v131
                %v133 = vld [vmem:[%s123 + $0x20] sm:$0xff]
                %134 = vst [vmem:[%s124 + $0x20] sm:$0xff] %v133
                %v135 = vld [vmem:[%s123 + $0x28] sm:$0xff]
                %136 = vst [vmem:[%s124 + $0x28] sm:$0xff] %v135
                %v137 = vld [vmem:[%s123 + $0x30] sm:$0xff]
                %138 = vst [vmem:[%s124 + $0x30] sm:$0xff] %v137
                %v139 = vld [vmem:[%s123 + $0x38] sm:$0xff]
                %140 = vst [vmem:[%s124 + $0x38] sm:$0xff] %v139
                %v141 = vld [vmem:[%s123 + $0x80] sm:$0xff]
                %142 = vst [vmem:[%s124 + $0x40] sm:$0xff] %v141
                %v143 = vld [vmem:[%s123 + $0x88] sm:$0xff]
                %144 = vst [vmem:[%s124 + $0x48] sm:$0xff] %v143
                %v145 = vld [vmem:[%s123 + $0x90] sm:$0xff]
                %146 = vst [vmem:[%s124 + $0x50] sm:$0xff] %v145
                %v147 = vld [vmem:[%s123 + $0x98] sm:$0xff]
                %148 = vst [vmem:[%s124 + $0x58] sm:$0xff] %v147
                %v149 = vld [vmem:[%s123 + $0xa0] sm:$0xff]
                %150 = vst [vmem:[%s124 + $0x60] sm:$0xff] %v149
                %v151 = vld [vmem:[%s123 + $0xa8] sm:$0xff]
                %152 = vst [vmem:[%s124 + $0x68] sm:$0xff] %v151
                %v153 = vld [vmem:[%s123 + $0xb0] sm:$0xff]
                %154 = vst [vmem:[%s124 + $0x70] sm:$0xff] %v153
                %v155 = vld [vmem:[%s123 + $0xb8] sm:$0xff]
                %156 = vst [vmem:[%s124 + $0x78] sm:$0xff] %v155
                %v157 = vld [vmem:[%s123 + $0x100] sm:$0xff]
                %158 = vst [vmem:[%s124 + $0x80] sm:$0xff] %v157
                %v159 = vld [vmem:[%s123 + $0x108] sm:$0xff]
                %160 = vst [vmem:[%s124 + $0x88] sm:$0xff] %v159
                %v161 = vld [vmem:[%s123 + $0x110] sm:$0xff]
                %162 = vst [vmem:[%s124 + $0x90] sm:$0xff] %v161
                %v163 = vld [vmem:[%s123 + $0x118] sm:$0xff]
                %164 = vst [vmem:[%s124 + $0x98] sm:$0xff] %v163
                %v165 = vld [vmem:[%s123 + $0x120] sm:$0xff]
                %166 = vst [vmem:[%s124 + $0xa0] sm:$0xff] %v165
                %v167 = vld [vmem:[%s123 + $0x128] sm:$0xff]
                %168 = vst [vmem:[%s124 + $0xa8] sm:$0xff] %v167
                %v169 = vld [vmem:[%s123 + $0x130] sm:$0xff]
                %170 = vst [vmem:[%s124 + $0xb0] sm:$0xff] %v169
                %v171 = vld [vmem:[%s123 + $0x138] sm:$0xff]
                %172 = vst [vmem:[%s124 + $0xb8] sm:$0xff] %v171
                %v173 = vld [vmem:[%s123 + $0x180] sm:$0xff]
                %174 = vst [vmem:[%s124 + $0xc0] sm:$0xff] %v173
                %v175 = vld [vmem:[%s123 + $0x188] sm:$0xff]
                %176 = vst [vmem:[%s124 + $0xc8] sm:$0xff] %v175
                %v177 = vld [vmem:[%s123 + $0x190] sm:$0xff]
                %178 = vst [vmem:[%s124 + $0xd0] sm:$0xff] %v177
                %v179 = vld [vmem:[%s123 + $0x198] sm:$0xff]
                %180 = vst [vmem:[%s124 + $0xd8] sm:$0xff] %v179
                %v181 = vld [vmem:[%s123 + $0x1a0] sm:$0xff]
                %182 = vst [vmem:[%s124 + $0xe0] sm:$0xff] %v181
                %v183 = vld [vmem:[%s123 + $0x1a8] sm:$0xff]
                %184 = vst [vmem:[%s124 + $0xe8] sm:$0xff] %v183
                %v185 = vld [vmem:[%s123 + $0x1b0] sm:$0xff]
                %186 = vst [vmem:[%s124 + $0xf0] sm:$0xff] %v185
                %v187 = vld [vmem:[%s123 + $0x1b8] sm:$0xff]
                %188 = vst [vmem:[%s124 + $0xf8] sm:$0xff] %v187
                %v189 = vld [vmem:[%s123 + $0x200] sm:$0xff]
                %190 = vst [vmem:[%s124 + $0x100] sm:$0xff] %v189
                %v191 = vld [vmem:[%s123 + $0x208] sm:$0xff]
                %192 = vst [vmem:[%s124 + $0x108] sm:$0xff] %v191
                %v193 = vld [vmem:[%s123 + $0x210] sm:$0xff]
                %194 = vst [vmem:[%s124 + $0x110] sm:$0xff] %v193
                %v195 = vld [vmem:[%s123 + $0x218] sm:$0xff]
                %196 = vst [vmem:[%s124 + $0x118] sm:$0xff] %v195
                %v197 = vld [vmem:[%s123 + $0x220] sm:$0xff]
                %198 = vst [vmem:[%s124 + $0x120] sm:$0xff] %v197
                %v199 = vld [vmem:[%s123 + $0x228] sm:$0xff]
                %200 = vst [vmem:[%s124 + $0x128] sm:$0xff] %v199
                %v201 = vld [vmem:[%s123 + $0x230] sm:$0xff]
                %202 = vst [vmem:[%s124 + $0x130] sm:$0xff] %v201
                %v203 = vld [vmem:[%s123 + $0x238] sm:$0xff]
                %204 = vst [vmem:[%s124 + $0x138] sm:$0xff] %v203
                %v205 = vld [vmem:[%s123 + $0x280] sm:$0xff]
                %206 = vst [vmem:[%s124 + $0x140] sm:$0xff] %v205
                %v207 = vld [vmem:[%s123 + $0x288] sm:$0xff]
                %208 = vst [vmem:[%s124 + $0x148] sm:$0xff] %v207
                %v209 = vld [vmem:[%s123 + $0x290] sm:$0xff]
                %210 = vst [vmem:[%s124 + $0x150] sm:$0xff] %v209
                %v211 = vld [vmem:[%s123 + $0x298] sm:$0xff]
                %212 = vst [vmem:[%s124 + $0x158] sm:$0xff] %v211
                %v213 = vld [vmem:[%s123 + $0x2a0] sm:$0xff]
                %214 = vst [vmem:[%s124 + $0x160] sm:$0xff] %v213
                %v215 = vld [vmem:[%s123 + $0x2a8] sm:$0xff]
                %216 = vst [vmem:[%s124 + $0x168] sm:$0xff] %v215
                %v217 = vld [vmem:[%s123 + $0x2b0] sm:$0xff]
                %218 = vst [vmem:[%s124 + $0x170] sm:$0xff] %v217
                %v219 = vld [vmem:[%s123 + $0x2b8] sm:$0xff]
                %220 = vst [vmem:[%s124 + $0x178] sm:$0xff] %v219
                %v221 = vld [vmem:[%s123 + $0x300] sm:$0xff]
                %222 = vst [vmem:[%s124 + $0x180] sm:$0xff] %v221
                %v223 = vld [vmem:[%s123 + $0x308] sm:$0xff]
                %224 = vst [vmem:[%s124 + $0x188] sm:$0xff] %v223
                %v225 = vld [vmem:[%s123 + $0x310] sm:$0xff]
                %226 = vst [vmem:[%s124 + $0x190] sm:$0xff] %v225
                %v227 = vld [vmem:[%s123 + $0x318] sm:$0xff]
                %228 = vst [vmem:[%s124 + $0x198] sm:$0xff] %v227
                %v229 = vld [vmem:[%s123 + $0x320] sm:$0xff]
                %230 = vst [vmem:[%s124 + $0x1a0] sm:$0xff] %v229
                %v231 = vld [vmem:[%s123 + $0x328] sm:$0xff]
                %232 = vst [vmem:[%s124 + $0x1a8] sm:$0xff] %v231
                %v233 = vld [vmem:[%s123 + $0x330] sm:$0xff]
                %234 = vst [vmem:[%s124 + $0x1b0] sm:$0xff] %v233
                %v235 = vld [vmem:[%s123 + $0x338] sm:$0xff]
                %236 = vst [vmem:[%s124 + $0x1b8] sm:$0xff] %v235
                %v237 = vld [vmem:[%s123 + $0x380] sm:$0xff]
                %238 = vst [vmem:[%s124 + $0x1c0] sm:$0xff] %v237
                %v239 = vld [vmem:[%s123 + $0x388] sm:$0xff]
                %240 = vst [vmem:[%s124 + $0x1c8] sm:$0xff] %v239
                %v241 = vld [vmem:[%s123 + $0x390] sm:$0xff]
                %242 = vst [vmem:[%s124 + $0x1d0] sm:$0xff] %v241
                %v243 = vld [vmem:[%s123 + $0x398] sm:$0xff]
                %244 = vst [vmem:[%s124 + $0x1d8] sm:$0xff] %v243
                %v245 = vld [vmem:[%s123 + $0x3a0] sm:$0xff]
                %246 = vst [vmem:[%s124 + $0x1e0] sm:$0xff] %v245
                %v247 = vld [vmem:[%s123 + $0x3a8] sm:$0xff]
                %248 = vst [vmem:[%s124 + $0x1e8] sm:$0xff] %v247
                %v249 = vld [vmem:[%s123 + $0x3b0] sm:$0xff]
                %250 = vst [vmem:[%s124 + $0x1f0] sm:$0xff] %v249
                %v251 = vld [vmem:[%s123 + $0x3b8] sm:$0xff]
                %252 = vst [vmem:[%s124 + $0x1f8] sm:$0xff] %v251
                %v253 = vld [vmem:[%s123 + $0x400] sm:$0xff]
                %254 = vst [vmem:[%s124 + $0x200] sm:$0xff] %v253
                %v255 = vld [vmem:[%s123 + $0x408] sm:$0xff]
                %256 = vst [vmem:[%s124 + $0x208] sm:$0xff] %v255
                %v257 = vld [vmem:[%s123 + $0x410] sm:$0xff]
                %258 = vst [vmem:[%s124 + $0x210] sm:$0xff] %v257
                %v259 = vld [vmem:[%s123 + $0x418] sm:$0xff]
                %260 = vst [vmem:[%s124 + $0x218] sm:$0xff] %v259
                %v261 = vld [vmem:[%s123 + $0x420] sm:$0xff]
                %262 = vst [vmem:[%s124 + $0x220] sm:$0xff] %v261
                %v263 = vld [vmem:[%s123 + $0x428] sm:$0xff]
                %264 = vst [vmem:[%s124 + $0x228] sm:$0xff] %v263
                %v265 = vld [vmem:[%s123 + $0x430] sm:$0xff]
                %266 = vst [vmem:[%s124 + $0x230] sm:$0xff] %v265
                %v267 = vld [vmem:[%s123 + $0x438] sm:$0xff]
                %268 = vst [vmem:[%s124 + $0x238] sm:$0xff] %v267
                %v269 = vld [vmem:[%s123 + $0x480] sm:$0xff]
                %270 = vst [vmem:[%s124 + $0x240] sm:$0xff] %v269
                %v271 = vld [vmem:[%s123 + $0x488] sm:$0xff]
                %272 = vst [vmem:[%s124 + $0x248] sm:$0xff] %v271
                %v273 = vld [vmem:[%s123 + $0x490] sm:$0xff]
                %274 = vst [vmem:[%s124 + $0x250] sm:$0xff] %v273
                %v275 = vld [vmem:[%s123 + $0x498] sm:$0xff]
                %276 = vst [vmem:[%s124 + $0x258] sm:$0xff] %v275
                %v277 = vld [vmem:[%s123 + $0x4a0] sm:$0xff]
                %278 = vst [vmem:[%s124 + $0x260] sm:$0xff] %v277
                %v279 = vld [vmem:[%s123 + $0x4a8] sm:$0xff]
                %280 = vst [vmem:[%s124 + $0x268] sm:$0xff] %v279
                %v281 = vld [vmem:[%s123 + $0x4b0] sm:$0xff]
                %282 = vst [vmem:[%s124 + $0x270] sm:$0xff] %v281
                %v283 = vld [vmem:[%s123 + $0x4b8] sm:$0xff]
                %284 = vst [vmem:[%s124 + $0x278] sm:$0xff] %v283
                %v285 = vld [vmem:[%s123 + $0x500] sm:$0xff]
                %286 = vst [vmem:[%s124 + $0x280] sm:$0xff] %v285
                %v287 = vld [vmem:[%s123 + $0x508] sm:$0xff]
                %288 = vst [vmem:[%s124 + $0x288] sm:$0xff] %v287
                %v289 = vld [vmem:[%s123 + $0x510] sm:$0xff]
                %290 = vst [vmem:[%s124 + $0x290] sm:$0xff] %v289
                %v291 = vld [vmem:[%s123 + $0x518] sm:$0xff]
                %292 = vst [vmem:[%s124 + $0x298] sm:$0xff] %v291
                %v293 = vld [vmem:[%s123 + $0x520] sm:$0xff]
                %294 = vst [vmem:[%s124 + $0x2a0] sm:$0xff] %v293
                %v295 = vld [vmem:[%s123 + $0x528] sm:$0xff]
                %296 = vst [vmem:[%s124 + $0x2a8] sm:$0xff] %v295
                %v297 = vld [vmem:[%s123 + $0x530] sm:$0xff]
                %298 = vst [vmem:[%s124 + $0x2b0] sm:$0xff] %v297
                %v299 = vld [vmem:[%s123 + $0x538] sm:$0xff]
                %300 = vst [vmem:[%s124 + $0x2b8] sm:$0xff] %v299
                %v301 = vld [vmem:[%s123 + $0x580] sm:$0xff]
                %302 = vst [vmem:[%s124 + $0x2c0] sm:$0xff] %v301
                %v303 = vld [vmem:[%s123 + $0x588] sm:$0xff]
                %304 = vst [vmem:[%s124 + $0x2c8] sm:$0xff] %v303
                %v305 = vld [vmem:[%s123 + $0x590] sm:$0xff]
                %306 = vst [vmem:[%s124 + $0x2d0] sm:$0xff] %v305
                %v307 = vld [vmem:[%s123 + $0x598] sm:$0xff]
                %308 = vst [vmem:[%s124 + $0x2d8] sm:$0xff] %v307
                %v309 = vld [vmem:[%s123 + $0x5a0] sm:$0xff]
                %310 = vst [vmem:[%s124 + $0x2e0] sm:$0xff] %v309
                %v311 = vld [vmem:[%s123 + $0x5a8] sm:$0xff]
                %312 = vst [vmem:[%s124 + $0x2e8] sm:$0xff] %v311
                %v313 = vld [vmem:[%s123 + $0x5b0] sm:$0xff]
                %314 = vst [vmem:[%s124 + $0x2f0] sm:$0xff] %v313
                %v315 = vld [vmem:[%s123 + $0x5b8] sm:$0xff]
                %316 = vst [vmem:[%s124 + $0x2f8] sm:$0xff] %v315
                %v317 = vld [vmem:[%s123 + $0x600] sm:$0xff]
                %318 = vst [vmem:[%s124 + $0x300] sm:$0xff] %v317
                %v319 = vld [vmem:[%s123 + $0x608] sm:$0xff]
                %320 = vst [vmem:[%s124 + $0x308] sm:$0xff] %v319
                %v321 = vld [vmem:[%s123 + $0x610] sm:$0xff]
                %322 = vst [vmem:[%s124 + $0x310] sm:$0xff] %v321
                %v323 = vld [vmem:[%s123 + $0x618] sm:$0xff]
                %324 = vst [vmem:[%s124 + $0x318] sm:$0xff] %v323
                %v325 = vld [vmem:[%s123 + $0x620] sm:$0xff]
                %326 = vst [vmem:[%s124 + $0x320] sm:$0xff] %v325
                %v327 = vld [vmem:[%s123 + $0x628] sm:$0xff]
                %328 = vst [vmem:[%s124 + $0x328] sm:$0xff] %v327
                %v329 = vld [vmem:[%s123 + $0x630] sm:$0xff]
                %330 = vst [vmem:[%s124 + $0x330] sm:$0xff] %v329
                %v331 = vld [vmem:[%s123 + $0x638] sm:$0xff]
                %332 = vst [vmem:[%s124 + $0x338] sm:$0xff] %v331
                %v333 = vld [vmem:[%s123 + $0x680] sm:$0xff]
                %334 = vst [vmem:[%s124 + $0x340] sm:$0xff] %v333
                %v335 = vld [vmem:[%s123 + $0x688] sm:$0xff]
                %336 = vst [vmem:[%s124 + $0x348] sm:$0xff] %v335
                %v337 = vld [vmem:[%s123 + $0x690] sm:$0xff]
                %338 = vst [vmem:[%s124 + $0x350] sm:$0xff] %v337
                %v339 = vld [vmem:[%s123 + $0x698] sm:$0xff]
                %340 = vst [vmem:[%s124 + $0x358] sm:$0xff] %v339
                %v341 = vld [vmem:[%s123 + $0x6a0] sm:$0xff]
                %342 = vst [vmem:[%s124 + $0x360] sm:$0xff] %v341
                %v343 = vld [vmem:[%s123 + $0x6a8] sm:$0xff]
                %344 = vst [vmem:[%s124 + $0x368] sm:$0xff] %v343
                %v345 = vld [vmem:[%s123 + $0x6b0] sm:$0xff]
                %346 = vst [vmem:[%s124 + $0x370] sm:$0xff] %v345
                %v347 = vld [vmem:[%s123 + $0x6b8] sm:$0xff]
                %348 = vst [vmem:[%s124 + $0x378] sm:$0xff] %v347
              $region37: #{a_call__.4} parent=31 // loop_footer
                %s122 = sadd.s32 1, %s118
              $region38: #{a_call__.4} parent=31 // loop_footer_branch
                %117 = sbr.rel target = $region34
              $region39: #{a_call__.4} parent=31 // loop_exit
                _
            $region32: #{a_call__.4} parent=27 // pred_fallthru
              _
            // Predicated region
            $region40: #{a_call__.4} parent=27 // pred_check
              _
            $region41: #{a_call__.4} parent=27 // pred_check_branch
              %350 = sbr.rel target = $region43
            $region42: #{a_call__.4} parent=27 // pred_region
              _
            $region43: #{a_call__.4} parent=27 // pred_fallthru
              _
          $region28: #{a_call__.4} parent=23 // pred_fallthru
            _
          %351 = vnop
        $region24: #{a_call__.4} parent=19 // pred_fallthru
          _
      $region20: #{a_call__.4} parent=5 // pred_fallthru
        _
      %p352 = scmp.le.s32.totalorder 1, %s8
      %p353 = scmp.lt.s32.totalorder %s8, 3
      %p354 = pnand %p352, %p353
      %p355 = pneg %p354
      // Predicated region
      $region44: #{a_call__.4} parent=5 // pred_check
        _
      $region45: #{a_call__.4} parent=5 // pred_check_branch
        %357 = sbr.rel (%p354) target = $region47
      $region46: #{a_call__.4} parent=5 // pred_region
        %s358 = ssub.s32 %s8, 1
        %s359 = sand.u32 %s42, 1
        %s360 = sand.u32 %s42, 1
        %s361 = smul.addr %s360, 896
        %s362 = scalar_lea.vmem [#allocation2], %s361
        // Predicated region
        $region48: #{a_call__.4} parent=46 // pred_check
          %p363 = pneg %p55
        $region49: #{a_call__.4} parent=46 // pred_check_branch
          %365 = sbr.rel (%p363) target = $region51
        $region50: #{a_call__.4} parent=46 // pred_region
          _
        $region51: #{a_call__.4} parent=46 // pred_fallthru
          _
        %p366 = pneg %p29
        %p367 = pneg %p26
        %s368 = sand.u32 %s42, 1
        %s369 = sand.u32 %s42, 1
        %s370 = smul.addr %s369, 896
        %s371 = scalar_lea.vmem [#allocation2], %s370
        %p372 = pneg %p55
        %p373 = pneg %p52
        %p374 = pneg %p81
        %p375 = pneg %p78
        %s376 = smul.u32 16, %s13
        %p377 = scmp.lt.s32.totalorder %s376, 31
        %s378 = scalar_select %p377, %s376, 31
        %s379 = smul.addr %s378, 8
        %s380 = scalar_lea.vmem %s2, %s379
        %s381 = smul.u32 16, %s13
        %s382 = smul.u32 16, %s13
        %p383 = scmp.lt.s32.totalorder %s382, 31
        %s384 = scalar_select %p383, %s382, 31
        %s385 = smul.addr %s384, 8
        %s386 = scalar_lea.vmem %s2, %s385
        %s387 = smul.u32 16, %s13
        %v389 = vld [vmem:[%s0] sm:$0xf]
        %v390 = vld [vmem:[%s362] sm:$0xff]
        %v391 = vld [vmem:[%s362 + $0x8] sm:$0xff]
        %v392 = vld [vmem:[%s362 + $0x10] sm:$0xff]
        %v393 = vld [vmem:[%s362 + $0x18] sm:$0xff]
        %v394 = vld [vmem:[%s362 + $0x20] sm:$0xff]
        %v395 = vld [vmem:[%s362 + $0x28] sm:$0xff]
        %v396 = vld [vmem:[%s362 + $0x30] sm:$0xff]
        %v397 = vld [vmem:[%s362 + $0x38] sm:$0xff]
        %v398 = vld [vmem:[%s362 + $0x40] sm:$0xff]
        %v399 = vld [vmem:[%s362 + $0x48] sm:$0xff]
        %v400 = vld [vmem:[%s362 + $0x50] sm:$0xff]
        %v401 = vld [vmem:[%s362 + $0x58] sm:$0xff]
        %v402 = vld [vmem:[%s362 + $0x60] sm:$0xff]
        %v403 = vld [vmem:[%s362 + $0x68] sm:$0xff]
        %v404 = vld [vmem:[%s362 + $0x70] sm:$0xff]
        %v405 = vld [vmem:[%s362 + $0x78] sm:$0xff]
        %v406 = vld [vmem:[%s362 + $0x80] sm:$0xff]
        %v407 = vld [vmem:[%s362 + $0x88] sm:$0xff]
        %v408 = vld [vmem:[%s362 + $0x90] sm:$0xff]
        %v409 = vld [vmem:[%s362 + $0x98] sm:$0xff]
        %v410 = vld [vmem:[%s362 + $0xa0] sm:$0xff]
        %v411 = vld [vmem:[%s362 + $0xa8] sm:$0xff]
        %v412 = vld [vmem:[%s362 + $0xb0] sm:$0xff]
        %v413 = vld [vmem:[%s362 + $0xb8] sm:$0xff]
        %v414 = vld [vmem:[%s362 + $0xc0] sm:$0xff]
        %v415 = vld [vmem:[%s362 + $0xc8] sm:$0xff]
        %v416 = vld [vmem:[%s362 + $0xd0] sm:$0xff]
        %v417 = vld [vmem:[%s362 + $0xd8] sm:$0xff]
        %v418 = vld [vmem:[%s362 + $0xe0] sm:$0xff]
        %v419 = vld [vmem:[%s362 + $0xe8] sm:$0xff]
        %v420 = vld [vmem:[%s362 + $0xf0] sm:$0xff]
        %v421 = vld [vmem:[%s362 + $0xf8] sm:$0xff]
        %v422 = vld [vmem:[%s362 + $0x100] sm:$0xff]
        %v423 = vld [vmem:[%s362 + $0x108] sm:$0xff]
        %v424 = vld [vmem:[%s362 + $0x110] sm:$0xff]
        %v425 = vld [vmem:[%s362 + $0x118] sm:$0xff]
        %v426 = vld [vmem:[%s362 + $0x120] sm:$0xff]
        %v427 = vld [vmem:[%s362 + $0x128] sm:$0xff]
        %v428 = vld [vmem:[%s362 + $0x130] sm:$0xff]
        %v429 = vld [vmem:[%s362 + $0x138] sm:$0xff]
        %v430 = vld [vmem:[%s362 + $0x140] sm:$0xff]
        %v431 = vld [vmem:[%s362 + $0x148] sm:$0xff]
        %v432 = vld [vmem:[%s362 + $0x150] sm:$0xff]
        %v433 = vld [vmem:[%s362 + $0x158] sm:$0xff]
        %v434 = vld [vmem:[%s362 + $0x160] sm:$0xff]
        %v435 = vld [vmem:[%s362 + $0x168] sm:$0xff]
        %v436 = vld [vmem:[%s362 + $0x170] sm:$0xff]
        %v437 = vld [vmem:[%s362 + $0x178] sm:$0xff]
        %v438 = vld [vmem:[%s362 + $0x180] sm:$0xff]
        %v439 = vld [vmem:[%s362 + $0x188] sm:$0xff]
        %v440 = vld [vmem:[%s362 + $0x190] sm:$0xff]
        %v441 = vld [vmem:[%s362 + $0x198] sm:$0xff]
        %v442 = vld [vmem:[%s362 + $0x1a0] sm:$0xff]
        %v443 = vld [vmem:[%s362 + $0x1a8] sm:$0xff]
        %v444 = vld [vmem:[%s362 + $0x1b0] sm:$0xff]
        %v445 = vld [vmem:[%s362 + $0x1b8] sm:$0xff]
        %v446 = vld [vmem:[%s362 + $0x1c0] sm:$0xff]
        %v447 = vld [vmem:[%s362 + $0x1c8] sm:$0xff]
        %v448 = vld [vmem:[%s362 + $0x1d0] sm:$0xff]
        %v449 = vld [vmem:[%s362 + $0x1d8] sm:$0xff]
        %v450 = vld [vmem:[%s362 + $0x1e0] sm:$0xff]
        %v451 = vld [vmem:[%s362 + $0x1e8] sm:$0xff]
        %v452 = vld [vmem:[%s362 + $0x1f0] sm:$0xff]
        %v453 = vld [vmem:[%s362 + $0x1f8] sm:$0xff]
        %v454 = vld [vmem:[%s362 + $0x200] sm:$0xff]
        %v455 = vld [vmem:[%s362 + $0x208] sm:$0xff]
        %v456 = vld [vmem:[%s362 + $0x210] sm:$0xff]
        %v457 = vld [vmem:[%s362 + $0x218] sm:$0xff]
        %v458 = vld [vmem:[%s362 + $0x220] sm:$0xff]
        %v459 = vld [vmem:[%s362 + $0x228] sm:$0xff]
        %v460 = vld [vmem:[%s362 + $0x230] sm:$0xff]
        %v461 = vld [vmem:[%s362 + $0x238] sm:$0xff]
        %v462 = vld [vmem:[%s362 + $0x240] sm:$0xff]
        %v463 = vld [vmem:[%s362 + $0x248] sm:$0xff]
        %v464 = vld [vmem:[%s362 + $0x250] sm:$0xff]
        %v465 = vld [vmem:[%s362 + $0x258] sm:$0xff]
        %v466 = vld [vmem:[%s362 + $0x260] sm:$0xff]
        %v467 = vld [vmem:[%s362 + $0x268] sm:$0xff]
        %v468 = vld [vmem:[%s362 + $0x270] sm:$0xff]
        %v469 = vld [vmem:[%s362 + $0x278] sm:$0xff]
        %v470 = vld [vmem:[%s362 + $0x280] sm:$0xff]
        %v471 = vld [vmem:[%s362 + $0x288] sm:$0xff]
        %v472 = vld [vmem:[%s362 + $0x290] sm:$0xff]
        %v473 = vld [vmem:[%s362 + $0x298] sm:$0xff]
        %v474 = vld [vmem:[%s362 + $0x2a0] sm:$0xff]
        %v475 = vld [vmem:[%s362 + $0x2a8] sm:$0xff]
        %v476 = vld [vmem:[%s362 + $0x2b0] sm:$0xff]
        %v477 = vld [vmem:[%s362 + $0x2b8] sm:$0xff]
        %v478 = vld [vmem:[%s362 + $0x2c0] sm:$0xff]
        %v479 = vld [vmem:[%s362 + $0x2c8] sm:$0xff]
        %v480 = vld [vmem:[%s362 + $0x2d0] sm:$0xff]
        %v481 = vld [vmem:[%s362 + $0x2d8] sm:$0xff]
        %v482 = vld [vmem:[%s362 + $0x2e0] sm:$0xff]
        %v483 = vld [vmem:[%s362 + $0x2e8] sm:$0xff]
        %v484 = vld [vmem:[%s362 + $0x2f0] sm:$0xff]
        %v485 = vld [vmem:[%s362 + $0x2f8] sm:$0xff]
        %v486 = vld [vmem:[%s362 + $0x300] sm:$0xff]
        %v487 = vld [vmem:[%s362 + $0x308] sm:$0xff]
        %v488 = vld [vmem:[%s362 + $0x310] sm:$0xff]
        %v489 = vld [vmem:[%s362 + $0x318] sm:$0xff]
        %v490 = vld [vmem:[%s362 + $0x320] sm:$0xff]
        %v491 = vld [vmem:[%s362 + $0x328] sm:$0xff]
        %v492 = vld [vmem:[%s362 + $0x330] sm:$0xff]
        %v493 = vld [vmem:[%s362 + $0x338] sm:$0xff]
        %v494 = vld [vmem:[%s362 + $0x340] sm:$0x33]
        %v495 = vld [vmem:[%s362 + $0x348] sm:$0x33]
        %v496 = vld [vmem:[%s362 + $0x350] sm:$0x33]
        %v497 = vld [vmem:[%s362 + $0x358] sm:$0x33]
        %v498 = vld [vmem:[%s362 + $0x360] sm:$0x33]
        %v499 = vld [vmem:[%s362 + $0x368] sm:$0x33]
        %v500 = vld [vmem:[%s362 + $0x370] sm:$0x33]
        %v501 = vld [vmem:[%s362 + $0x378] sm:$0x33]
        %v614 = vunpack.c.l.b16 %v390
        %v615 = vunpack.c.h.b16 %v390
        %v616 = vunpack.c.l.b16 %v391
        %v617 = vunpack.c.h.b16 %v391
        %v618 = vunpack.c.l.b16 %v392
        %v619 = vunpack.c.h.b16 %v392
        %v620 = vunpack.c.l.b16 %v393
        %v621 = vunpack.c.h.b16 %v393
        %v622 = vunpack.c.l.b16 %v394
        %v623 = vunpack.c.h.b16 %v394
        %v624 = vunpack.c.l.b16 %v395
        %v625 = vunpack.c.h.b16 %v395
        %v626 = vunpack.c.l.b16 %v396
        %v627 = vunpack.c.h.b16 %v396
        %v628 = vunpack.c.l.b16 %v397
        %v629 = vunpack.c.h.b16 %v397
        %v630 = vunpack.c.l.b16 %v398
        %v631 = vunpack.c.h.b16 %v398
        %v632 = vunpack.c.l.b16 %v399
        %v633 = vunpack.c.h.b16 %v399
        %v634 = vunpack.c.l.b16 %v400
        %v635 = vunpack.c.h.b16 %v400
        %v636 = vunpack.c.l.b16 %v401
        %v637 = vunpack.c.h.b16 %v401
        %v638 = vunpack.c.l.b16 %v402
        %v639 = vunpack.c.h.b16 %v402
        %v640 = vunpack.c.l.b16 %v403
        %v641 = vunpack.c.h.b16 %v403
        %v642 = vunpack.c.l.b16 %v404
        %v643 = vunpack.c.h.b16 %v404
        %v644 = vunpack.c.l.b16 %v405
        %v645 = vunpack.c.h.b16 %v405
        %v646 = vunpack.c.l.b16 %v406
        %v647 = vunpack.c.h.b16 %v406
        %v648 = vunpack.c.l.b16 %v407
        %v649 = vunpack.c.h.b16 %v407
        %v650 = vunpack.c.l.b16 %v408
        %v651 = vunpack.c.h.b16 %v408
        %v652 = vunpack.c.l.b16 %v409
        %v653 = vunpack.c.h.b16 %v409
        %v654 = vunpack.c.l.b16 %v410
        %v655 = vunpack.c.h.b16 %v410
        %v656 = vunpack.c.l.b16 %v411
        %v657 = vunpack.c.h.b16 %v411
        %v658 = vunpack.c.l.b16 %v412
        %v659 = vunpack.c.h.b16 %v412
        %v660 = vunpack.c.l.b16 %v413
        %v661 = vunpack.c.h.b16 %v413
        %v662 = vunpack.c.l.b16 %v414
        %v663 = vunpack.c.h.b16 %v414
        %v664 = vunpack.c.l.b16 %v415
        %v665 = vunpack.c.h.b16 %v415
        %v666 = vunpack.c.l.b16 %v416
        %v667 = vunpack.c.h.b16 %v416
        %v668 = vunpack.c.l.b16 %v417
        %v669 = vunpack.c.h.b16 %v417
        %v670 = vunpack.c.l.b16 %v418
        %v671 = vunpack.c.h.b16 %v418
        %v672 = vunpack.c.l.b16 %v419
        %v673 = vunpack.c.h.b16 %v419
        %v674 = vunpack.c.l.b16 %v420
        %v675 = vunpack.c.h.b16 %v420
        %v676 = vunpack.c.l.b16 %v421
        %v677 = vunpack.c.h.b16 %v421
        %v678 = vunpack.c.l.b16 %v422
        %v679 = vunpack.c.h.b16 %v422
        %v680 = vunpack.c.l.b16 %v423
        %v681 = vunpack.c.h.b16 %v423
        %v682 = vunpack.c.l.b16 %v424
        %v683 = vunpack.c.h.b16 %v424
        %v684 = vunpack.c.l.b16 %v425
        %v685 = vunpack.c.h.b16 %v425
        %v686 = vunpack.c.l.b16 %v426
        %v687 = vunpack.c.h.b16 %v426
        %v688 = vunpack.c.l.b16 %v427
        %v689 = vunpack.c.h.b16 %v427
        %v690 = vunpack.c.l.b16 %v428
        %v691 = vunpack.c.h.b16 %v428
        %v692 = vunpack.c.l.b16 %v429
        %v693 = vunpack.c.h.b16 %v429
        %v694 = vunpack.c.l.b16 %v430
        %v695 = vunpack.c.h.b16 %v430
        %v696 = vunpack.c.l.b16 %v431
        %v697 = vunpack.c.h.b16 %v431
        %v698 = vunpack.c.l.b16 %v432
        %v699 = vunpack.c.h.b16 %v432
        %v700 = vunpack.c.l.b16 %v433
        %v701 = vunpack.c.h.b16 %v433
        %v702 = vunpack.c.l.b16 %v434
        %v703 = vunpack.c.h.b16 %v434
        %v704 = vunpack.c.l.b16 %v435
        %v705 = vunpack.c.h.b16 %v435
        %v706 = vunpack.c.l.b16 %v436
        %v707 = vunpack.c.h.b16 %v436
        %v708 = vunpack.c.l.b16 %v437
        %v709 = vunpack.c.h.b16 %v437
        %v710 = vunpack.c.l.b16 %v438
        %v711 = vunpack.c.h.b16 %v438
        %v712 = vunpack.c.l.b16 %v439
        %v713 = vunpack.c.h.b16 %v439
        %v714 = vunpack.c.l.b16 %v440
        %v715 = vunpack.c.h.b16 %v440
        %v716 = vunpack.c.l.b16 %v441
        %v717 = vunpack.c.h.b16 %v441
        %v718 = vunpack.c.l.b16 %v442
        %v719 = vunpack.c.h.b16 %v442
        %v720 = vunpack.c.l.b16 %v443
        %v721 = vunpack.c.h.b16 %v443
        %v722 = vunpack.c.l.b16 %v444
        %v723 = vunpack.c.h.b16 %v444
        %v724 = vunpack.c.l.b16 %v445
        %v725 = vunpack.c.h.b16 %v445
        %v726 = vunpack.c.l.b16 %v446
        %v727 = vunpack.c.h.b16 %v446
        %v728 = vunpack.c.l.b16 %v447
        %v729 = vunpack.c.h.b16 %v447
        %v730 = vunpack.c.l.b16 %v448
        %v731 = vunpack.c.h.b16 %v448
        %v732 = vunpack.c.l.b16 %v449
        %v733 = vunpack.c.h.b16 %v449
        %v734 = vunpack.c.l.b16 %v450
        %v735 = vunpack.c.h.b16 %v450
        %v736 = vunpack.c.l.b16 %v451
        %v737 = vunpack.c.h.b16 %v451
        %v738 = vunpack.c.l.b16 %v452
        %v739 = vunpack.c.h.b16 %v452
        %v740 = vunpack.c.l.b16 %v453
        %v741 = vunpack.c.h.b16 %v453
        %v742 = vunpack.c.l.b16 %v454
        %v743 = vunpack.c.h.b16 %v454
        %v744 = vunpack.c.l.b16 %v455
        %v745 = vunpack.c.h.b16 %v455
        %v746 = vunpack.c.l.b16 %v456
        %v747 = vunpack.c.h.b16 %v456
        %v748 = vunpack.c.l.b16 %v457
        %v749 = vunpack.c.h.b16 %v457
        %v750 = vunpack.c.l.b16 %v458
        %v751 = vunpack.c.h.b16 %v458
        %v752 = vunpack.c.l.b16 %v459
        %v753 = vunpack.c.h.b16 %v459
        %v754 = vunpack.c.l.b16 %v460
        %v755 = vunpack.c.h.b16 %v460
        %v756 = vunpack.c.l.b16 %v461
        %v757 = vunpack.c.h.b16 %v461
        %v758 = vunpack.c.l.b16 %v462
        %v759 = vunpack.c.h.b16 %v462
        %v760 = vunpack.c.l.b16 %v463
        %v761 = vunpack.c.h.b16 %v463
        %v762 = vunpack.c.l.b16 %v464
        %v763 = vunpack.c.h.b16 %v464
        %v764 = vunpack.c.l.b16 %v465
        %v765 = vunpack.c.h.b16 %v465
        %v766 = vunpack.c.l.b16 %v466
        %v767 = vunpack.c.h.b16 %v466
        %v768 = vunpack.c.l.b16 %v467
        %v769 = vunpack.c.h.b16 %v467
        %v770 = vunpack.c.l.b16 %v468
        %v771 = vunpack.c.h.b16 %v468
        %v772 = vunpack.c.l.b16 %v469
        %v773 = vunpack.c.h.b16 %v469
        %v774 = vunpack.c.l.b16 %v470
        %v775 = vunpack.c.h.b16 %v470
        %v776 = vunpack.c.l.b16 %v471
        %v777 = vunpack.c.h.b16 %v471
        %v778 = vunpack.c.l.b16 %v472
        %v779 = vunpack.c.h.b16 %v472
        %v780 = vunpack.c.l.b16 %v473
        %v781 = vunpack.c.h.b16 %v473
        %v782 = vunpack.c.l.b16 %v474
        %v783 = vunpack.c.h.b16 %v474
        %v784 = vunpack.c.l.b16 %v475
        %v785 = vunpack.c.h.b16 %v475
        %v786 = vunpack.c.l.b16 %v476
        %v787 = vunpack.c.h.b16 %v476
        %v788 = vunpack.c.l.b16 %v477
        %v789 = vunpack.c.h.b16 %v477
        %v790 = vunpack.c.l.b16 %v478
        %v791 = vunpack.c.h.b16 %v478
        %v792 = vunpack.c.l.b16 %v479
        %v793 = vunpack.c.h.b16 %v479
        %v794 = vunpack.c.l.b16 %v480
        %v795 = vunpack.c.h.b16 %v480
        %v796 = vunpack.c.l.b16 %v481
        %v797 = vunpack.c.h.b16 %v481
        %v798 = vunpack.c.l.b16 %v482
        %v799 = vunpack.c.h.b16 %v482
        %v800 = vunpack.c.l.b16 %v483
        %v801 = vunpack.c.h.b16 %v483
        %v802 = vunpack.c.l.b16 %v484
        %v803 = vunpack.c.h.b16 %v484
        %v804 = vunpack.c.l.b16 %v485
        %v805 = vunpack.c.h.b16 %v485
        %v806 = vunpack.c.l.b16 %v486
        %v807 = vunpack.c.h.b16 %v486
        %v808 = vunpack.c.l.b16 %v487
        %v809 = vunpack.c.h.b16 %v487
        %v810 = vunpack.c.l.b16 %v488
        %v811 = vunpack.c.h.b16 %v488
        %v812 = vunpack.c.l.b16 %v489
        %v813 = vunpack.c.h.b16 %v489
        %v814 = vunpack.c.l.b16 %v490
        %v815 = vunpack.c.h.b16 %v490
        %v816 = vunpack.c.l.b16 %v491
        %v817 = vunpack.c.h.b16 %v491
        %v818 = vunpack.c.l.b16 %v492
        %v819 = vunpack.c.h.b16 %v492
        %v820 = vunpack.c.l.b16 %v493
        %v821 = vunpack.c.h.b16 %v493
        %v822 = vunpack.c.l.b16 %v494
        %v823 = vunpack.c.h.b16 %v494
        %v824 = vunpack.c.l.b16 %v495
        %v825 = vunpack.c.h.b16 %v495
        %v826 = vunpack.c.l.b16 %v496
        %v827 = vunpack.c.h.b16 %v496
        %v828 = vunpack.c.l.b16 %v497
        %v829 = vunpack.c.h.b16 %v497
        %v830 = vunpack.c.l.b16 %v498
        %v831 = vunpack.c.h.b16 %v498
        %v832 = vunpack.c.l.b16 %v499
        %v833 = vunpack.c.h.b16 %v499
        %v834 = vunpack.c.l.b16 %v500
        %v835 = vunpack.c.h.b16 %v500
        %v836 = vunpack.c.l.b16 %v501
        %v837 = vunpack.c.h.b16 %v501
        %v838 = vpack.c.b16 %v630, %v614
        %v839 = vpack.c.b16 %v631, %v615
        %v840 = vpack.c.b16 %v632, %v616
        %v841 = vpack.c.b16 %v633, %v617
        %v842 = vpack.c.b16 %v634, %v618
        %v843 = vpack.c.b16 %v635, %v619
        %v844 = vpack.c.b16 %v636, %v620
        %v845 = vpack.c.b16 %v637, %v621
        %v846 = vpack.c.b16 %v638, %v622
        %v847 = vpack.c.b16 %v639, %v623
        %v848 = vpack.c.b16 %v640, %v624
        %v849 = vpack.c.b16 %v641, %v625
        %v850 = vpack.c.b16 %v642, %v626
        %v851 = vpack.c.b16 %v643, %v627
        %v852 = vpack.c.b16 %v644, %v628
        %v853 = vpack.c.b16 %v645, %v629
        %v854 = vpack.c.b16 %v662, %v646
        %v855 = vpack.c.b16 %v663, %v647
        %v856 = vpack.c.b16 %v664, %v648
        %v857 = vpack.c.b16 %v665, %v649
        %v858 = vpack.c.b16 %v666, %v650
        %v859 = vpack.c.b16 %v667, %v651
        %v860 = vpack.c.b16 %v668, %v652
        %v861 = vpack.c.b16 %v669, %v653
        %v862 = vpack.c.b16 %v670, %v654
        %v863 = vpack.c.b16 %v671, %v655
        %v864 = vpack.c.b16 %v672, %v656
        %v865 = vpack.c.b16 %v673, %v657
        %v866 = vpack.c.b16 %v674, %v658
        %v867 = vpack.c.b16 %v675, %v659
        %v868 = vpack.c.b16 %v676, %v660
        %v869 = vpack.c.b16 %v677, %v661
        %v870 = vpack.c.b16 %v694, %v678
        %v871 = vpack.c.b16 %v695, %v679
        %v872 = vpack.c.b16 %v696, %v680
        %v873 = vpack.c.b16 %v697, %v681
        %v874 = vpack.c.b16 %v698, %v682
        %v875 = vpack.c.b16 %v699, %v683
        %v876 = vpack.c.b16 %v700, %v684
        %v877 = vpack.c.b16 %v701, %v685
        %v878 = vpack.c.b16 %v702, %v686
        %v879 = vpack.c.b16 %v703, %v687
        %v880 = vpack.c.b16 %v704, %v688
        %v881 = vpack.c.b16 %v705, %v689
        %v882 = vpack.c.b16 %v706, %v690
        %v883 = vpack.c.b16 %v707, %v691
        %v884 = vpack.c.b16 %v708, %v692
        %v885 = vpack.c.b16 %v709, %v693
        %v886 = vpack.c.b16 %v726, %v710
        %v887 = vpack.c.b16 %v727, %v711
        %v888 = vpack.c.b16 %v728, %v712
        %v889 = vpack.c.b16 %v729, %v713
        %v890 = vpack.c.b16 %v730, %v714
        %v891 = vpack.c.b16 %v731, %v715
        %v892 = vpack.c.b16 %v732, %v716
        %v893 = vpack.c.b16 %v733, %v717
        %v894 = vpack.c.b16 %v734, %v718
        %v895 = vpack.c.b16 %v735, %v719
        %v896 = vpack.c.b16 %v736, %v720
        %v897 = vpack.c.b16 %v737, %v721
        %v898 = vpack.c.b16 %v738, %v722
        %v899 = vpack.c.b16 %v739, %v723
        %v900 = vpack.c.b16 %v740, %v724
        %v901 = vpack.c.b16 %v741, %v725
        %v902 = vpack.c.b16 %v758, %v742
        %v903 = vpack.c.b16 %v759, %v743
        %v904 = vpack.c.b16 %v760, %v744
        %v905 = vpack.c.b16 %v761, %v745
        %v906 = vpack.c.b16 %v762, %v746
        %v907 = vpack.c.b16 %v763, %v747
        %v908 = vpack.c.b16 %v764, %v748
        %v909 = vpack.c.b16 %v765, %v749
        %v910 = vpack.c.b16 %v766, %v750
        %v911 = vpack.c.b16 %v767, %v751
        %v912 = vpack.c.b16 %v768, %v752
        %v913 = vpack.c.b16 %v769, %v753
        %v914 = vpack.c.b16 %v770, %v754
        %v915 = vpack.c.b16 %v771, %v755
        %v916 = vpack.c.b16 %v772, %v756
        %v917 = vpack.c.b16 %v773, %v757
        %v918 = vpack.c.b16 %v790, %v774
        %v919 = vpack.c.b16 %v791, %v775
        %v920 = vpack.c.b16 %v792, %v776
        %v921 = vpack.c.b16 %v793, %v777
        %v922 = vpack.c.b16 %v794, %v778
        %v923 = vpack.c.b16 %v795, %v779
        %v924 = vpack.c.b16 %v796, %v780
        %v925 = vpack.c.b16 %v797, %v781
        %v926 = vpack.c.b16 %v798, %v782
        %v927 = vpack.c.b16 %v799, %v783
        %v928 = vpack.c.b16 %v800, %v784
        %v929 = vpack.c.b16 %v801, %v785
        %v930 = vpack.c.b16 %v802, %v786
        %v931 = vpack.c.b16 %v803, %v787
        %v932 = vpack.c.b16 %v804, %v788
        %v933 = vpack.c.b16 %v805, %v789
        %v934 = vpack.c.b16 %v822, %v806
        %v935 = vpack.c.b16 %v823, %v807
        %v936 = vpack.c.b16 %v824, %v808
        %v937 = vpack.c.b16 %v825, %v809
        %v938 = vpack.c.b16 %v826, %v810
        %v939 = vpack.c.b16 %v827, %v811
        %v940 = vpack.c.b16 %v828, %v812
        %v941 = vpack.c.b16 %v829, %v813
        %v942 = vpack.c.b16 %v830, %v814
        %v943 = vpack.c.b16 %v831, %v815
        %v944 = vpack.c.b16 %v832, %v816
        %v945 = vpack.c.b16 %v833, %v817
        %v946 = vpack.c.b16 %v834, %v818
        %v947 = vpack.c.b16 %v835, %v819
        %v948 = vpack.c.b16 %v836, %v820
        %v949 = vpack.c.b16 %v837, %v821
        %vm1046 = vcmask 883712
        %v1048 = vsel %vm1046, %v389, 0
        %vm1050 = vcmask 1045504
        %v1052 = vsel %vm1050, %v934, 0
        %v1055 = vsel %vm1050, %v935, 0
        %v1058 = vsel %vm1050, %v936, 0
        %v1061 = vsel %vm1050, %v937, 0
        %v1064 = vsel %vm1050, %v938, 0
        %v1067 = vsel %vm1050, %v939, 0
        %v1070 = vsel %vm1050, %v940, 0
        %v1073 = vsel %vm1050, %v941, 0
        %v1076 = vsel %vm1050, %v942, 0
        %v1079 = vsel %vm1050, %v943, 0
        %v1082 = vsel %vm1050, %v944, 0
        %v1085 = vsel %vm1050, %v945, 0
        %v1088 = vsel %vm1050, %v946, 0
        %v1091 = vsel %vm1050, %v947, 0
        %v1094 = vsel %vm1050, %v948, 0
        %v1097 = vsel %vm1050, %v949, 0
        %1099 = vmatprep.subr.bf16.mxu0 %v839
        %1100 = vmatpush1.bf16.msra.mxu0 %v838
        %1101 = vmatprep.subr.bf16.mxu0 %v855
        %1102 = vmatpush1.bf16.msra.mxu0 %v854
        %1103 = vmatprep.subr.bf16.mxu0 %v871
        %1104 = vmatpush1.bf16.msra.mxu0 %v870
        %1105 = vmatprep.subr.bf16.mxu0 %v887
        %1106 = vmatpush1.bf16.msra.mxu0 %v886
        %1107 = vmatprep.subr.bf16.mxu0 %v903
        %1108 = vmatpush1.bf16.msra.mxu0 %v902
        %1109 = vmatprep.subr.bf16.mxu0 %v919
        %1110 = vmatpush1.bf16.msra.mxu0 %v918
        %1111 = vmatprep.subr.bf16.mxu0 %v1055
        %1112 = vmatpush1.bf16.msra.mxu0 %v1052
        %1113 = vmatprep.subr.bf16.mxu0 0
        %1114 = vmatpush1.bf16.msra.mxu0 0
        %1115 = vmatprep.subr.bf16.mxu0 0
        %1116 = vmatpush1.bf16.msra.mxu0 0
        %1117 = vmatprep.subr.bf16.mxu0 0
        %1118 = vmatpush1.bf16.msra.mxu0 0
        %1119 = vmatprep.subr.bf16.mxu0 0
        %1120 = vmatpush1.bf16.msra.mxu0 0
        %1121 = vmatprep.subr.bf16.mxu0 0
        %1122 = vmatpush1.bf16.msra.mxu0 0
        %1123 = vmatprep.subr.bf16.mxu0 0
        %1124 = vmatpush1.bf16.msra.mxu0 0
        %1125 = vmatprep.subr.bf16.mxu0 0
        %1126 = vmatpush1.bf16.msra.mxu0 0
        %1127 = vmatprep.subr.bf16.mxu0 0
        %1128 = vmatpush1.bf16.msra.mxu0 0
        %1129 = vmatprep.subr.bf16.mxu0 0
        %1130 = vmatpush1.bf16.msra.mxu0 0
        %1131 = vmatprep.mubr.bf16.mxu0 0
        %1132 = vmatmul.mubr.bf16.gmra.mrb[0].mxu0 %v1048
        %v1133 = vpop.f32.mrb[0].mxu0
        %v1134 = vadd.f32 0.0, %v1133
        %v1135 = vpop.f32.mrb[0].mxu0
        %v1136 = vadd.f32 0.0, %v1135
        %v1137 = vpop.f32.mrb[0].mxu0
        %v1138 = vpop.f32.mrb[0].mxu0
        %1139 = vdwg.mxu0
        %1140 = vmatprep.subr.bf16.mxu0 %v841
        %1141 = vmatpush1.bf16.msra.mxu0 %v840
        %1142 = vmatprep.subr.bf16.mxu0 %v857
        %1143 = vmatpush1.bf16.msra.mxu0 %v856
        %1144 = vmatprep.subr.bf16.mxu0 %v873
        %1145 = vmatpush1.bf16.msra.mxu0 %v872
        %1146 = vmatprep.subr.bf16.mxu0 %v889
        %1147 = vmatpush1.bf16.msra.mxu0 %v888
        %1148 = vmatprep.subr.bf16.mxu0 %v905
        %1149 = vmatpush1.bf16.msra.mxu0 %v904
        %1150 = vmatprep.subr.bf16.mxu0 %v921
        %1151 = vmatpush1.bf16.msra.mxu0 %v920
        %1152 = vmatprep.subr.bf16.mxu0 %v1061
        %1153 = vmatpush1.bf16.msra.mxu0 %v1058
        %1154 = vmatprep.subr.bf16.mxu0 0
        %1155 = vmatpush1.bf16.msra.mxu0 0
        %1156 = vmatprep.subr.bf16.mxu0 0
        %1157 = vmatpush1.bf16.msra.mxu0 0
        %1158 = vmatprep.subr.bf16.mxu0 0
        %1159 = vmatpush1.bf16.msra.mxu0 0
        %1160 = vmatprep.subr.bf16.mxu0 0
        %1161 = vmatpush1.bf16.msra.mxu0 0
        %1162 = vmatprep.subr.bf16.mxu0 0
        %1163 = vmatpush1.bf16.msra.mxu0 0
        %1164 = vmatprep.subr.bf16.mxu0 0
        %1165 = vmatpush1.bf16.msra.mxu0 0
        %1166 = vmatprep.subr.bf16.mxu0 0
        %1167 = vmatpush1.bf16.msra.mxu0 0
        %1168 = vmatprep.subr.bf16.mxu0 0
        %1169 = vmatpush1.bf16.msra.mxu0 0
        %1170 = vmatprep.subr.bf16.mxu0 0
        %1171 = vmatpush1.bf16.msra.mxu0 0
        %1172 = vmatprep.mubr.bf16.mxu0 0
        %1173 = vmatmul.mubr.bf16.gmra.mrb[0].mxu0 %v1048
        %v1174 = vpop.f32.mrb[0].mxu0
        %v1175 = vadd.f32 0.0, %v1174
        %v1176 = vpop.f32.mrb[0].mxu0
        %v1177 = vadd.f32 0.0, %v1176
        %v1178 = vpop.f32.mrb[0].mxu0
        %v1179 = vpop.f32.mrb[0].mxu0
        %1180 = vdwg.mxu0
        %1181 = vmatprep.subr.bf16.mxu0 %v843
        %1182 = vmatpush1.bf16.msra.mxu0 %v842
        %1183 = vmatprep.subr.bf16.mxu0 %v859
        %1184 = vmatpush1.bf16.msra.mxu0 %v858
        %1185 = vmatprep.subr.bf16.mxu0 %v875
        %1186 = vmatpush1.bf16.msra.mxu0 %v874
        %1187 = vmatprep.subr.bf16.mxu0 %v891
        %1188 = vmatpush1.bf16.msra.mxu0 %v890
        %1189 = vmatprep.subr.bf16.mxu0 %v907
        %1190 = vmatpush1.bf16.msra.mxu0 %v906
        %1191 = vmatprep.subr.bf16.mxu0 %v923
        %1192 = vmatpush1.bf16.msra.mxu0 %v922
        %1193 = vmatprep.subr.bf16.mxu0 %v1067
        %1194 = vmatpush1.bf16.msra.mxu0 %v1064
        %1195 = vmatprep.subr.bf16.mxu0 0
        %1196 = vmatpush1.bf16.msra.mxu0 0
        %1197 = vmatprep.subr.bf16.mxu0 0
        %1198 = vmatpush1.bf16.msra.mxu0 0
        %1199 = vmatprep.subr.bf16.mxu0 0
        %1200 = vmatpush1.bf16.msra.mxu0 0
        %1201 = vmatprep.subr.bf16.mxu0 0
        %1202 = vmatpush1.bf16.msra.mxu0 0
        %1203 = vmatprep.subr.bf16.mxu0 0
        %1204 = vmatpush1.bf16.msra.mxu0 0
        %1205 = vmatprep.subr.bf16.mxu0 0
        %1206 = vmatpush1.bf16.msra.mxu0 0
        %1207 = vmatprep.subr.bf16.mxu0 0
        %1208 = vmatpush1.bf16.msra.mxu0 0
        %1209 = vmatprep.subr.bf16.mxu0 0
        %1210 = vmatpush1.bf16.msra.mxu0 0
        %1211 = vmatprep.subr.bf16.mxu0 0
        %1212 = vmatpush1.bf16.msra.mxu0 0
        %1213 = vmatprep.mubr.bf16.mxu0 0
        %1214 = vmatmul.mubr.bf16.gmra.mrb[0].mxu0 %v1048
        %v1215 = vpop.f32.mrb[0].mxu0
        %v1216 = vadd.f32 0.0, %v1215
        %v1217 = vpop.f32.mrb[0].mxu0
        %v1218 = vadd.f32 0.0, %v1217
        %v1219 = vpop.f32.mrb[0].mxu0
        %v1220 = vpop.f32.mrb[0].mxu0
        %1221 = vdwg.mxu0
        %1222 = vmatprep.subr.bf16.mxu0 %v845
        %1223 = vmatpush1.bf16.msra.mxu0 %v844
        %1224 = vmatprep.subr.bf16.mxu0 %v861
        %1225 = vmatpush1.bf16.msra.mxu0 %v860
        %1226 = vmatprep.subr.bf16.mxu0 %v877
        %1227 = vmatpush1.bf16.msra.mxu0 %v876
        %1228 = vmatprep.subr.bf16.mxu0 %v893
        %1229 = vmatpush1.bf16.msra.mxu0 %v892
        %1230 = vmatprep.subr.bf16.mxu0 %v909
        %1231 = vmatpush1.bf16.msra.mxu0 %v908
        %1232 = vmatprep.subr.bf16.mxu0 %v925
        %1233 = vmatpush1.bf16.msra.mxu0 %v924
        %1234 = vmatprep.subr.bf16.mxu0 %v1073
        %1235 = vmatpush1.bf16.msra.mxu0 %v1070
        %1236 = vmatprep.subr.bf16.mxu0 0
        %1237 = vmatpush1.bf16.msra.mxu0 0
        %1238 = vmatprep.subr.bf16.mxu0 0
        %1239 = vmatpush1.bf16.msra.mxu0 0
        %1240 = vmatprep.subr.bf16.mxu0 0
        %1241 = vmatpush1.bf16.msra.mxu0 0
        %1242 = vmatprep.subr.bf16.mxu0 0
        %1243 = vmatpush1.bf16.msra.mxu0 0
        %1244 = vmatprep.subr.bf16.mxu0 0
        %1245 = vmatpush1.bf16.msra.mxu0 0
        %1246 = vmatprep.subr.bf16.mxu0 0
        %1247 = vmatpush1.bf16.msra.mxu0 0
        %1248 = vmatprep.subr.bf16.mxu0 0
        %1249 = vmatpush1.bf16.msra.mxu0 0
        %1250 = vmatprep.subr.bf16.mxu0 0
        %1251 = vmatpush1.bf16.msra.mxu0 0
        %1252 = vmatprep.subr.bf16.mxu0 0
        %1253 = vmatpush1.bf16.msra.mxu0 0
        %1254 = vmatprep.mubr.bf16.mxu0 0
        %1255 = vmatmul.mubr.bf16.gmra.mrb[0].mxu0 %v1048
        %v1256 = vpop.f32.mrb[0].mxu0
        %v1257 = vadd.f32 0.0, %v1256
        %v1258 = vpop.f32.mrb[0].mxu0
        %v1259 = vadd.f32 0.0, %v1258
        %v1260 = vpop.f32.mrb[0].mxu0
        %v1261 = vpop.f32.mrb[0].mxu0
        %1262 = vdwg.mxu0
        %1263 = vmatprep.subr.bf16.mxu0 %v847
        %1264 = vmatpush1.bf16.msra.mxu0 %v846
        %1265 = vmatprep.subr.bf16.mxu0 %v863
        %1266 = vmatpush1.bf16.msra.mxu0 %v862
        %1267 = vmatprep.subr.bf16.mxu0 %v879
        %1268 = vmatpush1.bf16.msra.mxu0 %v878
        %1269 = vmatprep.subr.bf16.mxu0 %v895
        %1270 = vmatpush1.bf16.msra.mxu0 %v894
        %1271 = vmatprep.subr.bf16.mxu0 %v911
        %1272 = vmatpush1.bf16.msra.mxu0 %v910
        %1273 = vmatprep.subr.bf16.mxu0 %v927
        %1274 = vmatpush1.bf16.msra.mxu0 %v926
        %1275 = vmatprep.subr.bf16.mxu0 %v1079
        %1276 = vmatpush1.bf16.msra.mxu0 %v1076
        %1277 = vmatprep.subr.bf16.mxu0 0
        %1278 = vmatpush1.bf16.msra.mxu0 0
        %1279 = vmatprep.subr.bf16.mxu0 0
        %1280 = vmatpush1.bf16.msra.mxu0 0
        %1281 = vmatprep.subr.bf16.mxu0 0
        %1282 = vmatpush1.bf16.msra.mxu0 0
        %1283 = vmatprep.subr.bf16.mxu0 0
        %1284 = vmatpush1.bf16.msra.mxu0 0
        %1285 = vmatprep.subr.bf16.mxu0 0
        %1286 = vmatpush1.bf16.msra.mxu0 0
        %1287 = vmatprep.subr.bf16.mxu0 0
        %1288 = vmatpush1.bf16.msra.mxu0 0
        %1289 = vmatprep.subr.bf16.mxu0 0
        %1290 = vmatpush1.bf16.msra.mxu0 0
        %1291 = vmatprep.subr.bf16.mxu0 0
        %1292 = vmatpush1.bf16.msra.mxu0 0
        %1293 = vmatprep.subr.bf16.mxu0 0
        %1294 = vmatpush1.bf16.msra.mxu0 0
        %1295 = vmatprep.mubr.bf16.mxu0 0
        %1296 = vmatmul.mubr.bf16.gmra.mrb[0].mxu0 %v1048
        %v1297 = vpop.f32.mrb[0].mxu0
        %v1298 = vadd.f32 0.0, %v1297
        %v1299 = vpop.f32.mrb[0].mxu0
        %v1300 = vadd.f32 0.0, %v1299
        %v1301 = vpop.f32.mrb[0].mxu0
        %v1302 = vpop.f32.mrb[0].mxu0
        %1303 = vdwg.mxu0
        %1304 = vmatprep.subr.bf16.mxu0 %v849
        %1305 = vmatpush1.bf16.msra.mxu0 %v848
        %1306 = vmatprep.subr.bf16.mxu0 %v865
        %1307 = vmatpush1.bf16.msra.mxu0 %v864
        %1308 = vmatprep.subr.bf16.mxu0 %v881
        %1309 = vmatpush1.bf16.msra.mxu0 %v880
        %1310 = vmatprep.subr.bf16.mxu0 %v897
        %1311 = vmatpush1.bf16.msra.mxu0 %v896
        %1312 = vmatprep.subr.bf16.mxu0 %v913
        %1313 = vmatpush1.bf16.msra.mxu0 %v912
        %1314 = vmatprep.subr.bf16.mxu0 %v929
        %1315 = vmatpush1.bf16.msra.mxu0 %v928
        %1316 = vmatprep.subr.bf16.mxu0 %v1085
        %1317 = vmatpush1.bf16.msra.mxu0 %v1082
        %1318 = vmatprep.subr.bf16.mxu0 0
        %1319 = vmatpush1.bf16.msra.mxu0 0
        %1320 = vmatprep.subr.bf16.mxu0 0
        %1321 = vmatpush1.bf16.msra.mxu0 0
        %1322 = vmatprep.subr.bf16.mxu0 0
        %1323 = vmatpush1.bf16.msra.mxu0 0
        %1324 = vmatprep.subr.bf16.mxu0 0
        %1325 = vmatpush1.bf16.msra.mxu0 0
        %1326 = vmatprep.subr.bf16.mxu0 0
        %1327 = vmatpush1.bf16.msra.mxu0 0
        %1328 = vmatprep.subr.bf16.mxu0 0
        %1329 = vmatpush1.bf16.msra.mxu0 0
        %1330 = vmatprep.subr.bf16.mxu0 0
        %1331 = vmatpush1.bf16.msra.mxu0 0
        %1332 = vmatprep.subr.bf16.mxu0 0
        %1333 = vmatpush1.bf16.msra.mxu0 0
        %1334 = vmatprep.subr.bf16.mxu0 0
        %1335 = vmatpush1.bf16.msra.mxu0 0
        %1336 = vmatprep.mubr.bf16.mxu0 0
        %1337 = vmatmul.mubr.bf16.gmra.mrb[0].mxu0 %v1048
        %v1338 = vpop.f32.mrb[0].mxu0
        %v1339 = vadd.f32 0.0, %v1338
        %v1340 = vpop.f32.mrb[0].mxu0
        %v1341 = vadd.f32 0.0, %v1340
        %v1342 = vpop.f32.mrb[0].mxu0
        %v1343 = vpop.f32.mrb[0].mxu0
        %1344 = vdwg.mxu0
        %1345 = vmatprep.subr.bf16.mxu0 %v851
        %1346 = vmatpush1.bf16.msra.mxu0 %v850
        %1347 = vmatprep.subr.bf16.mxu0 %v867
        %1348 = vmatpush1.bf16.msra.mxu0 %v866
        %1349 = vmatprep.subr.bf16.mxu0 %v883
        %1350 = vmatpush1.bf16.msra.mxu0 %v882
        %1351 = vmatprep.subr.bf16.mxu0 %v899
        %1352 = vmatpush1.bf16.msra.mxu0 %v898
        %1353 = vmatprep.subr.bf16.mxu0 %v915
        %1354 = vmatpush1.bf16.msra.mxu0 %v914
        %1355 = vmatprep.subr.bf16.mxu0 %v931
        %1356 = vmatpush1.bf16.msra.mxu0 %v930
        %1357 = vmatprep.subr.bf16.mxu0 %v1091
        %1358 = vmatpush1.bf16.msra.mxu0 %v1088
        %1359 = vmatprep.subr.bf16.mxu0 0
        %1360 = vmatpush1.bf16.msra.mxu0 0
        %1361 = vmatprep.subr.bf16.mxu0 0
        %1362 = vmatpush1.bf16.msra.mxu0 0
        %1363 = vmatprep.subr.bf16.mxu0 0
        %1364 = vmatpush1.bf16.msra.mxu0 0
        %1365 = vmatprep.subr.bf16.mxu0 0
        %1366 = vmatpush1.bf16.msra.mxu0 0
        %1367 = vmatprep.subr.bf16.mxu0 0
        %1368 = vmatpush1.bf16.msra.mxu0 0
        %1369 = vmatprep.subr.bf16.mxu0 0
        %1370 = vmatpush1.bf16.msra.mxu0 0
        %1371 = vmatprep.subr.bf16.mxu0 0
        %1372 = vmatpush1.bf16.msra.mxu0 0
        %1373 = vmatprep.subr.bf16.mxu0 0
        %1374 = vmatpush1.bf16.msra.mxu0 0
        %1375 = vmatprep.subr.bf16.mxu0 0
        %1376 = vmatpush1.bf16.msra.mxu0 0
        %1377 = vmatprep.mubr.bf16.mxu0 0
        %1378 = vmatmul.mubr.bf16.gmra.mrb[0].mxu0 %v1048
        %v1379 = vpop.f32.mrb[0].mxu0
        %v1380 = vadd.f32 0.0, %v1379
        %v1381 = vpop.f32.mrb[0].mxu0
        %v1382 = vadd.f32 0.0, %v1381
        %v1383 = vpop.f32.mrb[0].mxu0
        %v1384 = vpop.f32.mrb[0].mxu0
        %1385 = vdwg.mxu0
        %1386 = vmatprep.subr.bf16.mxu0 %v853
        %1387 = vmatpush1.bf16.msra.mxu0 %v852
        %1388 = vmatprep.subr.bf16.mxu0 %v869
        %1389 = vmatpush1.bf16.msra.mxu0 %v868
        %1390 = vmatprep.subr.bf16.mxu0 %v885
        %1391 = vmatpush1.bf16.msra.mxu0 %v884
        %1392 = vmatprep.subr.bf16.mxu0 %v901
        %1393 = vmatpush1.bf16.msra.mxu0 %v900
        %1394 = vmatprep.subr.bf16.mxu0 %v917
        %1395 = vmatpush1.bf16.msra.mxu0 %v916
        %1396 = vmatprep.subr.bf16.mxu0 %v933
        %1397 = vmatpush1.bf16.msra.mxu0 %v932
        %1398 = vmatprep.subr.bf16.mxu0 %v1097
        %1399 = vmatpush1.bf16.msra.mxu0 %v1094
        %1400 = vmatprep.subr.bf16.mxu0 0
        %1401 = vmatpush1.bf16.msra.mxu0 0
        %1402 = vmatprep.subr.bf16.mxu0 0
        %1403 = vmatpush1.bf16.msra.mxu0 0
        %1404 = vmatprep.subr.bf16.mxu0 0
        %1405 = vmatpush1.bf16.msra.mxu0 0
        %1406 = vmatprep.subr.bf16.mxu0 0
        %1407 = vmatpush1.bf16.msra.mxu0 0
        %1408 = vmatprep.subr.bf16.mxu0 0
        %1409 = vmatpush1.bf16.msra.mxu0 0
        %1410 = vmatprep.subr.bf16.mxu0 0
        %1411 = vmatpush1.bf16.msra.mxu0 0
        %1412 = vmatprep.subr.bf16.mxu0 0
        %1413 = vmatpush1.bf16.msra.mxu0 0
        %1414 = vmatprep.subr.bf16.mxu0 0
        %1415 = vmatpush1.bf16.msra.mxu0 0
        %1416 = vmatprep.subr.bf16.mxu0 0
        %1417 = vmatpush1.bf16.msra.mxu0 0
        %1418 = vmatprep.mubr.bf16.mxu0 0
        %1419 = vmatmul.mubr.bf16.gmra.mrb[0].mxu0 %v1048
        %v1420 = vpop.f32.mrb[0].mxu0
        %v1421 = vadd.f32 0.0, %v1420
        %v1422 = vpop.f32.mrb[0].mxu0
        %v1423 = vadd.f32 0.0, %v1422
        %v1424 = vpop.f32.mrb[0].mxu0
        %v1425 = vpop.f32.mrb[0].mxu0
        %1426 = vdwg.mxu0
        %1427 = vst [vmem:[%s386] sm:$0xff] %v1134
        %1428 = vst [vmem:[%s386 + $0x8] sm:$0xff] %v1136
        %1429 = vst [vmem:[%s386 + $0x10] sm:$0xff] %v1175
        %1430 = vst [vmem:[%s386 + $0x18] sm:$0xff] %v1177
        %1431 = vst [vmem:[%s386 + $0x20] sm:$0xff] %v1216
        %1432 = vst [vmem:[%s386 + $0x28] sm:$0xff] %v1218
        %1433 = vst [vmem:[%s386 + $0x30] sm:$0xff] %v1257
        %1434 = vst [vmem:[%s386 + $0x38] sm:$0xff] %v1259
        %1435 = vst [vmem:[%s386 + $0x40] sm:$0xff] %v1298
        %1436 = vst [vmem:[%s386 + $0x48] sm:$0xff] %v1300
        %1437 = vst [vmem:[%s386 + $0x50] sm:$0xff] %v1339
        %1438 = vst [vmem:[%s386 + $0x58] sm:$0xff] %v1341
        %1439 = vst [vmem:[%s386 + $0x60] sm:$0xff] %v1380
        %1440 = vst [vmem:[%s386 + $0x68] sm:$0xff] %v1382
        %1441 = vst [vmem:[%s386 + $0x70] sm:$0xff] %v1421
        %1442 = vst [vmem:[%s386 + $0x78] sm:$0xff] %v1423
        %s1443 = smul.u32 16, %s13
        %p1444 = scmp.lt.s32.totalorder %s1443, 31
        %s1445 = scalar_select %p1444, %s1443, 31
        %s1446 = smul.addr %s1445, 8
        %s1447 = scalar_lea.vmem %s2, %s1446
        // Predicated region
        $region52: #{a_call__.4} parent=46 // pred_check
          %p1448 = pneg %p78
        $region53: #{a_call__.4} parent=46 // pred_check_branch
          %1450 = sbr.rel (%p1448) target = $region55
        $region54: #{a_call__.4} parent=46 // pred_region
          %s1451 = smul.u32 16, %s13
        $region55: #{a_call__.4} parent=46 // pred_fallthru
          _
      $region47: #{a_call__.4} parent=5 // pred_fallthru
        _
      %p1452 = scmp.le.s32.totalorder 2, %s8
      // Predicated region
      $region56: #{a_call__.4} parent=5 // pred_check
        %p1453 = pneg %p1452
      $region57: #{a_call__.4} parent=5 // pred_check_branch
        %1455 = sbr.rel (%p1453) target = $region59
      $region58: #{a_call__.4} parent=5 // pred_region
        %s1456 = ssub.s32 %s8, 2
        // Predicated region
        $region60: #{a_call__.4} parent=58 // pred_check
          %p1457 = pneg %p84
        $region61: #{a_call__.4} parent=58 // pred_check_branch
          %1459 = sbr.rel (%p1457) target = $region63
        $region62: #{a_call__.4} parent=58 // pred_region
          %s1460 = smul.u32 16, %s14
          %p1461 = scmp.lt.s32.totalorder %s1460, 31
          %s1462 = scalar_select %p1461, %s1460, 31
          %s1463 = smul.addr %s1462, 8
          %s1464 = scalar_lea.vmem %s2, %s1463
        $region63: #{a_call__.4} parent=58 // pred_fallthru
          _
      $region59: #{a_call__.4} parent=5 // pred_fallthru
        _
    $region6: #{a_call__.4} parent=1 // loop_footer
      %s12 = sadd.s32 1, %s8
    $region7: #{a_call__.4} parent=1 // loop_footer_branch
      %7 = sbr.rel target = $region3
    $region8: #{a_call__.4} parent=1 // loop_exit
      _

// kernel: a_call__.5
$region0: #{a_call__.5}
  #allocation0 [shape = 'u32[]', space=smem, size = 0x4, offset = 0x4, fixed_abs, tag = 'smem constant byte address 0x4 - core index']
  #allocation1 [shape = 'u32[144,128]{1,0:T(1,128)}', space=vmem, size = 0x12000, scoped, tag = 'internal scratch']
  %s0 = inlined_call_operand.vmem [shape: f32[16,2048], index: 0, kind: input, shape index: {}]
  %s1 = inlined_call_operand.vmem [shape: f32[16,2048], index: 1, kind: output, shape index: {}]
  %s2 = sld [smem:[#allocation0]]
  $region37: #{a_call__.5} parent=0
    _
  %s4 = ssub.s32 1, %s2
  %s5 = scalar_select 0, %s4, %s2
  loop: start=0, step=1, limit=4
  $region2: #{a_call__.5} parent=0 // loop_pre_header
    _
  $region3: #{a_call__.5} parent=0 // loop_header
    %s7 = sphi 0, %s11
    %p8 = scmp.ge.s32.totalorder %s7, 4
    %s17 = sphi 0, %s19
    %s20 = sphi 0, %s17
    %s21 = sphi 0, %s20
    %s37 = sphi 0, %s21
    %s43 = sphi 0, %s45
    %s46 = sphi 0, %s43
    %s47 = sphi 0, %s46
    %s63 = sphi 0, %s47
  $region4: #{a_call__.5} parent=0 // loop_header_branch
    %10 = sbr.rel (%p8) target = $region8
  $region5: #{a_call__.5} parent=0 // loop_body
    %s12 = ssub.s32 %s7, 1
    %s13 = ssub.s32 %s7, 2
    %s14 = sadd.s32 %s7, 1
    %s15 = ssub.s32 %s7, %s14
    %p16 = scmp.eq.s32.totalorder %s15, 0
    %s18 = sadd.s32 %s17, 1
    %s19 = scalar_select %p16, %s17, %s18
    %p22 = pneg %p16
    %p23 = scmp.eq.s32.totalorder %s7, 1
    %p24 = por %p22, %p23
    %p25 = scmp.ne.s32.totalorder %s17, %s20
    %p26 = scmp.eq.s32.totalorder %s7, 0
    %p27 = por %p25, %p26
    %p28 = scmp.ne.s32.totalorder %s17, %s20
    %p29 = scmp.eq.s32.totalorder %s12, 1
    %p30 = por %p28, %p29
    %p31 = scmp.ne.s32.totalorder %s20, %s21
    %p32 = scmp.eq.s32.totalorder %s12, 0
    %p33 = por %p31, %p32
    %p34 = scmp.ne.s32.totalorder %s20, %s21
    %p35 = scmp.eq.s32.totalorder %s13, 1
    %p36 = por %p34, %p35
    %p38 = scmp.ne.s32.totalorder %s21, %s37
    %p39 = scmp.eq.s32.totalorder %s13, 0
    %p40 = por %p38, %p39
    %s41 = ssub.s32 %s7, %s14
    %p42 = scmp.eq.s32.totalorder %s41, 0
    %s44 = sadd.s32 %s43, 1
    %s45 = scalar_select %p42, %s43, %s44
    %p48 = pneg %p42
    %p49 = scmp.eq.s32.totalorder %s7, 1
    %p50 = por %p48, %p49
    %p51 = scmp.ne.s32.totalorder %s43, %s46
    %p52 = scmp.eq.s32.totalorder %s7, 0
    %p53 = por %p51, %p52
    %p54 = scmp.ne.s32.totalorder %s43, %s46
    %p55 = scmp.eq.s32.totalorder %s12, 1
    %p56 = por %p54, %p55
    %p57 = scmp.ne.s32.totalorder %s46, %s47
    %p58 = scmp.eq.s32.totalorder %s12, 0
    %p59 = por %p57, %p58
    %p60 = scmp.ne.s32.totalorder %s46, %s47
    %p61 = scmp.eq.s32.totalorder %s13, 1
    %p62 = por %p60, %p61
    %p64 = scmp.ne.s32.totalorder %s47, %s63
    %p65 = scmp.eq.s32.totalorder %s13, 0
    %p66 = por %p64, %p65
    %p67 = scmp.le.s32.totalorder 1, %s7
    %p68 = scmp.lt.s32.totalorder %s7, 3
    %p69 = pnand %p67, %p68
    %p70 = pneg %p69
    // Predicated region
    $region9: #{a_call__.5} parent=5 // pred_check
      _
    $region10: #{a_call__.5} parent=5 // pred_check_branch
      %72 = sbr.rel (%p69) target = $region12
    $region11: #{a_call__.5} parent=5 // pred_region
      %s73 = ssub.s32 %s7, 1
    $region12: #{a_call__.5} parent=5 // pred_fallthru
      _
    %p74 = scmp.lt.s32.totalorder %s7, 2
    // Predicated region
    $region13: #{a_call__.5} parent=5 // pred_check
      %p75 = pneg %p74
    $region14: #{a_call__.5} parent=5 // pred_check_branch
      %77 = sbr.rel (%p75) target = $region16
    $region15: #{a_call__.5} parent=5 // pred_region
      // Predicated region
      $region17: #{a_call__.5} parent=15 // pred_check
        %p78 = pneg %p27
      $region18: #{a_call__.5} parent=15 // pred_check_branch
        %80 = sbr.rel (%p78) target = $region20
      $region19: #{a_call__.5} parent=15 // pred_region
        %p81 = scmp.lt.s32.totalorder %s7, 1
        %s82 = scalar_select %p81, %s7, 1
        %s83 = smul.addr %s82, 16
        %s84 = smul.addr %s83, 8
        %s85 = scalar_lea.vmem %s0, %s84
      $region20: #{a_call__.5} parent=15 // pred_fallthru
        _
    $region16: #{a_call__.5} parent=5 // pred_fallthru
      _
    %p86 = scmp.le.s32.totalorder 1, %s7
    %p87 = scmp.lt.s32.totalorder %s7, 3
    %p88 = pnand %p86, %p87
    %p89 = pneg %p88
    // Predicated region
    $region21: #{a_call__.5} parent=5 // pred_check
      _
    $region22: #{a_call__.5} parent=5 // pred_check_branch
      %91 = sbr.rel (%p88) target = $region24
    $region23: #{a_call__.5} parent=5 // pred_region
      %s92 = ssub.s32 %s7, 1
      %p93 = scmp.lt.s32.totalorder %s12, 1
      %s94 = scalar_select %p93, %s12, 1
      %s95 = smul.addr %s94, 16
      %s96 = smul.addr %s95, 8
      %s97 = scalar_lea.vmem %s0, %s96
      %p98 = pneg %p33
      %p99 = pneg %p30
      %p100 = pneg %p59
      %p101 = pneg %p56
      %p102 = scmp.lt.s32.totalorder %s12, 1
      %s103 = scalar_select %p102, %s12, 1
      %s104 = smul.addr %s103, 16
      %s105 = smul.addr %s104, 8
      %s106 = scalar_lea.vmem %s1, %s105
      %p107 = scmp.lt.s32.totalorder %s12, 1
      %s108 = scalar_select %p107, %s12, 1
      %s109 = smul.addr %s108, 16
      %s110 = smul.addr %s109, 8
      %s111 = scalar_lea.vmem %s0, %s110
      %p112 = scmp.lt.s32.totalorder %s12, 1
      %s113 = scalar_select %p112, %s12, 1
      %s114 = smul.addr %s113, 16
      %s115 = smul.addr %s114, 8
      %s116 = scalar_lea.vmem %s1, %s115
      %v117 = vld [vmem:[%s111] sm:$0xff]
      %v118 = vld [vmem:[%s111 + $0x8] sm:$0xff]
      %v119 = vld [vmem:[%s111 + $0x10] sm:$0xff]
      %v120 = vld [vmem:[%s111 + $0x18] sm:$0xff]
      %v121 = vld [vmem:[%s111 + $0x20] sm:$0xff]
      %v122 = vld [vmem:[%s111 + $0x28] sm:$0xff]
      %v123 = vld [vmem:[%s111 + $0x30] sm:$0xff]
      %v124 = vld [vmem:[%s111 + $0x38] sm:$0xff]
      %v125 = vld [vmem:[%s111 + $0x40] sm:$0xff]
      %v126 = vld [vmem:[%s111 + $0x48] sm:$0xff]
      %v127 = vld [vmem:[%s111 + $0x50] sm:$0xff]
      %v128 = vld [vmem:[%s111 + $0x58] sm:$0xff]
      %v129 = vld [vmem:[%s111 + $0x60] sm:$0xff]
      %v130 = vld [vmem:[%s111 + $0x68] sm:$0xff]
      %v131 = vld [vmem:[%s111 + $0x70] sm:$0xff]
      %v132 = vld [vmem:[%s111 + $0x78] sm:$0xff]
      %v133 = vadd.f32 %v117, %v118
      %v134 = vadd.f32 %v133, %v119
      %v135 = vadd.f32 %v134, %v120
      %v136 = vadd.f32 %v135, %v121
      %v137 = vadd.f32 %v136, %v122
      %v138 = vadd.f32 %v137, %v123
      %v139 = vadd.f32 %v138, %v124
      %v140 = vadd.f32 %v139, %v125
      %v141 = vadd.f32 %v140, %v126
      %v142 = vadd.f32 %v141, %v127
      %v143 = vadd.f32 %v142, %v128
      %v144 = vadd.f32 %v143, %v129
      %v145 = vadd.f32 %v144, %v130
      %v146 = vadd.f32 %v145, %v131
      %v147 = vadd.f32 %v146, %v132
      %148 = vadd.xlane.f32.xlu0 %v147
      %v149 = vpop.xlane.xlu0 %148
      %v150 = vrcp.pop 2048.0
      %v151 = vmul.f32 %v149, %v150
      %v152 = vsub.f32 %v117, %v151
      %v153 = vsub.f32 %v118, %v151
      %v154 = vsub.f32 %v119, %v151
      %v155 = vsub.f32 %v120, %v151
      %v156 = vsub.f32 %v121, %v151
      %v157 = vsub.f32 %v122, %v151
      %v158 = vsub.f32 %v123, %v151
      %v159 = vsub.f32 %v124, %v151
      %v160 = vsub.f32 %v125, %v151
      %v161 = vsub.f32 %v126, %v151
      %v162 = vsub.f32 %v127, %v151
      %v163 = vsub.f32 %v128, %v151
      %v164 = vsub.f32 %v129, %v151
      %v165 = vsub.f32 %v130, %v151
      %v166 = vsub.f32 %v131, %v151
      %v167 = vsub.f32 %v132, %v151
      %v168 = vmul.f32 %v152, %v152
      %v169 = vmul.f32 %v153, %v153
      %v170 = vmul.f32 %v154, %v154
      %v171 = vmul.f32 %v155, %v155
      %v172 = vmul.f32 %v156, %v156
      %v173 = vmul.f32 %v157, %v157
      %v174 = vmul.f32 %v158, %v158
      %v175 = vmul.f32 %v159, %v159
      %v176 = vmul.f32 %v160, %v160
      %v177 = vmul.f32 %v161, %v161
      %v178 = vmul.f32 %v162, %v162
      %v179 = vmul.f32 %v163, %v163
      %v180 = vmul.f32 %v164, %v164
      %v181 = vmul.f32 %v165, %v165
      %v182 = vmul.f32 %v166, %v166
      %v183 = vmul.f32 %v167, %v167
      %v184 = vadd.f32 %v168, %v169
      %v185 = vadd.f32 %v184, %v170
      %v186 = vadd.f32 %v185, %v171
      %v187 = vadd.f32 %v186, %v172
      %v188 = vadd.f32 %v187, %v173
      %v189 = vadd.f32 %v188, %v174
      %v190 = vadd.f32 %v189, %v175
      %v191 = vadd.f32 %v190, %v176
      %v192 = vadd.f32 %v191, %v177
      %v193 = vadd.f32 %v192, %v178
      %v194 = vadd.f32 %v193, %v179
      %v195 = vadd.f32 %v194, %v180
      %v196 = vadd.f32 %v195, %v181
      %v197 = vadd.f32 %v196, %v182
      %v198 = vadd.f32 %v197, %v183
      %199 = vadd.xlane.f32.xlu0 %v198
      %v200 = vpop.xlane.xlu0 %199
      %v201 = vmul.f32 %v200, %v150
      %v202 = vadd.f32 %v201, 1e-05
      %v203 = vrsqrt.pop %v202
      %v204 = vmul.f32 %v152, %v203
      %v205 = vmul.f32 %v153, %v203
      %v206 = vmul.f32 %v154, %v203
      %v207 = vmul.f32 %v155, %v203
      %v208 = vmul.f32 %v156, %v203
      %v209 = vmul.f32 %v157, %v203
      %v210 = vmul.f32 %v158, %v203
      %v211 = vmul.f32 %v159, %v203
      %v212 = vmul.f32 %v160, %v203
      %v213 = vmul.f32 %v161, %v203
      %v214 = vmul.f32 %v162, %v203
      %v215 = vmul.f32 %v163, %v203
      %v216 = vmul.f32 %v164, %v203
      %v217 = vmul.f32 %v165, %v203
      %v218 = vmul.f32 %v166, %v203
      %v219 = vmul.f32 %v167, %v203
      %vm220 = vcmp.ge.f32.partialorder %v204, 0.0
      %vm221 = vcmp.ge.f32.partialorder %v205, 0.0
      %vm222 = vcmp.ge.f32.partialorder %v206, 0.0
      %vm223 = vcmp.ge.f32.partialorder %v207, 0.0
      %vm224 = vcmp.ge.f32.partialorder %v208, 0.0
      %vm225 = vcmp.ge.f32.partialorder %v209, 0.0
      %vm226 = vcmp.ge.f32.partialorder %v210, 0.0
      %vm227 = vcmp.ge.f32.partialorder %v211, 0.0
      %vm228 = vcmp.ge.f32.partialorder %v212, 0.0
      %vm229 = vcmp.ge.f32.partialorder %v213, 0.0
      %vm230 = vcmp.ge.f32.partialorder %v214, 0.0
      %vm231 = vcmp.ge.f32.partialorder %v215, 0.0
      %vm232 = vcmp.ge.f32.partialorder %v216, 0.0
      %vm233 = vcmp.ge.f32.partialorder %v217, 0.0
      %vm234 = vcmp.ge.f32.partialorder %v218, 0.0
      %vm235 = vcmp.ge.f32.partialorder %v219, 0.0
      %v236 = vmul.f32 %v204, 0.2
      %v237 = vmul.f32 %v205, 0.2
      %v238 = vmul.f32 %v206, 0.2
      %v239 = vmul.f32 %v207, 0.2
      %v240 = vmul.f32 %v208, 0.2
      %v241 = vmul.f32 %v209, 0.2
      %v242 = vmul.f32 %v210, 0.2
      %v243 = vmul.f32 %v211, 0.2
      %v244 = vmul.f32 %v212, 0.2
      %v245 = vmul.f32 %v213, 0.2
      %v246 = vmul.f32 %v214, 0.2
      %v247 = vmul.f32 %v215, 0.2
      %v248 = vmul.f32 %v216, 0.2
      %v249 = vmul.f32 %v217, 0.2
      %v250 = vmul.f32 %v218, 0.2
      %v251 = vmul.f32 %v219, 0.2
      %v252 = vsel %vm220, %v204, %v236
      %v253 = vsel %vm221, %v205, %v237
      %v254 = vsel %vm222, %v206, %v238
      %v255 = vsel %vm223, %v207, %v239
      %v256 = vsel %vm224, %v208, %v240
      %v257 = vsel %vm225, %v209, %v241
      %v258 = vsel %vm226, %v210, %v242
      %v259 = vsel %vm227, %v211, %v243
      %v260 = vsel %vm228, %v212, %v244
      %v261 = vsel %vm229, %v213, %v245
      %v262 = vsel %vm230, %v214, %v246
      %v263 = vsel %vm231, %v215, %v247
      %v264 = vsel %vm232, %v216, %v248
      %v265 = vsel %vm233, %v217, %v249
      %v266 = vsel %vm234, %v218, %v250
      %v267 = vsel %vm235, %v219, %v251
      %268 = vst [vmem:[%s116] sm:$0xff] %v252
      %269 = vst [vmem:[%s116 + $0x8] sm:$0xff] %v253
      %270 = vst [vmem:[%s116 + $0x10] sm:$0xff] %v254
      %271 = vst [vmem:[%s116 + $0x18] sm:$0xff] %v255
      %272 = vst [vmem:[%s116 + $0x20] sm:$0xff] %v256
      %273 = vst [vmem:[%s116 + $0x28] sm:$0xff] %v257
      %274 = vst [vmem:[%s116 + $0x30] sm:$0xff] %v258
      %275 = vst [vmem:[%s116 + $0x38] sm:$0xff] %v259
      %276 = vst [vmem:[%s116 + $0x40] sm:$0xff] %v260
      %277 = vst [vmem:[%s116 + $0x48] sm:$0xff] %v261
      %278 = vst [vmem:[%s116 + $0x50] sm:$0xff] %v262
      %279 = vst [vmem:[%s116 + $0x58] sm:$0xff] %v263
      %280 = vst [vmem:[%s116 + $0x60] sm:$0xff] %v264
      %281 = vst [vmem:[%s116 + $0x68] sm:$0xff] %v265
      %282 = vst [vmem:[%s116 + $0x70] sm:$0xff] %v266
      %283 = vst [vmem:[%s116 + $0x78] sm:$0xff] %v267
      %p284 = scmp.lt.s32.totalorder %s12, 1
      %s285 = scalar_select %p284, %s12, 1
      %s286 = smul.addr %s285, 16
      %s287 = smul.addr %s286, 8
      %s288 = scalar_lea.vmem %s1, %s287
      // Predicated region
      $region25: #{a_call__.5} parent=23 // pred_check
        %p289 = pneg %p56
      $region26: #{a_call__.5} parent=23 // pred_check_branch
        %291 = sbr.rel (%p289) target = $region28
      $region27: #{a_call__.5} parent=23 // pred_region
        _
      $region28: #{a_call__.5} parent=23 // pred_fallthru
        _
    $region24: #{a_call__.5} parent=5 // pred_fallthru
      _
    %p292 = scmp.le.s32.totalorder 2, %s7
    // Predicated region
    $region29: #{a_call__.5} parent=5 // pred_check
      %p293 = pneg %p292
    $region30: #{a_call__.5} parent=5 // pred_check_branch
      %295 = sbr.rel (%p293) target = $region32
    $region31: #{a_call__.5} parent=5 // pred_region
      %s296 = ssub.s32 %s7, 2
      // Predicated region
      $region33: #{a_call__.5} parent=31 // pred_check
        %p297 = pneg %p62
      $region34: #{a_call__.5} parent=31 // pred_check_branch
        %299 = sbr.rel (%p297) target = $region36
      $region35: #{a_call__.5} parent=31 // pred_region
        %p300 = scmp.lt.s32.totalorder %s13, 1
        %s301 = scalar_select %p300, %s13, 1
        %s302 = smul.addr %s301, 16
        %s303 = smul.addr %s302, 8
        %s304 = scalar_lea.vmem %s1, %s303
      $region36: #{a_call__.5} parent=31 // pred_fallthru
        _
    $region32: #{a_call__.5} parent=5 // pred_fallthru
      _
  $region6: #{a_call__.5} parent=0 // loop_footer
    %s11 = sadd.s32 1, %s7
  $region7: #{a_call__.5} parent=0 // loop_footer_branch
    %6 = sbr.rel target = $region3
  $region8: #{a_call__.5} parent=0 // loop_exit
    _

// kernel: a_call__.6
$region0: #{a_call__.6}
  #allocation0 [shape = 'u32[]', space=smem, size = 0x4, offset = 0x4, fixed_abs, tag = 'smem constant byte address 0x4 - core index']
  #allocation1 [shape = 'u32[144,128]{1,0:T(1,128)}', space=vmem, size = 0x12000, scoped, tag = 'internal scratch']
  %s0 = inlined_call_operand.vmem [shape: bf16[8,216], index: 0, kind: input, shape index: {}]
  %s1 = inlined_call_operand.vmem [shape: bf16[216,4096], index: 1, kind: input, shape index: {}]
  %s2 = inlined_call_operand.vmem [shape: f32[8,4096], index: 2, kind: output, shape index: {}]
  %s3 = sld [smem:[#allocation0]]
  $region64: #{a_call__.6} parent=0
    _
  %s5 = ssub.s32 1, %s3
  %s6 = scalar_select 0, %s5, %s3
  $region1: #{a_call__.6} parent=0
    #allocation2 [shape = 'u8[1769472]{0}', space=vmem, size = 0x1b0000, scoped, tag = 'input window, operand 1']
    loop: start=0, step=1, limit=4
    $region2: #{a_call__.6} parent=1 // loop_pre_header
      _
    $region3: #{a_call__.6} parent=1 // loop_header
      %s8 = sphi 0, %s12
      %p9 = scmp.ge.s32.totalorder %s8, 4
      %s16 = sphi 0, %s16
      %s18 = sphi 0, %s16
      %s19 = sphi 0, %s18
      %s33 = sphi 0, %s19
      %s39 = sphi 0, %s41
      %s42 = sphi 0, %s39
      %s43 = sphi 0, %s42
      %s59 = sphi 0, %s43
      %s65 = sphi 0, %s67
      %s68 = sphi 0, %s65
      %s69 = sphi 0, %s68
      %s85 = sphi 0, %s69
    $region4: #{a_call__.6} parent=1 // loop_header_branch
      %11 = sbr.rel (%p9) target = $region8
    $region5: #{a_call__.6} parent=1 // loop_body
      %s13 = ssub.s32 %s8, 1
      %s14 = ssub.s32 %s8, 2
      %s15 = sadd.s32 %s8, 1
      %s17 = sadd.s32 %s16, 1
      %p20 = scmp.eq.s32.totalorder %s8, 1
      %p21 = scmp.ne.s32.totalorder %s16, %s18
      %p22 = scmp.eq.s32.totalorder %s8, 0
      %p23 = por %p21, %p22
      %p24 = scmp.ne.s32.totalorder %s16, %s18
      %p25 = scmp.eq.s32.totalorder %s13, 1
      %p26 = por %p24, %p25
      %p27 = scmp.ne.s32.totalorder %s18, %s19
      %p28 = scmp.eq.s32.totalorder %s13, 0
      %p29 = por %p27, %p28
      %p30 = scmp.ne.s32.totalorder %s18, %s19
      %p31 = scmp.eq.s32.totalorder %s14, 1
      %p32 = por %p30, %p31
      %p34 = scmp.ne.s32.totalorder %s19, %s33
      %p35 = scmp.eq.s32.totalorder %s14, 0
      %p36 = por %p34, %p35
      %s37 = ssub.s32 %s8, %s15
      %p38 = scmp.eq.s32.totalorder %s37, 0
      %s40 = sadd.s32 %s39, 1
      %s41 = scalar_select %p38, %s39, %s40
      %p44 = pneg %p38
      %p45 = scmp.eq.s32.totalorder %s8, 1
      %p46 = por %p44, %p45
      %p47 = scmp.ne.s32.totalorder %s39, %s42
      %p48 = scmp.eq.s32.totalorder %s8, 0
      %p49 = por %p47, %p48
      %p50 = scmp.ne.s32.totalorder %s39, %s42
      %p51 = scmp.eq.s32.totalorder %s13, 1
      %p52 = por %p50, %p51
      %p53 = scmp.ne.s32.totalorder %s42, %s43
      %p54 = scmp.eq.s32.totalorder %s13, 0
      %p55 = por %p53, %p54
      %p56 = scmp.ne.s32.totalorder %s42, %s43
      %p57 = scmp.eq.s32.totalorder %s14, 1
      %p58 = por %p56, %p57
      %p60 = scmp.ne.s32.totalorder %s43, %s59
      %p61 = scmp.eq.s32.totalorder %s14, 0
      %p62 = por %p60, %p61
      %s63 = ssub.s32 %s8, %s15
      %p64 = scmp.eq.s32.totalorder %s63, 0
      %s66 = sadd.s32 %s65, 1
      %s67 = scalar_select %p64, %s65, %s66
      %p70 = pneg %p64
      %p71 = scmp.eq.s32.totalorder %s8, 1
      %p72 = por %p70, %p71
      %p73 = scmp.ne.s32.totalorder %s65, %s68
      %p74 = scmp.eq.s32.totalorder %s8, 0
      %p75 = por %p73, %p74
      %p76 = scmp.ne.s32.totalorder %s65, %s68
      %p77 = scmp.eq.s32.totalorder %s13, 1
      %p78 = por %p76, %p77
      %p79 = scmp.ne.s32.totalorder %s68, %s69
      %p80 = scmp.eq.s32.totalorder %s13, 0
      %p81 = por %p79, %p80
      %p82 = scmp.ne.s32.totalorder %s68, %s69
      %p83 = scmp.eq.s32.totalorder %s14, 1
      %p84 = por %p82, %p83
      %p86 = scmp.ne.s32.totalorder %s69, %s85
      %p87 = scmp.eq.s32.totalorder %s14, 0
      %p88 = por %p86, %p87
      %p89 = scmp.le.s32.totalorder 1, %s8
      %p90 = scmp.lt.s32.totalorder %s8, 3
      %p91 = pnand %p89, %p90
      %p92 = pneg %p91
      // Predicated region
      $region9: #{a_call__.6} parent=5 // pred_check
        _
      $region10: #{a_call__.6} parent=5 // pred_check_branch
        %94 = sbr.rel (%p91) target = $region12
      $region11: #{a_call__.6} parent=5 // pred_region
        %s95 = ssub.s32 %s8, 1
        // Predicated region
        $region13: #{a_call__.6} parent=11 // pred_check
          %p96 = pneg %p29
        $region14: #{a_call__.6} parent=11 // pred_check_branch
          %98 = sbr.rel (%p96) target = $region16
        $region15: #{a_call__.6} parent=11 // pred_region
          _
        $region16: #{a_call__.6} parent=11 // pred_fallthru
          _
      $region12: #{a_call__.6} parent=5 // pred_fallthru
        _
      %p99 = scmp.lt.s32.totalorder %s8, 2
      // Predicated region
      $region17: #{a_call__.6} parent=5 // pred_check
        %p100 = pneg %p99
      $region18: #{a_call__.6} parent=5 // pred_check_branch
        %102 = sbr.rel (%p100) target = $region20
      $region19: #{a_call__.6} parent=5 // pred_region
        // Predicated region
        $region21: #{a_call__.6} parent=19 // pred_check
          %p103 = pneg %p49
        $region22: #{a_call__.6} parent=19 // pred_check_branch
          %105 = sbr.rel (%p103) target = $region24
        $region23: #{a_call__.6} parent=19 // pred_region
          %s106 = sand.u32 %s39, 1
          %s107 = sand.u32 %s39, 1
          %s108 = smul.addr %s107, 1728
          %s109 = scalar_lea.vmem [#allocation2], %s108
          %s110 = smul.u32 16, %s8
          %s111 = smul.addr %s110, 4
          %s112 = scalar_lea.vmem %s1, %s111
          // Predicated region
          $region25: #{a_call__.6} parent=23 // pred_check
            _
          $region26: #{a_call__.6} parent=23 // pred_check_branch
            %114 = sbr.rel (0) target = $region28
          $region27: #{a_call__.6} parent=23 // pred_region
            // Predicated region
            $region29: #{a_call__.6} parent=27 // pred_check
              _
            $region30: #{a_call__.6} parent=27 // pred_check_branch
              %116 = sbr.rel (0) target = $region32
            $region31: #{a_call__.6} parent=27 // pred_region
              loop: start=0, step=1, limit=1
              $region33: #{a_call__.6} parent=31 // loop_pre_header
                _
              $region34: #{a_call__.6} parent=31 // loop_header
                %s118 = sphi 0, %s122
                %p119 = scmp.ge.s32.totalorder %s118, 1
                %s123 = sphi %s112, %s112
                %s124 = sphi %s109, %s109
              $region35: #{a_call__.6} parent=31 // loop_header_branch
                %121 = sbr.rel (%p119) target = $region39
              $region36: #{a_call__.6} parent=31 // loop_body
                %v125 = vld [vmem:[%s123] sm:$0xff]
                %126 = vst [vmem:[%s124] sm:$0xff] %v125
                %v127 = vld [vmem:[%s123 + $0x8] sm:$0xff]
                %128 = vst [vmem:[%s124 + $0x8] sm:$0xff] %v127
                %v129 = vld [vmem:[%s123 + $0x10] sm:$0xff]
                %130 = vst [vmem:[%s124 + $0x10] sm:$0xff] %v129
                %v131 = vld [vmem:[%s123 + $0x18] sm:$0xff]
                %132 = vst [vmem:[%s124 + $0x18] sm:$0xff] %v131
                %v133 = vld [vmem:[%s123 + $0x20] sm:$0xff]
                %134 = vst [vmem:[%s124 + $0x20] sm:$0xff] %v133
                %v135 = vld [vmem:[%s123 + $0x28] sm:$0xff]
                %136 = vst [vmem:[%s124 + $0x28] sm:$0xff] %v135
                %v137 = vld [vmem:[%s123 + $0x30] sm:$0xff]
                %138 = vst [vmem:[%s124 + $0x30] sm:$0xff] %v137
                %v139 = vld [vmem:[%s123 + $0x38] sm:$0xff]
                %140 = vst [vmem:[%s124 + $0x38] sm:$0xff] %v139
                %v141 = vld [vmem:[%s123 + $0x80] sm:$0xff]
                %142 = vst [vmem:[%s124 + $0x40] sm:$0xff] %v141
                %v143 = vld [vmem:[%s123 + $0x88] sm:$0xff]
                %144 = vst [vmem:[%s124 + $0x48] sm:$0xff] %v143
                %v145 = vld [vmem:[%s123 + $0x90] sm:$0xff]
                %146 = vst [vmem:[%s124 + $0x50] sm:$0xff] %v145
                %v147 = vld [vmem:[%s123 + $0x98] sm:$0xff]
                %148 = vst [vmem:[%s124 + $0x58] sm:$0xff] %v147
                %v149 = vld [vmem:[%s123 + $0xa0] sm:$0xff]
                %150 = vst [vmem:[%s124 + $0x60] sm:$0xff] %v149
                %v151 = vld [vmem:[%s123 + $0xa8] sm:$0xff]
                %152 = vst [vmem:[%s124 + $0x68] sm:$0xff] %v151
                %v153 = vld [vmem:[%s123 + $0xb0] sm:$0xff]
                %154 = vst [vmem:[%s124 + $0x70] sm:$0xff] %v153
                %v155 = vld [vmem:[%s123 + $0xb8] sm:$0xff]
                %156 = vst [vmem:[%s124 + $0x78] sm:$0xff] %v155
                %v157 = vld [vmem:[%s123 + $0x100] sm:$0xff]
                %158 = vst [vmem:[%s124 + $0x80] sm:$0xff] %v157
                %v159 = vld [vmem:[%s123 + $0x108] sm:$0xff]
                %160 = vst [vmem:[%s124 + $0x88] sm:$0xff] %v159
                %v161 = vld [vmem:[%s123 + $0x110] sm:$0xff]
                %162 = vst [vmem:[%s124 + $0x90] sm:$0xff] %v161
                %v163 = vld [vmem:[%s123 + $0x118] sm:$0xff]
                %164 = vst [vmem:[%s124 + $0x98] sm:$0xff] %v163
                %v165 = vld [vmem:[%s123 + $0x120] sm:$0xff]
                %166 = vst [vmem:[%s124 + $0xa0] sm:$0xff] %v165
                %v167 = vld [vmem:[%s123 + $0x128] sm:$0xff]
                %168 = vst [vmem:[%s124 + $0xa8] sm:$0xff] %v167
                %v169 = vld [vmem:[%s123 + $0x130] sm:$0xff]
                %170 = vst [vmem:[%s124 + $0xb0] sm:$0xff] %v169
                %v171 = vld [vmem:[%s123 + $0x138] sm:$0xff]
                %172 = vst [vmem:[%s124 + $0xb8] sm:$0xff] %v171
                %v173 = vld [vmem:[%s123 + $0x180] sm:$0xff]
                %174 = vst [vmem:[%s124 + $0xc0] sm:$0xff] %v173
                %v175 = vld [vmem:[%s123 + $0x188] sm:$0xff]
                %176 = vst [vmem:[%s124 + $0xc8] sm:$0xff] %v175
                %v177 = vld [vmem:[%s123 + $0x190] sm:$0xff]
                %178 = vst [vmem:[%s124 + $0xd0] sm:$0xff] %v177
                %v179 = vld [vmem:[%s123 + $0x198] sm:$0xff]
                %180 = vst [vmem:[%s124 + $0xd8] sm:$0xff] %v179
                %v181 = vld [vmem:[%s123 + $0x1a0] sm:$0xff]
                %182 = vst [vmem:[%s124 + $0xe0] sm:$0xff] %v181
                %v183 = vld [vmem:[%s123 + $0x1a8] sm:$0xff]
                %184 = vst [vmem:[%s124 + $0xe8] sm:$0xff] %v183
                %v185 = vld [vmem:[%s123 + $0x1b0] sm:$0xff]
                %186 = vst [vmem:[%s124 + $0xf0] sm:$0xff] %v185
                %v187 = vld [vmem:[%s123 + $0x1b8] sm:$0xff]
                %188 = vst [vmem:[%s124 + $0xf8] sm:$0xff] %v187
                %v189 = vld [vmem:[%s123 + $0x200] sm:$0xff]
                %190 = vst [vmem:[%s124 + $0x100] sm:$0xff] %v189
                %v191 = vld [vmem:[%s123 + $0x208] sm:$0xff]
                %192 = vst [vmem:[%s124 + $0x108] sm:$0xff] %v191
                %v193 = vld [vmem:[%s123 + $0x210] sm:$0xff]
                %194 = vst [vmem:[%s124 + $0x110] sm:$0xff] %v193
                %v195 = vld [vmem:[%s123 + $0x218] sm:$0xff]
                %196 = vst [vmem:[%s124 + $0x118] sm:$0xff] %v195
                %v197 = vld [vmem:[%s123 + $0x220] sm:$0xff]
                %198 = vst [vmem:[%s124 + $0x120] sm:$0xff] %v197
                %v199 = vld [vmem:[%s123 + $0x228] sm:$0xff]
                %200 = vst [vmem:[%s124 + $0x128] sm:$0xff] %v199
                %v201 = vld [vmem:[%s123 + $0x230] sm:$0xff]
                %202 = vst [vmem:[%s124 + $0x130] sm:$0xff] %v201
                %v203 = vld [vmem:[%s123 + $0x238] sm:$0xff]
                %204 = vst [vmem:[%s124 + $0x138] sm:$0xff] %v203
                %v205 = vld [vmem:[%s123 + $0x280] sm:$0xff]
                %206 = vst [vmem:[%s124 + $0x140] sm:$0xff] %v205
                %v207 = vld [vmem:[%s123 + $0x288] sm:$0xff]
                %208 = vst [vmem:[%s124 + $0x148] sm:$0xff] %v207
                %v209 = vld [vmem:[%s123 + $0x290] sm:$0xff]
                %210 = vst [vmem:[%s124 + $0x150] sm:$0xff] %v209
                %v211 = vld [vmem:[%s123 + $0x298] sm:$0xff]
                %212 = vst [vmem:[%s124 + $0x158] sm:$0xff] %v211
                %v213 = vld [vmem:[%s123 + $0x2a0] sm:$0xff]
                %214 = vst [vmem:[%s124 + $0x160] sm:$0xff] %v213
                %v215 = vld [vmem:[%s123 + $0x2a8] sm:$0xff]
                %216 = vst [vmem:[%s124 + $0x168] sm:$0xff] %v215
                %v217 = vld [vmem:[%s123 + $0x2b0] sm:$0xff]
                %218 = vst [vmem:[%s124 + $0x170] sm:$0xff] %v217
                %v219 = vld [vmem:[%s123 + $0x2b8] sm:$0xff]
                %220 = vst [vmem:[%s124 + $0x178] sm:$0xff] %v219
                %v221 = vld [vmem:[%s123 + $0x300] sm:$0xff]
                %222 = vst [vmem:[%s124 + $0x180] sm:$0xff] %v221
                %v223 = vld [vmem:[%s123 + $0x308] sm:$0xff]
                %224 = vst [vmem:[%s124 + $0x188] sm:$0xff] %v223
                %v225 = vld [vmem:[%s123 + $0x310] sm:$0xff]
                %226 = vst [vmem:[%s124 + $0x190] sm:$0xff] %v225
                %v227 = vld [vmem:[%s123 + $0x318] sm:$0xff]
                %228 = vst [vmem:[%s124 + $0x198] sm:$0xff] %v227
                %v229 = vld [vmem:[%s123 + $0x320] sm:$0xff]
                %230 = vst [vmem:[%s124 + $0x1a0] sm:$0xff] %v229
                %v231 = vld [vmem:[%s123 + $0x328] sm:$0xff]
                %232 = vst [vmem:[%s124 + $0x1a8] sm:$0xff] %v231
                %v233 = vld [vmem:[%s123 + $0x330] sm:$0xff]
                %234 = vst [vmem:[%s124 + $0x1b0] sm:$0xff] %v233
                %v235 = vld [vmem:[%s123 + $0x338] sm:$0xff]
                %236 = vst [vmem:[%s124 + $0x1b8] sm:$0xff] %v235
                %v237 = vld [vmem:[%s123 + $0x380] sm:$0xff]
                %238 = vst [vmem:[%s124 + $0x1c0] sm:$0xff] %v237
                %v239 = vld [vmem:[%s123 + $0x388] sm:$0xff]
                %240 = vst [vmem:[%s124 + $0x1c8] sm:$0xff] %v239
                %v241 = vld [vmem:[%s123 + $0x390] sm:$0xff]
                %242 = vst [vmem:[%s124 + $0x1d0] sm:$0xff] %v241
                %v243 = vld [vmem:[%s123 + $0x398] sm:$0xff]
                %244 = vst [vmem:[%s124 + $0x1d8] sm:$0xff] %v243
                %v245 = vld [vmem:[%s123 + $0x3a0] sm:$0xff]
                %246 = vst [vmem:[%s124 + $0x1e0] sm:$0xff] %v245
                %v247 = vld [vmem:[%s123 + $0x3a8] sm:$0xff]
                %248 = vst [vmem:[%s124 + $0x1e8] sm:$0xff] %v247
                %v249 = vld [vmem:[%s123 + $0x3b0] sm:$0xff]
                %250 = vst [vmem:[%s124 + $0x1f0] sm:$0xff] %v249
                %v251 = vld [vmem:[%s123 + $0x3b8] sm:$0xff]
                %252 = vst [vmem:[%s124 + $0x1f8] sm:$0xff] %v251
                %v253 = vld [vmem:[%s123 + $0x400] sm:$0xff]
                %254 = vst [vmem:[%s124 + $0x200] sm:$0xff] %v253
                %v255 = vld [vmem:[%s123 + $0x408] sm:$0xff]
                %256 = vst [vmem:[%s124 + $0x208] sm:$0xff] %v255
                %v257 = vld [vmem:[%s123 + $0x410] sm:$0xff]
                %258 = vst [vmem:[%s124 + $0x210] sm:$0xff] %v257
                %v259 = vld [vmem:[%s123 + $0x418] sm:$0xff]
                %260 = vst [vmem:[%s124 + $0x218] sm:$0xff] %v259
                %v261 = vld [vmem:[%s123 + $0x420] sm:$0xff]
                %262 = vst [vmem:[%s124 + $0x220] sm:$0xff] %v261
                %v263 = vld [vmem:[%s123 + $0x428] sm:$0xff]
                %264 = vst [vmem:[%s124 + $0x228] sm:$0xff] %v263
                %v265 = vld [vmem:[%s123 + $0x430] sm:$0xff]
                %266 = vst [vmem:[%s124 + $0x230] sm:$0xff] %v265
                %v267 = vld [vmem:[%s123 + $0x438] sm:$0xff]
                %268 = vst [vmem:[%s124 + $0x238] sm:$0xff] %v267
                %v269 = vld [vmem:[%s123 + $0x480] sm:$0xff]
                %270 = vst [vmem:[%s124 + $0x240] sm:$0xff] %v269
                %v271 = vld [vmem:[%s123 + $0x488] sm:$0xff]
                %272 = vst [vmem:[%s124 + $0x248] sm:$0xff] %v271
                %v273 = vld [vmem:[%s123 + $0x490] sm:$0xff]
                %274 = vst [vmem:[%s124 + $0x250] sm:$0xff] %v273
                %v275 = vld [vmem:[%s123 + $0x498] sm:$0xff]
                %276 = vst [vmem:[%s124 + $0x258] sm:$0xff] %v275
                %v277 = vld [vmem:[%s123 + $0x4a0] sm:$0xff]
                %278 = vst [vmem:[%s124 + $0x260] sm:$0xff] %v277
                %v279 = vld [vmem:[%s123 + $0x4a8] sm:$0xff]
                %280 = vst [vmem:[%s124 + $0x268] sm:$0xff] %v279
                %v281 = vld [vmem:[%s123 + $0x4b0] sm:$0xff]
                %282 = vst [vmem:[%s124 + $0x270] sm:$0xff] %v281
                %v283 = vld [vmem:[%s123 + $0x4b8] sm:$0xff]
                %284 = vst [vmem:[%s124 + $0x278] sm:$0xff] %v283
                %v285 = vld [vmem:[%s123 + $0x500] sm:$0xff]
                %286 = vst [vmem:[%s124 + $0x280] sm:$0xff] %v285
                %v287 = vld [vmem:[%s123 + $0x508] sm:$0xff]
                %288 = vst [vmem:[%s124 + $0x288] sm:$0xff] %v287
                %v289 = vld [vmem:[%s123 + $0x510] sm:$0xff]
                %290 = vst [vmem:[%s124 + $0x290] sm:$0xff] %v289
                %v291 = vld [vmem:[%s123 + $0x518] sm:$0xff]
                %292 = vst [vmem:[%s124 + $0x298] sm:$0xff] %v291
                %v293 = vld [vmem:[%s123 + $0x520] sm:$0xff]
                %294 = vst [vmem:[%s124 + $0x2a0] sm:$0xff] %v293
                %v295 = vld [vmem:[%s123 + $0x528] sm:$0xff]
                %296 = vst [vmem:[%s124 + $0x2a8] sm:$0xff] %v295
                %v297 = vld [vmem:[%s123 + $0x530] sm:$0xff]
                %298 = vst [vmem:[%s124 + $0x2b0] sm:$0xff] %v297
                %v299 = vld [vmem:[%s123 + $0x538] sm:$0xff]
                %300 = vst [vmem:[%s124 + $0x2b8] sm:$0xff] %v299
                %v301 = vld [vmem:[%s123 + $0x580] sm:$0xff]
                %302 = vst [vmem:[%s124 + $0x2c0] sm:$0xff] %v301
                %v303 = vld [vmem:[%s123 + $0x588] sm:$0xff]
                %304 = vst [vmem:[%s124 + $0x2c8] sm:$0xff] %v303
                %v305 = vld [vmem:[%s123 + $0x590] sm:$0xff]
                %306 = vst [vmem:[%s124 + $0x2d0] sm:$0xff] %v305
                %v307 = vld [vmem:[%s123 + $0x598] sm:$0xff]
                %308 = vst [vmem:[%s124 + $0x2d8] sm:$0xff] %v307
                %v309 = vld [vmem:[%s123 + $0x5a0] sm:$0xff]
                %310 = vst [vmem:[%s124 + $0x2e0] sm:$0xff] %v309
                %v311 = vld [vmem:[%s123 + $0x5a8] sm:$0xff]
                %312 = vst [vmem:[%s124 + $0x2e8] sm:$0xff] %v311
                %v313 = vld [vmem:[%s123 + $0x5b0] sm:$0xff]
                %314 = vst [vmem:[%s124 + $0x2f0] sm:$0xff] %v313
                %v315 = vld [vmem:[%s123 + $0x5b8] sm:$0xff]
                %316 = vst [vmem:[%s124 + $0x2f8] sm:$0xff] %v315
                %v317 = vld [vmem:[%s123 + $0x600] sm:$0xff]
                %318 = vst [vmem:[%s124 + $0x300] sm:$0xff] %v317
                %v319 = vld [vmem:[%s123 + $0x608] sm:$0xff]
                %320 = vst [vmem:[%s124 + $0x308] sm:$0xff] %v319
                %v321 = vld [vmem:[%s123 + $0x610] sm:$0xff]
                %322 = vst [vmem:[%s124 + $0x310] sm:$0xff] %v321
                %v323 = vld [vmem:[%s123 + $0x618] sm:$0xff]
                %324 = vst [vmem:[%s124 + $0x318] sm:$0xff] %v323
                %v325 = vld [vmem:[%s123 + $0x620] sm:$0xff]
                %326 = vst [vmem:[%s124 + $0x320] sm:$0xff] %v325
                %v327 = vld [vmem:[%s123 + $0x628] sm:$0xff]
                %328 = vst [vmem:[%s124 + $0x328] sm:$0xff] %v327
                %v329 = vld [vmem:[%s123 + $0x630] sm:$0xff]
                %330 = vst [vmem:[%s124 + $0x330] sm:$0xff] %v329
                %v331 = vld [vmem:[%s123 + $0x638] sm:$0xff]
                %332 = vst [vmem:[%s124 + $0x338] sm:$0xff] %v331
                %v333 = vld [vmem:[%s123 + $0x680] sm:$0xff]
                %334 = vst [vmem:[%s124 + $0x340] sm:$0xff] %v333
                %v335 = vld [vmem:[%s123 + $0x688] sm:$0xff]
                %336 = vst [vmem:[%s124 + $0x348] sm:$0xff] %v335
                %v337 = vld [vmem:[%s123 + $0x690] sm:$0xff]
                %338 = vst [vmem:[%s124 + $0x350] sm:$0xff] %v337
                %v339 = vld [vmem:[%s123 + $0x698] sm:$0xff]
                %340 = vst [vmem:[%s124 + $0x358] sm:$0xff] %v339
                %v341 = vld [vmem:[%s123 + $0x6a0] sm:$0xff]
                %342 = vst [vmem:[%s124 + $0x360] sm:$0xff] %v341
                %v343 = vld [vmem:[%s123 + $0x6a8] sm:$0xff]
                %344 = vst [vmem:[%s124 + $0x368] sm:$0xff] %v343
                %v345 = vld [vmem:[%s123 + $0x6b0] sm:$0xff]
                %346 = vst [vmem:[%s124 + $0x370] sm:$0xff] %v345
                %v347 = vld [vmem:[%s123 + $0x6b8] sm:$0xff]
                %348 = vst [vmem:[%s124 + $0x378] sm:$0xff] %v347
                %v349 = vld [vmem:[%s123 + $0x700] sm:$0xff]
                %350 = vst [vmem:[%s124 + $0x380] sm:$0xff] %v349
                %v351 = vld [vmem:[%s123 + $0x708] sm:$0xff]
                %352 = vst [vmem:[%s124 + $0x388] sm:$0xff] %v351
                %v353 = vld [vmem:[%s123 + $0x710] sm:$0xff]
                %354 = vst [vmem:[%s124 + $0x390] sm:$0xff] %v353
                %v355 = vld [vmem:[%s123 + $0x718] sm:$0xff]
                %356 = vst [vmem:[%s124 + $0x398] sm:$0xff] %v355
                %v357 = vld [vmem:[%s123 + $0x720] sm:$0xff]
                %358 = vst [vmem:[%s124 + $0x3a0] sm:$0xff] %v357
                %v359 = vld [vmem:[%s123 + $0x728] sm:$0xff]
                %360 = vst [vmem:[%s124 + $0x3a8] sm:$0xff] %v359
                %v361 = vld [vmem:[%s123 + $0x730] sm:$0xff]
                %362 = vst [vmem:[%s124 + $0x3b0] sm:$0xff] %v361
                %v363 = vld [vmem:[%s123 + $0x738] sm:$0xff]
                %364 = vst [vmem:[%s124 + $0x3b8] sm:$0xff] %v363
                %v365 = vld [vmem:[%s123 + $0x780] sm:$0xff]
                %366 = vst [vmem:[%s124 + $0x3c0] sm:$0xff] %v365
                %v367 = vld [vmem:[%s123 + $0x788] sm:$0xff]
                %368 = vst [vmem:[%s124 + $0x3c8] sm:$0xff] %v367
                %v369 = vld [vmem:[%s123 + $0x790] sm:$0xff]
                %370 = vst [vmem:[%s124 + $0x3d0] sm:$0xff] %v369
                %v371 = vld [vmem:[%s123 + $0x798] sm:$0xff]
                %372 = vst [vmem:[%s124 + $0x3d8] sm:$0xff] %v371
                %v373 = vld [vmem:[%s123 + $0x7a0] sm:$0xff]
                %374 = vst [vmem:[%s124 + $0x3e0] sm:$0xff] %v373
                %v375 = vld [vmem:[%s123 + $0x7a8] sm:$0xff]
                %376 = vst [vmem:[%s124 + $0x3e8] sm:$0xff] %v375
                %v377 = vld [vmem:[%s123 + $0x7b0] sm:$0xff]
                %378 = vst [vmem:[%s124 + $0x3f0] sm:$0xff] %v377
                %v379 = vld [vmem:[%s123 + $0x7b8] sm:$0xff]
                %380 = vst [vmem:[%s124 + $0x3f8] sm:$0xff] %v379
                %v381 = vld [vmem:[%s123 + $0x800] sm:$0xff]
                %382 = vst [vmem:[%s124 + $0x400] sm:$0xff] %v381
                %v383 = vld [vmem:[%s123 + $0x808] sm:$0xff]
                %384 = vst [vmem:[%s124 + $0x408] sm:$0xff] %v383
                %v385 = vld [vmem:[%s123 + $0x810] sm:$0xff]
                %386 = vst [vmem:[%s124 + $0x410] sm:$0xff] %v385
                %v387 = vld [vmem:[%s123 + $0x818] sm:$0xff]
                %388 = vst [vmem:[%s124 + $0x418] sm:$0xff] %v387
                %v389 = vld [vmem:[%s123 + $0x820] sm:$0xff]
                %390 = vst [vmem:[%s124 + $0x420] sm:$0xff] %v389
                %v391 = vld [vmem:[%s123 + $0x828] sm:$0xff]
                %392 = vst [vmem:[%s124 + $0x428] sm:$0xff] %v391
                %v393 = vld [vmem:[%s123 + $0x830] sm:$0xff]
                %394 = vst [vmem:[%s124 + $0x430] sm:$0xff] %v393
                %v395 = vld [vmem:[%s123 + $0x838] sm:$0xff]
                %396 = vst [vmem:[%s124 + $0x438] sm:$0xff] %v395
                %v397 = vld [vmem:[%s123 + $0x880] sm:$0xff]
                %398 = vst [vmem:[%s124 + $0x440] sm:$0xff] %v397
                %v399 = vld [vmem:[%s123 + $0x888] sm:$0xff]
                %400 = vst [vmem:[%s124 + $0x448] sm:$0xff] %v399
                %v401 = vld [vmem:[%s123 + $0x890] sm:$0xff]
                %402 = vst [vmem:[%s124 + $0x450] sm:$0xff] %v401
                %v403 = vld [vmem:[%s123 + $0x898] sm:$0xff]
                %404 = vst [vmem:[%s124 + $0x458] sm:$0xff] %v403
                %v405 = vld [vmem:[%s123 + $0x8a0] sm:$0xff]
                %406 = vst [vmem:[%s124 + $0x460] sm:$0xff] %v405
                %v407 = vld [vmem:[%s123 + $0x8a8] sm:$0xff]
                %408 = vst [vmem:[%s124 + $0x468] sm:$0xff] %v407
                %v409 = vld [vmem:[%s123 + $0x8b0] sm:$0xff]
                %410 = vst [vmem:[%s124 + $0x470] sm:$0xff] %v409
                %v411 = vld [vmem:[%s123 + $0x8b8] sm:$0xff]
                %412 = vst [vmem:[%s124 + $0x478] sm:$0xff] %v411
                %v413 = vld [vmem:[%s123 + $0x900] sm:$0xff]
                %414 = vst [vmem:[%s124 + $0x480] sm:$0xff] %v413
                %v415 = vld [vmem:[%s123 + $0x908] sm:$0xff]
                %416 = vst [vmem:[%s124 + $0x488] sm:$0xff] %v415
                %v417 = vld [vmem:[%s123 + $0x910] sm:$0xff]
                %418 = vst [vmem:[%s124 + $0x490] sm:$0xff] %v417
                %v419 = vld [vmem:[%s123 + $0x918] sm:$0xff]
                %420 = vst [vmem:[%s124 + $0x498] sm:$0xff] %v419
                %v421 = vld [vmem:[%s123 + $0x920] sm:$0xff]
                %422 = vst [vmem:[%s124 + $0x4a0] sm:$0xff] %v421
                %v423 = vld [vmem:[%s123 + $0x928] sm:$0xff]
                %424 = vst [vmem:[%s124 + $0x4a8] sm:$0xff] %v423
                %v425 = vld [vmem:[%s123 + $0x930] sm:$0xff]
                %426 = vst [vmem:[%s124 + $0x4b0] sm:$0xff] %v425
                %v427 = vld [vmem:[%s123 + $0x938] sm:$0xff]
                %428 = vst [vmem:[%s124 + $0x4b8] sm:$0xff] %v427
                %v429 = vld [vmem:[%s123 + $0x980] sm:$0xff]
                %430 = vst [vmem:[%s124 + $0x4c0] sm:$0xff] %v429
                %v431 = vld [vmem:[%s123 + $0x988] sm:$0xff]
                %432 = vst [vmem:[%s124 + $0x4c8] sm:$0xff] %v431
                %v433 = vld [vmem:[%s123 + $0x990] sm:$0xff]
                %434 = vst [vmem:[%s124 + $0x4d0] sm:$0xff] %v433
                %v435 = vld [vmem:[%s123 + $0x998] sm:$0xff]
                %436 = vst [vmem:[%s124 + $0x4d8] sm:$0xff] %v435
                %v437 = vld [vmem:[%s123 + $0x9a0] sm:$0xff]
                %438 = vst [vmem:[%s124 + $0x4e0] sm:$0xff] %v437
                %v439 = vld [vmem:[%s123 + $0x9a8] sm:$0xff]
                %440 = vst [vmem:[%s124 + $0x4e8] sm:$0xff] %v439
                %v441 = vld [vmem:[%s123 + $0x9b0] sm:$0xff]
                %442 = vst [vmem:[%s124 + $0x4f0] sm:$0xff] %v441
                %v443 = vld [vmem:[%s123 + $0x9b8] sm:$0xff]
                %444 = vst [vmem:[%s124 + $0x4f8] sm:$0xff] %v443
                %v445 = vld [vmem:[%s123 + $0xa00] sm:$0xff]
                %446 = vst [vmem:[%s124 + $0x500] sm:$0xff] %v445
                %v447 = vld [vmem:[%s123 + $0xa08] sm:$0xff]
                %448 = vst [vmem:[%s124 + $0x508] sm:$0xff] %v447
                %v449 = vld [vmem:[%s123 + $0xa10] sm:$0xff]
                %450 = vst [vmem:[%s124 + $0x510] sm:$0xff] %v449
                %v451 = vld [vmem:[%s123 + $0xa18] sm:$0xff]
                %452 = vst [vmem:[%s124 + $0x518] sm:$0xff] %v451
                %v453 = vld [vmem:[%s123 + $0xa20] sm:$0xff]
                %454 = vst [vmem:[%s124 + $0x520] sm:$0xff] %v453
                %v455 = vld [vmem:[%s123 + $0xa28] sm:$0xff]
                %456 = vst [vmem:[%s124 + $0x528] sm:$0xff] %v455
                %v457 = vld [vmem:[%s123 + $0xa30] sm:$0xff]
                %458 = vst [vmem:[%s124 + $0x530] sm:$0xff] %v457
                %v459 = vld [vmem:[%s123 + $0xa38] sm:$0xff]
                %460 = vst [vmem:[%s124 + $0x538] sm:$0xff] %v459
                %v461 = vld [vmem:[%s123 + $0xa80] sm:$0xff]
                %462 = vst [vmem:[%s124 + $0x540] sm:$0xff] %v461
                %v463 = vld [vmem:[%s123 + $0xa88] sm:$0xff]
                %464 = vst [vmem:[%s124 + $0x548] sm:$0xff] %v463
                %v465 = vld [vmem:[%s123 + $0xa90] sm:$0xff]
                %466 = vst [vmem:[%s124 + $0x550] sm:$0xff] %v465
                %v467 = vld [vmem:[%s123 + $0xa98] sm:$0xff]
                %468 = vst [vmem:[%s124 + $0x558] sm:$0xff] %v467
                %v469 = vld [vmem:[%s123 + $0xaa0] sm:$0xff]
                %470 = vst [vmem:[%s124 + $0x560] sm:$0xff] %v469
                %v471 = vld [vmem:[%s123 + $0xaa8] sm:$0xff]
                %472 = vst [vmem:[%s124 + $0x568] sm:$0xff] %v471
                %v473 = vld [vmem:[%s123 + $0xab0] sm:$0xff]
                %474 = vst [vmem:[%s124 + $0x570] sm:$0xff] %v473
                %v475 = vld [vmem:[%s123 + $0xab8] sm:$0xff]
                %476 = vst [vmem:[%s124 + $0x578] sm:$0xff] %v475
                %v477 = vld [vmem:[%s123 + $0xb00] sm:$0xff]
                %478 = vst [vmem:[%s124 + $0x580] sm:$0xff] %v477
                %v479 = vld [vmem:[%s123 + $0xb08] sm:$0xff]
                %480 = vst [vmem:[%s124 + $0x588] sm:$0xff] %v479
                %v481 = vld [vmem:[%s123 + $0xb10] sm:$0xff]
                %482 = vst [vmem:[%s124 + $0x590] sm:$0xff] %v481
                %v483 = vld [vmem:[%s123 + $0xb18] sm:$0xff]
                %484 = vst [vmem:[%s124 + $0x598] sm:$0xff] %v483
                %v485 = vld [vmem:[%s123 + $0xb20] sm:$0xff]
                %486 = vst [vmem:[%s124 + $0x5a0] sm:$0xff] %v485
                %v487 = vld [vmem:[%s123 + $0xb28] sm:$0xff]
                %488 = vst [vmem:[%s124 + $0x5a8] sm:$0xff] %v487
                %v489 = vld [vmem:[%s123 + $0xb30] sm:$0xff]
                %490 = vst [vmem:[%s124 + $0x5b0] sm:$0xff] %v489
                %v491 = vld [vmem:[%s123 + $0xb38] sm:$0xff]
                %492 = vst [vmem:[%s124 + $0x5b8] sm:$0xff] %v491
                %v493 = vld [vmem:[%s123 + $0xb80] sm:$0xff]
                %494 = vst [vmem:[%s124 + $0x5c0] sm:$0xff] %v493
                %v495 = vld [vmem:[%s123 + $0xb88] sm:$0xff]
                %496 = vst [vmem:[%s124 + $0x5c8] sm:$0xff] %v495
                %v497 = vld [vmem:[%s123 + $0xb90] sm:$0xff]
                %498 = vst [vmem:[%s124 + $0x5d0] sm:$0xff] %v497
                %v499 = vld [vmem:[%s123 + $0xb98] sm:$0xff]
                %500 = vst [vmem:[%s124 + $0x5d8] sm:$0xff] %v499
                %v501 = vld [vmem:[%s123 + $0xba0] sm:$0xff]
                %502 = vst [vmem:[%s124 + $0x5e0] sm:$0xff] %v501
                %v503 = vld [vmem:[%s123 + $0xba8] sm:$0xff]
                %504 = vst [vmem:[%s124 + $0x5e8] sm:$0xff] %v503
                %v505 = vld [vmem:[%s123 + $0xbb0] sm:$0xff]
                %506 = vst [vmem:[%s124 + $0x5f0] sm:$0xff] %v505
                %v507 = vld [vmem:[%s123 + $0xbb8] sm:$0xff]
                %508 = vst [vmem:[%s124 + $0x5f8] sm:$0xff] %v507
                %v509 = vld [vmem:[%s123 + $0xc00] sm:$0xff]
                %510 = vst [vmem:[%s124 + $0x600] sm:$0xff] %v509
                %v511 = vld [vmem:[%s123 + $0xc08] sm:$0xff]
                %512 = vst [vmem:[%s124 + $0x608] sm:$0xff] %v511
                %v513 = vld [vmem:[%s123 + $0xc10] sm:$0xff]
                %514 = vst [vmem:[%s124 + $0x610] sm:$0xff] %v513
                %v515 = vld [vmem:[%s123 + $0xc18] sm:$0xff]
                %516 = vst [vmem:[%s124 + $0x618] sm:$0xff] %v515
                %v517 = vld [vmem:[%s123 + $0xc20] sm:$0xff]
                %518 = vst [vmem:[%s124 + $0x620] sm:$0xff] %v517
                %v519 = vld [vmem:[%s123 + $0xc28] sm:$0xff]
                %520 = vst [vmem:[%s124 + $0x628] sm:$0xff] %v519
                %v521 = vld [vmem:[%s123 + $0xc30] sm:$0xff]
                %522 = vst [vmem:[%s124 + $0x630] sm:$0xff] %v521
                %v523 = vld [vmem:[%s123 + $0xc38] sm:$0xff]
                %524 = vst [vmem:[%s124 + $0x638] sm:$0xff] %v523
                %v525 = vld [vmem:[%s123 + $0xc80] sm:$0xff]
                %526 = vst [vmem:[%s124 + $0x640] sm:$0xff] %v525
                %v527 = vld [vmem:[%s123 + $0xc88] sm:$0xff]
                %528 = vst [vmem:[%s124 + $0x648] sm:$0xff] %v527
                %v529 = vld [vmem:[%s123 + $0xc90] sm:$0xff]
                %530 = vst [vmem:[%s124 + $0x650] sm:$0xff] %v529
                %v531 = vld [vmem:[%s123 + $0xc98] sm:$0xff]
                %532 = vst [vmem:[%s124 + $0x658] sm:$0xff] %v531
                %v533 = vld [vmem:[%s123 + $0xca0] sm:$0xff]
                %534 = vst [vmem:[%s124 + $0x660] sm:$0xff] %v533
                %v535 = vld [vmem:[%s123 + $0xca8] sm:$0xff]
                %536 = vst [vmem:[%s124 + $0x668] sm:$0xff] %v535
                %v537 = vld [vmem:[%s123 + $0xcb0] sm:$0xff]
                %538 = vst [vmem:[%s124 + $0x670] sm:$0xff] %v537
                %v539 = vld [vmem:[%s123 + $0xcb8] sm:$0xff]
                %540 = vst [vmem:[%s124 + $0x678] sm:$0xff] %v539
                %v541 = vld [vmem:[%s123 + $0xd00] sm:$0xff]
                %542 = vst [vmem:[%s124 + $0x680] sm:$0xff] %v541
                %v543 = vld [vmem:[%s123 + $0xd08] sm:$0xff]
                %544 = vst [vmem:[%s124 + $0x688] sm:$0xff] %v543
                %v545 = vld [vmem:[%s123 + $0xd10] sm:$0xff]
                %546 = vst [vmem:[%s124 + $0x690] sm:$0xff] %v545
                %v547 = vld [vmem:[%s123 + $0xd18] sm:$0xff]
                %548 = vst [vmem:[%s124 + $0x698] sm:$0xff] %v547
                %v549 = vld [vmem:[%s123 + $0xd20] sm:$0xff]
                %550 = vst [vmem:[%s124 + $0x6a0] sm:$0xff] %v549
                %v551 = vld [vmem:[%s123 + $0xd28] sm:$0xff]
                %552 = vst [vmem:[%s124 + $0x6a8] sm:$0xff] %v551
                %v553 = vld [vmem:[%s123 + $0xd30] sm:$0xff]
                %554 = vst [vmem:[%s124 + $0x6b0] sm:$0xff] %v553
                %v555 = vld [vmem:[%s123 + $0xd38] sm:$0xff]
                %556 = vst [vmem:[%s124 + $0x6b8] sm:$0xff] %v555
              $region37: #{a_call__.6} parent=31 // loop_footer
                %s122 = sadd.s32 1, %s118
              $region38: #{a_call__.6} parent=31 // loop_footer_branch
                %117 = sbr.rel target = $region34
              $region39: #{a_call__.6} parent=31 // loop_exit
                _
            $region32: #{a_call__.6} parent=27 // pred_fallthru
              _
            // Predicated region
            $region40: #{a_call__.6} parent=27 // pred_check
              _
            $region41: #{a_call__.6} parent=27 // pred_check_branch
              %558 = sbr.rel target = $region43
            $region42: #{a_call__.6} parent=27 // pred_region
              _
            $region43: #{a_call__.6} parent=27 // pred_fallthru
              _
          $region28: #{a_call__.6} parent=23 // pred_fallthru
            _
          %559 = vnop
        $region24: #{a_call__.6} parent=19 // pred_fallthru
          _
      $region20: #{a_call__.6} parent=5 // pred_fallthru
        _
      %p560 = scmp.le.s32.totalorder 1, %s8
      %p561 = scmp.lt.s32.totalorder %s8, 3
      %p562 = pnand %p560, %p561
      %p563 = pneg %p562
      // Predicated region
      $region44: #{a_call__.6} parent=5 // pred_check
        _
      $region45: #{a_call__.6} parent=5 // pred_check_branch
        %565 = sbr.rel (%p562) target = $region47
      $region46: #{a_call__.6} parent=5 // pred_region
        %s566 = ssub.s32 %s8, 1
        %s567 = sand.u32 %s42, 1
        %s568 = sand.u32 %s42, 1
        %s569 = smul.addr %s568, 1728
        %s570 = scalar_lea.vmem [#allocation2], %s569
        // Predicated region
        $region48: #{a_call__.6} parent=46 // pred_check
          %p571 = pneg %p55
        $region49: #{a_call__.6} parent=46 // pred_check_branch
          %573 = sbr.rel (%p571) target = $region51
        $region50: #{a_call__.6} parent=46 // pred_region
          _
        $region51: #{a_call__.6} parent=46 // pred_fallthru
          _
        %p574 = pneg %p29
        %p575 = pneg %p26
        %s576 = sand.u32 %s42, 1
        %s577 = sand.u32 %s42, 1
        %s578 = smul.addr %s577, 1728
        %s579 = scalar_lea.vmem [#allocation2], %s578
        %p580 = pneg %p55
        %p581 = pneg %p52
        %p582 = pneg %p81
        %p583 = pneg %p78
        %s584 = smul.u32 16, %s13
        %p585 = scmp.lt.s32.totalorder %s584, 31
        %s586 = scalar_select %p585, %s584, 31
        %s587 = smul.addr %s586, 8
        %s588 = scalar_lea.vmem %s2, %s587
        %s589 = smul.u32 16, %s13
        %s590 = smul.u32 16, %s13
        %p591 = scmp.lt.s32.totalorder %s590, 31
        %s592 = scalar_select %p591, %s590, 31
        %s593 = smul.addr %s592, 8
        %s594 = scalar_lea.vmem %s2, %s593
        %s595 = smul.u32 16, %s13
        %v597 = vld [vmem:[%s0] sm:$0xff]
        %v598 = vld [vmem:[%s570] sm:$0xff]
        %v599 = vld [vmem:[%s570 + $0x8] sm:$0xff]
        %v600 = vld [vmem:[%s570 + $0x10] sm:$0xff]
        %v601 = vld [vmem:[%s570 + $0x18] sm:$0xff]
        %v602 = vld [vmem:[%s570 + $0x20] sm:$0xff]
        %v603 = vld [vmem:[%s570 + $0x28] sm:$0xff]
        %v604 = vld [vmem:[%s570 + $0x30] sm:$0xff]
        %v605 = vld [vmem:[%s570 + $0x38] sm:$0xff]
        %v606 = vld [vmem:[%s570 + $0x40] sm:$0xff]
        %v607 = vld [vmem:[%s570 + $0x48] sm:$0xff]
        %v608 = vld [vmem:[%s570 + $0x50] sm:$0xff]
        %v609 = vld [vmem:[%s570 + $0x58] sm:$0xff]
        %v610 = vld [vmem:[%s570 + $0x60] sm:$0xff]
        %v611 = vld [vmem:[%s570 + $0x68] sm:$0xff]
        %v612 = vld [vmem:[%s570 + $0x70] sm:$0xff]
        %v613 = vld [vmem:[%s570 + $0x78] sm:$0xff]
        %v614 = vld [vmem:[%s570 + $0x80] sm:$0xff]
        %v615 = vld [vmem:[%s570 + $0x88] sm:$0xff]
        %v616 = vld [vmem:[%s570 + $0x90] sm:$0xff]
        %v617 = vld [vmem:[%s570 + $0x98] sm:$0xff]
        %v618 = vld [vmem:[%s570 + $0xa0] sm:$0xff]
        %v619 = vld [vmem:[%s570 + $0xa8] sm:$0xff]
        %v620 = vld [vmem:[%s570 + $0xb0] sm:$0xff]
        %v621 = vld [vmem:[%s570 + $0xb8] sm:$0xff]
        %v622 = vld [vmem:[%s570 + $0xc0] sm:$0xff]
        %v623 = vld [vmem:[%s570 + $0xc8] sm:$0xff]
        %v624 = vld [vmem:[%s570 + $0xd0] sm:$0xff]
        %v625 = vld [vmem:[%s570 + $0xd8] sm:$0xff]
        %v626 = vld [vmem:[%s570 + $0xe0] sm:$0xff]
        %v627 = vld [vmem:[%s570 + $0xe8] sm:$0xff]
        %v628 = vld [vmem:[%s570 + $0xf0] sm:$0xff]
        %v629 = vld [vmem:[%s570 + $0xf8] sm:$0xff]
        %v630 = vld [vmem:[%s570 + $0x100] sm:$0xff]
        %v631 = vld [vmem:[%s570 + $0x108] sm:$0xff]
        %v632 = vld [vmem:[%s570 + $0x110] sm:$0xff]
        %v633 = vld [vmem:[%s570 + $0x118] sm:$0xff]
        %v634 = vld [vmem:[%s570 + $0x120] sm:$0xff]
        %v635 = vld [vmem:[%s570 + $0x128] sm:$0xff]
        %v636 = vld [vmem:[%s570 + $0x130] sm:$0xff]
        %v637 = vld [vmem:[%s570 + $0x138] sm:$0xff]
        %v638 = vld [vmem:[%s570 + $0x140] sm:$0xff]
        %v639 = vld [vmem:[%s570 + $0x148] sm:$0xff]
        %v640 = vld [vmem:[%s570 + $0x150] sm:$0xff]
        %v641 = vld [vmem:[%s570 + $0x158] sm:$0xff]
        %v642 = vld [vmem:[%s570 + $0x160] sm:$0xff]
        %v643 = vld [vmem:[%s570 + $0x168] sm:$0xff]
        %v644 = vld [vmem:[%s570 + $0x170] sm:$0xff]
        %v645 = vld [vmem:[%s570 + $0x178] sm:$0xff]
        %v646 = vld [vmem:[%s570 + $0x180] sm:$0xff]
        %v647 = vld [vmem:[%s570 + $0x188] sm:$0xff]
        %v648 = vld [vmem:[%s570 + $0x190] sm:$0xff]
        %v649 = vld [vmem:[%s570 + $0x198] sm:$0xff]
        %v650 = vld [vmem:[%s570 + $0x1a0] sm:$0xff]
        %v651 = vld [vmem:[%s570 + $0x1a8] sm:$0xff]
        %v652 = vld [vmem:[%s570 + $0x1b0] sm:$0xff]
        %v653 = vld [vmem:[%s570 + $0x1b8] sm:$0xff]
        %v654 = vld [vmem:[%s570 + $0x1c0] sm:$0xff]
        %v655 = vld [vmem:[%s570 + $0x1c8] sm:$0xff]
        %v656 = vld [vmem:[%s570 + $0x1d0] sm:$0xff]
        %v657 = vld [vmem:[%s570 + $0x1d8] sm:$0xff]
        %v658 = vld [vmem:[%s570 + $0x1e0] sm:$0xff]
        %v659 = vld [vmem:[%s570 + $0x1e8] sm:$0xff]
        %v660 = vld [vmem:[%s570 + $0x1f0] sm:$0xff]
        %v661 = vld [vmem:[%s570 + $0x1f8] sm:$0xff]
        %v662 = vld [vmem:[%s570 + $0x200] sm:$0xff]
        %v663 = vld [vmem:[%s570 + $0x208] sm:$0xff]
        %v664 = vld [vmem:[%s570 + $0x210] sm:$0xff]
        %v665 = vld [vmem:[%s570 + $0x218] sm:$0xff]
        %v666 = vld [vmem:[%s570 + $0x220] sm:$0xff]
        %v667 = vld [vmem:[%s570 + $0x228] sm:$0xff]
        %v668 = vld [vmem:[%s570 + $0x230] sm:$0xff]
        %v669 = vld [vmem:[%s570 + $0x238] sm:$0xff]
        %v670 = vld [vmem:[%s570 + $0x240] sm:$0xff]
        %v671 = vld [vmem:[%s570 + $0x248] sm:$0xff]
        %v672 = vld [vmem:[%s570 + $0x250] sm:$0xff]
        %v673 = vld [vmem:[%s570 + $0x258] sm:$0xff]
        %v674 = vld [vmem:[%s570 + $0x260] sm:$0xff]
        %v675 = vld [vmem:[%s570 + $0x268] sm:$0xff]
        %v676 = vld [vmem:[%s570 + $0x270] sm:$0xff]
        %v677 = vld [vmem:[%s570 + $0x278] sm:$0xff]
        %v678 = vld [vmem:[%s570 + $0x280] sm:$0xff]
        %v679 = vld [vmem:[%s570 + $0x288] sm:$0xff]
        %v680 = vld [vmem:[%s570 + $0x290] sm:$0xff]
        %v681 = vld [vmem:[%s570 + $0x298] sm:$0xff]
        %v682 = vld [vmem:[%s570 + $0x2a0] sm:$0xff]
        %v683 = vld [vmem:[%s570 + $0x2a8] sm:$0xff]
        %v684 = vld [vmem:[%s570 + $0x2b0] sm:$0xff]
        %v685 = vld [vmem:[%s570 + $0x2b8] sm:$0xff]
        %v686 = vld [vmem:[%s570 + $0x2c0] sm:$0xff]
        %v687 = vld [vmem:[%s570 + $0x2c8] sm:$0xff]
        %v688 = vld [vmem:[%s570 + $0x2d0] sm:$0xff]
        %v689 = vld [vmem:[%s570 + $0x2d8] sm:$0xff]
        %v690 = vld [vmem:[%s570 + $0x2e0] sm:$0xff]
        %v691 = vld [vmem:[%s570 + $0x2e8] sm:$0xff]
        %v692 = vld [vmem:[%s570 + $0x2f0] sm:$0xff]
        %v693 = vld [vmem:[%s570 + $0x2f8] sm:$0xff]
        %v694 = vld [vmem:[%s570 + $0x300] sm:$0xff]
        %v695 = vld [vmem:[%s570 + $0x308] sm:$0xff]
        %v696 = vld [vmem:[%s570 + $0x310] sm:$0xff]
        %v697 = vld [vmem:[%s570 + $0x318] sm:$0xff]
        %v698 = vld [vmem:[%s570 + $0x320] sm:$0xff]
        %v699 = vld [vmem:[%s570 + $0x328] sm:$0xff]
        %v700 = vld [vmem:[%s570 + $0x330] sm:$0xff]
        %v701 = vld [vmem:[%s570 + $0x338] sm:$0xff]
        %v702 = vld [vmem:[%s570 + $0x340] sm:$0xff]
        %v703 = vld [vmem:[%s570 + $0x348] sm:$0xff]
        %v704 = vld [vmem:[%s570 + $0x350] sm:$0xff]
        %v705 = vld [vmem:[%s570 + $0x358] sm:$0xff]
        %v706 = vld [vmem:[%s570 + $0x360] sm:$0xff]
        %v707 = vld [vmem:[%s570 + $0x368] sm:$0xff]
        %v708 = vld [vmem:[%s570 + $0x370] sm:$0xff]
        %v709 = vld [vmem:[%s570 + $0x378] sm:$0xff]
        %v710 = vld [vmem:[%s570 + $0x380] sm:$0xff]
        %v711 = vld [vmem:[%s570 + $0x388] sm:$0xff]
        %v712 = vld [vmem:[%s570 + $0x390] sm:$0xff]
        %v713 = vld [vmem:[%s570 + $0x398] sm:$0xff]
        %v714 = vld [vmem:[%s570 + $0x3a0] sm:$0xff]
        %v715 = vld [vmem:[%s570 + $0x3a8] sm:$0xff]
        %v716 = vld [vmem:[%s570 + $0x3b0] sm:$0xff]
        %v717 = vld [vmem:[%s570 + $0x3b8] sm:$0xff]
        %v718 = vld [vmem:[%s570 + $0x3c0] sm:$0xff]
        %v719 = vld [vmem:[%s570 + $0x3c8] sm:$0xff]
        %v720 = vld [vmem:[%s570 + $0x3d0] sm:$0xff]
        %v721 = vld [vmem:[%s570 + $0x3d8] sm:$0xff]
        %v722 = vld [vmem:[%s570 + $0x3e0] sm:$0xff]
        %v723 = vld [vmem:[%s570 + $0x3e8] sm:$0xff]
        %v724 = vld [vmem:[%s570 + $0x3f0] sm:$0xff]
        %v725 = vld [vmem:[%s570 + $0x3f8] sm:$0xff]
        %v726 = vld [vmem:[%s570 + $0x400] sm:$0xff]
        %v727 = vld [vmem:[%s570 + $0x408] sm:$0xff]
        %v728 = vld [vmem:[%s570 + $0x410] sm:$0xff]
        %v729 = vld [vmem:[%s570 + $0x418] sm:$0xff]
        %v730 = vld [vmem:[%s570 + $0x420] sm:$0xff]
        %v731 = vld [vmem:[%s570 + $0x428] sm:$0xff]
        %v732 = vld [vmem:[%s570 + $0x430] sm:$0xff]
        %v733 = vld [vmem:[%s570 + $0x438] sm:$0xff]
        %v734 = vld [vmem:[%s570 + $0x440] sm:$0xff]
        %v735 = vld [vmem:[%s570 + $0x448] sm:$0xff]
        %v736 = vld [vmem:[%s570 + $0x450] sm:$0xff]
        %v737 = vld [vmem:[%s570 + $0x458] sm:$0xff]
        %v738 = vld [vmem:[%s570 + $0x460] sm:$0xff]
        %v739 = vld [vmem:[%s570 + $0x468] sm:$0xff]
        %v740 = vld [vmem:[%s570 + $0x470] sm:$0xff]
        %v741 = vld [vmem:[%s570 + $0x478] sm:$0xff]
        %v742 = vld [vmem:[%s570 + $0x480] sm:$0xff]
        %v743 = vld [vmem:[%s570 + $0x488] sm:$0xff]
        %v744 = vld [vmem:[%s570 + $0x490] sm:$0xff]
        %v745 = vld [vmem:[%s570 + $0x498] sm:$0xff]
        %v746 = vld [vmem:[%s570 + $0x4a0] sm:$0xff]
        %v747 = vld [vmem:[%s570 + $0x4a8] sm:$0xff]
        %v748 = vld [vmem:[%s570 + $0x4b0] sm:$0xff]
        %v749 = vld [vmem:[%s570 + $0x4b8] sm:$0xff]
        %v750 = vld [vmem:[%s570 + $0x4c0] sm:$0xff]
        %v751 = vld [vmem:[%s570 + $0x4c8] sm:$0xff]
        %v752 = vld [vmem:[%s570 + $0x4d0] sm:$0xff]
        %v753 = vld [vmem:[%s570 + $0x4d8] sm:$0xff]
        %v754 = vld [vmem:[%s570 + $0x4e0] sm:$0xff]
        %v755 = vld [vmem:[%s570 + $0x4e8] sm:$0xff]
        %v756 = vld [vmem:[%s570 + $0x4f0] sm:$0xff]
        %v757 = vld [vmem:[%s570 + $0x4f8] sm:$0xff]
        %v758 = vld [vmem:[%s570 + $0x500] sm:$0xff]
        %v759 = vld [vmem:[%s570 + $0x508] sm:$0xff]
        %v760 = vld [vmem:[%s570 + $0x510] sm:$0xff]
        %v761 = vld [vmem:[%s570 + $0x518] sm:$0xff]
        %v762 = vld [vmem:[%s570 + $0x520] sm:$0xff]
        %v763 = vld [vmem:[%s570 + $0x528] sm:$0xff]
        %v764 = vld [vmem:[%s570 + $0x530] sm:$0xff]
        %v765 = vld [vmem:[%s570 + $0x538] sm:$0xff]
        %v766 = vld [vmem:[%s570 + $0x540] sm:$0xff]
        %v767 = vld [vmem:[%s570 + $0x548] sm:$0xff]
        %v768 = vld [vmem:[%s570 + $0x550] sm:$0xff]
        %v769 = vld [vmem:[%s570 + $0x558] sm:$0xff]
        %v770 = vld [vmem:[%s570 + $0x560] sm:$0xff]
        %v771 = vld [vmem:[%s570 + $0x568] sm:$0xff]
        %v772 = vld [vmem:[%s570 + $0x570] sm:$0xff]
        %v773 = vld [vmem:[%s570 + $0x578] sm:$0xff]
        %v774 = vld [vmem:[%s570 + $0x580] sm:$0xff]
        %v775 = vld [vmem:[%s570 + $0x588] sm:$0xff]
        %v776 = vld [vmem:[%s570 + $0x590] sm:$0xff]
        %v777 = vld [vmem:[%s570 + $0x598] sm:$0xff]
        %v778 = vld [vmem:[%s570 + $0x5a0] sm:$0xff]
        %v779 = vld [vmem:[%s570 + $0x5a8] sm:$0xff]
        %v780 = vld [vmem:[%s570 + $0x5b0] sm:$0xff]
        %v781 = vld [vmem:[%s570 + $0x5b8] sm:$0xff]
        %v782 = vld [vmem:[%s570 + $0x5c0] sm:$0xff]
        %v783 = vld [vmem:[%s570 + $0x5c8] sm:$0xff]
        %v784 = vld [vmem:[%s570 + $0x5d0] sm:$0xff]
        %v785 = vld [vmem:[%s570 + $0x5d8] sm:$0xff]
        %v786 = vld [vmem:[%s570 + $0x5e0] sm:$0xff]
        %v787 = vld [vmem:[%s570 + $0x5e8] sm:$0xff]
        %v788 = vld [vmem:[%s570 + $0x5f0] sm:$0xff]
        %v789 = vld [vmem:[%s570 + $0x5f8] sm:$0xff]
        %v790 = vld [vmem:[%s570 + $0x600] sm:$0xff]
        %v791 = vld [vmem:[%s570 + $0x608] sm:$0xff]
        %v792 = vld [vmem:[%s570 + $0x610] sm:$0xff]
        %v793 = vld [vmem:[%s570 + $0x618] sm:$0xff]
        %v794 = vld [vmem:[%s570 + $0x620] sm:$0xff]
        %v795 = vld [vmem:[%s570 + $0x628] sm:$0xff]
        %v796 = vld [vmem:[%s570 + $0x630] sm:$0xff]
        %v797 = vld [vmem:[%s570 + $0x638] sm:$0xff]
        %v798 = vld [vmem:[%s570 + $0x640] sm:$0xff]
        %v799 = vld [vmem:[%s570 + $0x648] sm:$0xff]
        %v800 = vld [vmem:[%s570 + $0x650] sm:$0xff]
        %v801 = vld [vmem:[%s570 + $0x658] sm:$0xff]
        %v802 = vld [vmem:[%s570 + $0x660] sm:$0xff]
        %v803 = vld [vmem:[%s570 + $0x668] sm:$0xff]
        %v804 = vld [vmem:[%s570 + $0x670] sm:$0xff]
        %v805 = vld [vmem:[%s570 + $0x678] sm:$0xff]
        %v806 = vld [vmem:[%s570 + $0x680] sm:$0xff]
        %v807 = vld [vmem:[%s570 + $0x688] sm:$0xff]
        %v808 = vld [vmem:[%s570 + $0x690] sm:$0xff]
        %v809 = vld [vmem:[%s570 + $0x698] sm:$0xff]
        %v810 = vld [vmem:[%s570 + $0x6a0] sm:$0xff]
        %v811 = vld [vmem:[%s570 + $0x6a8] sm:$0xff]
        %v812 = vld [vmem:[%s570 + $0x6b0] sm:$0xff]
        %v813 = vld [vmem:[%s570 + $0x6b8] sm:$0xff]
        %v815 = vunpack.c.l.b16 %v597
        %v816 = vunpack.c.h.b16 %v597
        %v817 = vpack.c.b16 %v815, %v815
        %v818 = vpack.c.b16 %v816, %v816
        %v1036 = vunpack.c.l.b16 %v598
        %v1037 = vunpack.c.h.b16 %v598
        %v1038 = vunpack.c.l.b16 %v599
        %v1039 = vunpack.c.h.b16 %v599
        %v1040 = vunpack.c.l.b16 %v600
        %v1041 = vunpack.c.h.b16 %v600
        %v1042 = vunpack.c.l.b16 %v601
        %v1043 = vunpack.c.h.b16 %v601
        %v1044 = vunpack.c.l.b16 %v602
        %v1045 = vunpack.c.h.b16 %v602
        %v1046 = vunpack.c.l.b16 %v603
        %v1047 = vunpack.c.h.b16 %v603
        %v1048 = vunpack.c.l.b16 %v604
        %v1049 = vunpack.c.h.b16 %v604
        %v1050 = vunpack.c.l.b16 %v605
        %v1051 = vunpack.c.h.b16 %v605
        %v1052 = vunpack.c.l.b16 %v606
        %v1053 = vunpack.c.h.b16 %v606
        %v1054 = vunpack.c.l.b16 %v607
        %v1055 = vunpack.c.h.b16 %v607
        %v1056 = vunpack.c.l.b16 %v608
        %v1057 = vunpack.c.h.b16 %v608
        %v1058 = vunpack.c.l.b16 %v609
        %v1059 = vunpack.c.h.b16 %v609
        %v1060 = vunpack.c.l.b16 %v610
        %v1061 = vunpack.c.h.b16 %v610
        %v1062 = vunpack.c.l.b16 %v611
        %v1063 = vunpack.c.h.b16 %v611
        %v1064 = vunpack.c.l.b16 %v612
        %v1065 = vunpack.c.h.b16 %v612
        %v1066 = vunpack.c.l.b16 %v613
        %v1067 = vunpack.c.h.b16 %v613
        %v1068 = vunpack.c.l.b16 %v614
        %v1069 = vunpack.c.h.b16 %v614
        %v1070 = vunpack.c.l.b16 %v615
        %v1071 = vunpack.c.h.b16 %v615
        %v1072 = vunpack.c.l.b16 %v616
        %v1073 = vunpack.c.h.b16 %v616
        %v1074 = vunpack.c.l.b16 %v617
        %v1075 = vunpack.c.h.b16 %v617
        %v1076 = vunpack.c.l.b16 %v618
        %v1077 = vunpack.c.h.b16 %v618
        %v1078 = vunpack.c.l.b16 %v619
        %v1079 = vunpack.c.h.b16 %v619
        %v1080 = vunpack.c.l.b16 %v620
        %v1081 = vunpack.c.h.b16 %v620
        %v1082 = vunpack.c.l.b16 %v621
        %v1083 = vunpack.c.h.b16 %v621
        %v1084 = vunpack.c.l.b16 %v622
        %v1085 = vunpack.c.h.b16 %v622
        %v1086 = vunpack.c.l.b16 %v623
        %v1087 = vunpack.c.h.b16 %v623
        %v1088 = vunpack.c.l.b16 %v624
        %v1089 = vunpack.c.h.b16 %v624
        %v1090 = vunpack.c.l.b16 %v625
        %v1091 = vunpack.c.h.b16 %v625
        %v1092 = vunpack.c.l.b16 %v626
        %v1093 = vunpack.c.h.b16 %v626
        %v1094 = vunpack.c.l.b16 %v627
        %v1095 = vunpack.c.h.b16 %v627
        %v1096 = vunpack.c.l.b16 %v628
        %v1097 = vunpack.c.h.b16 %v628
        %v1098 = vunpack.c.l.b16 %v629
        %v1099 = vunpack.c.h.b16 %v629
        %v1100 = vunpack.c.l.b16 %v630
        %v1101 = vunpack.c.h.b16 %v630
        %v1102 = vunpack.c.l.b16 %v631
        %v1103 = vunpack.c.h.b16 %v631
        %v1104 = vunpack.c.l.b16 %v632
        %v1105 = vunpack.c.h.b16 %v632
        %v1106 = vunpack.c.l.b16 %v633
        %v1107 = vunpack.c.h.b16 %v633
        %v1108 = vunpack.c.l.b16 %v634
        %v1109 = vunpack.c.h.b16 %v634
        %v1110 = vunpack.c.l.b16 %v635
        %v1111 = vunpack.c.h.b16 %v635
        %v1112 = vunpack.c.l.b16 %v636
        %v1113 = vunpack.c.h.b16 %v636
        %v1114 = vunpack.c.l.b16 %v637
        %v1115 = vunpack.c.h.b16 %v637
        %v1116 = vunpack.c.l.b16 %v638
        %v1117 = vunpack.c.h.b16 %v638
        %v1118 = vunpack.c.l.b16 %v639
        %v1119 = vunpack.c.h.b16 %v639
        %v1120 = vunpack.c.l.b16 %v640
        %v1121 = vunpack.c.h.b16 %v640
        %v1122 = vunpack.c.l.b16 %v641
        %v1123 = vunpack.c.h.b16 %v641
        %v1124 = vunpack.c.l.b16 %v642
        %v1125 = vunpack.c.h.b16 %v642
        %v1126 = vunpack.c.l.b16 %v643
        %v1127 = vunpack.c.h.b16 %v643
        %v1128 = vunpack.c.l.b16 %v644
        %v1129 = vunpack.c.h.b16 %v644
        %v1130 = vunpack.c.l.b16 %v645
        %v1131 = vunpack.c.h.b16 %v645
        %v1132 = vunpack.c.l.b16 %v646
        %v1133 = vunpack.c.h.b16 %v646
        %v1134 = vunpack.c.l.b16 %v647
        %v1135 = vunpack.c.h.b16 %v647
        %v1136 = vunpack.c.l.b16 %v648
        %v1137 = vunpack.c.h.b16 %v648
        %v1138 = vunpack.c.l.b16 %v649
        %v1139 = vunpack.c.h.b16 %v649
        %v1140 = vunpack.c.l.b16 %v650
        %v1141 = vunpack.c.h.b16 %v650
        %v1142 = vunpack.c.l.b16 %v651
        %v1143 = vunpack.c.h.b16 %v651
        %v1144 = vunpack.c.l.b16 %v652
        %v1145 = vunpack.c.h.b16 %v652
        %v1146 = vunpack.c.l.b16 %v653
        %v1147 = vunpack.c.h.b16 %v653
        %v1148 = vunpack.c.l.b16 %v654
        %v1149 = vunpack.c.h.b16 %v654
        %v1150 = vunpack.c.l.b16 %v655
        %v1151 = vunpack.c.h.b16 %v655
        %v1152 = vunpack.c.l.b16 %v656
        %v1153 = vunpack.c.h.b16 %v656
        %v1154 = vunpack.c.l.b16 %v657
        %v1155 = vunpack.c.h.b16 %v657
        %v1156 = vunpack.c.l.b16 %v658
        %v1157 = vunpack.c.h.b16 %v658
        %v1158 = vunpack.c.l.b16 %v659
        %v1159 = vunpack.c.h.b16 %v659
        %v1160 = vunpack.c.l.b16 %v660
        %v1161 = vunpack.c.h.b16 %v660
        %v1162 = vunpack.c.l.b16 %v661
        %v1163 = vunpack.c.h.b16 %v661
        %v1164 = vunpack.c.l.b16 %v662
        %v1165 = vunpack.c.h.b16 %v662
        %v1166 = vunpack.c.l.b16 %v663
        %v1167 = vunpack.c.h.b16 %v663
        %v1168 = vunpack.c.l.b16 %v664
        %v1169 = vunpack.c.h.b16 %v664
        %v1170 = vunpack.c.l.b16 %v665
        %v1171 = vunpack.c.h.b16 %v665
        %v1172 = vunpack.c.l.b16 %v666
        %v1173 = vunpack.c.h.b16 %v666
        %v1174 = vunpack.c.l.b16 %v667
        %v1175 = vunpack.c.h.b16 %v667
        %v1176 = vunpack.c.l.b16 %v668
        %v1177 = vunpack.c.h.b16 %v668
        %v1178 = vunpack.c.l.b16 %v669
        %v1179 = vunpack.c.h.b16 %v669
        %v1180 = vunpack.c.l.b16 %v670
        %v1181 = vunpack.c.h.b16 %v670
        %v1182 = vunpack.c.l.b16 %v671
        %v1183 = vunpack.c.h.b16 %v671
        %v1184 = vunpack.c.l.b16 %v672
        %v1185 = vunpack.c.h.b16 %v672
        %v1186 = vunpack.c.l.b16 %v673
        %v1187 = vunpack.c.h.b16 %v673
        %v1188 = vunpack.c.l.b16 %v674
        %v1189 = vunpack.c.h.b16 %v674
        %v1190 = vunpack.c.l.b16 %v675
        %v1191 = vunpack.c.h.b16 %v675
        %v1192 = vunpack.c.l.b16 %v676
        %v1193 = vunpack.c.h.b16 %v676
        %v1194 = vunpack.c.l.b16 %v677
        %v1195 = vunpack.c.h.b16 %v677
        %v1196 = vunpack.c.l.b16 %v678
        %v1197 = vunpack.c.h.b16 %v678
        %v1198 = vunpack.c.l.b16 %v679
        %v1199 = vunpack.c.h.b16 %v679
        %v1200 = vunpack.c.l.b16 %v680
        %v1201 = vunpack.c.h.b16 %v680
        %v1202 = vunpack.c.l.b16 %v681
        %v1203 = vunpack.c.h.b16 %v681
        %v1204 = vunpack.c.l.b16 %v682
        %v1205 = vunpack.c.h.b16 %v682
        %v1206 = vunpack.c.l.b16 %v683
        %v1207 = vunpack.c.h.b16 %v683
        %v1208 = vunpack.c.l.b16 %v684
        %v1209 = vunpack.c.h.b16 %v684
        %v1210 = vunpack.c.l.b16 %v685
        %v1211 = vunpack.c.h.b16 %v685
        %v1212 = vunpack.c.l.b16 %v686
        %v1213 = vunpack.c.h.b16 %v686
        %v1214 = vunpack.c.l.b16 %v687
        %v1215 = vunpack.c.h.b16 %v687
        %v1216 = vunpack.c.l.b16 %v688
        %v1217 = vunpack.c.h.b16 %v688
        %v1218 = vunpack.c.l.b16 %v689
        %v1219 = vunpack.c.h.b16 %v689
        %v1220 = vunpack.c.l.b16 %v690
        %v1221 = vunpack.c.h.b16 %v690
        %v1222 = vunpack.c.l.b16 %v691
        %v1223 = vunpack.c.h.b16 %v691
        %v1224 = vunpack.c.l.b16 %v692
        %v1225 = vunpack.c.h.b16 %v692
        %v1226 = vunpack.c.l.b16 %v693
        %v1227 = vunpack.c.h.b16 %v693
        %v1228 = vunpack.c.l.b16 %v694
        %v1229 = vunpack.c.h.b16 %v694
        %v1230 = vunpack.c.l.b16 %v695
        %v1231 = vunpack.c.h.b16 %v695
        %v1232 = vunpack.c.l.b16 %v696
        %v1233 = vunpack.c.h.b16 %v696
        %v1234 = vunpack.c.l.b16 %v697
        %v1235 = vunpack.c.h.b16 %v697
        %v1236 = vunpack.c.l.b16 %v698
        %v1237 = vunpack.c.h.b16 %v698
        %v1238 = vunpack.c.l.b16 %v699
        %v1239 = vunpack.c.h.b16 %v699
        %v1240 = vunpack.c.l.b16 %v700
        %v1241 = vunpack.c.h.b16 %v700
        %v1242 = vunpack.c.l.b16 %v701
        %v1243 = vunpack.c.h.b16 %v701
        %v1244 = vunpack.c.l.b16 %v702
        %v1245 = vunpack.c.h.b16 %v702
        %v1246 = vunpack.c.l.b16 %v703
        %v1247 = vunpack.c.h.b16 %v703
        %v1248 = vunpack.c.l.b16 %v704
        %v1249 = vunpack.c.h.b16 %v704
        %v1250 = vunpack.c.l.b16 %v705
        %v1251 = vunpack.c.h.b16 %v705
        %v1252 = vunpack.c.l.b16 %v706
        %v1253 = vunpack.c.h.b16 %v706
        %v1254 = vunpack.c.l.b16 %v707
        %v1255 = vunpack.c.h.b16 %v707
        %v1256 = vunpack.c.l.b16 %v708
        %v1257 = vunpack.c.h.b16 %v708
        %v1258 = vunpack.c.l.b16 %v709
        %v1259 = vunpack.c.h.b16 %v709
        %v1260 = vunpack.c.l.b16 %v710
        %v1261 = vunpack.c.h.b16 %v710
        %v1262 = vunpack.c.l.b16 %v711
        %v1263 = vunpack.c.h.b16 %v711
        %v1264 = vunpack.c.l.b16 %v712
        %v1265 = vunpack.c.h.b16 %v712
        %v1266 = vunpack.c.l.b16 %v713
        %v1267 = vunpack.c.h.b16 %v713
        %v1268 = vunpack.c.l.b16 %v714
        %v1269 = vunpack.c.h.b16 %v714
        %v1270 = vunpack.c.l.b16 %v715
        %v1271 = vunpack.c.h.b16 %v715
        %v1272 = vunpack.c.l.b16 %v716
        %v1273 = vunpack.c.h.b16 %v716
        %v1274 = vunpack.c.l.b16 %v717
        %v1275 = vunpack.c.h.b16 %v717
        %v1276 = vunpack.c.l.b16 %v718
        %v1277 = vunpack.c.h.b16 %v718
        %v1278 = vunpack.c.l.b16 %v719
        %v1279 = vunpack.c.h.b16 %v719
        %v1280 = vunpack.c.l.b16 %v720
        %v1281 = vunpack.c.h.b16 %v720
        %v1282 = vunpack.c.l.b16 %v721
        %v1283 = vunpack.c.h.b16 %v721
        %v1284 = vunpack.c.l.b16 %v722
        %v1285 = vunpack.c.h.b16 %v722
        %v1286 = vunpack.c.l.b16 %v723
        %v1287 = vunpack.c.h.b16 %v723
        %v1288 = vunpack.c.l.b16 %v724
        %v1289 = vunpack.c.h.b16 %v724
        %v1290 = vunpack.c.l.b16 %v725
        %v1291 = vunpack.c.h.b16 %v725
        %v1292 = vunpack.c.l.b16 %v726
        %v1293 = vunpack.c.h.b16 %v726
        %v1294 = vunpack.c.l.b16 %v727
        %v1295 = vunpack.c.h.b16 %v727
        %v1296 = vunpack.c.l.b16 %v728
        %v1297 = vunpack.c.h.b16 %v728
        %v1298 = vunpack.c.l.b16 %v729
        %v1299 = vunpack.c.h.b16 %v729
        %v1300 = vunpack.c.l.b16 %v730
        %v1301 = vunpack.c.h.b16 %v730
        %v1302 = vunpack.c.l.b16 %v731
        %v1303 = vunpack.c.h.b16 %v731
        %v1304 = vunpack.c.l.b16 %v732
        %v1305 = vunpack.c.h.b16 %v732
        %v1306 = vunpack.c.l.b16 %v733
        %v1307 = vunpack.c.h.b16 %v733
        %v1308 = vunpack.c.l.b16 %v734
        %v1309 = vunpack.c.h.b16 %v734
        %v1310 = vunpack.c.l.b16 %v735
        %v1311 = vunpack.c.h.b16 %v735
        %v1312 = vunpack.c.l.b16 %v736
        %v1313 = vunpack.c.h.b16 %v736
        %v1314 = vunpack.c.l.b16 %v737
        %v1315 = vunpack.c.h.b16 %v737
        %v1316 = vunpack.c.l.b16 %v738
        %v1317 = vunpack.c.h.b16 %v738
        %v1318 = vunpack.c.l.b16 %v739
        %v1319 = vunpack.c.h.b16 %v739
        %v1320 = vunpack.c.l.b16 %v740
        %v1321 = vunpack.c.h.b16 %v740
        %v1322 = vunpack.c.l.b16 %v741
        %v1323 = vunpack.c.h.b16 %v741
        %v1324 = vunpack.c.l.b16 %v742
        %v1325 = vunpack.c.h.b16 %v742
        %v1326 = vunpack.c.l.b16 %v743
        %v1327 = vunpack.c.h.b16 %v743
        %v1328 = vunpack.c.l.b16 %v744
        %v1329 = vunpack.c.h.b16 %v744
        %v1330 = vunpack.c.l.b16 %v745
        %v1331 = vunpack.c.h.b16 %v745
        %v1332 = vunpack.c.l.b16 %v746
        %v1333 = vunpack.c.h.b16 %v746
        %v1334 = vunpack.c.l.b16 %v747
        %v1335 = vunpack.c.h.b16 %v747
        %v1336 = vunpack.c.l.b16 %v748
        %v1337 = vunpack.c.h.b16 %v748
        %v1338 = vunpack.c.l.b16 %v749
        %v1339 = vunpack.c.h.b16 %v749
        %v1340 = vunpack.c.l.b16 %v750
        %v1341 = vunpack.c.h.b16 %v750
        %v1342 = vunpack.c.l.b16 %v751
        %v1343 = vunpack.c.h.b16 %v751
        %v1344 = vunpack.c.l.b16 %v752
        %v1345 = vunpack.c.h.b16 %v752
        %v1346 = vunpack.c.l.b16 %v753
        %v1347 = vunpack.c.h.b16 %v753
        %v1348 = vunpack.c.l.b16 %v754
        %v1349 = vunpack.c.h.b16 %v754
        %v1350 = vunpack.c.l.b16 %v755
        %v1351 = vunpack.c.h.b16 %v755
        %v1352 = vunpack.c.l.b16 %v756
        %v1353 = vunpack.c.h.b16 %v756
        %v1354 = vunpack.c.l.b16 %v757
        %v1355 = vunpack.c.h.b16 %v757
        %v1356 = vunpack.c.l.b16 %v758
        %v1357 = vunpack.c.h.b16 %v758
        %v1358 = vunpack.c.l.b16 %v759
        %v1359 = vunpack.c.h.b16 %v759
        %v1360 = vunpack.c.l.b16 %v760
        %v1361 = vunpack.c.h.b16 %v760
        %v1362 = vunpack.c.l.b16 %v761
        %v1363 = vunpack.c.h.b16 %v761
        %v1364 = vunpack.c.l.b16 %v762
        %v1365 = vunpack.c.h.b16 %v762
        %v1366 = vunpack.c.l.b16 %v763
        %v1367 = vunpack.c.h.b16 %v763
        %v1368 = vunpack.c.l.b16 %v764
        %v1369 = vunpack.c.h.b16 %v764
        %v1370 = vunpack.c.l.b16 %v765
        %v1371 = vunpack.c.h.b16 %v765
        %v1372 = vunpack.c.l.b16 %v766
        %v1373 = vunpack.c.h.b16 %v766
        %v1374 = vunpack.c.l.b16 %v767
        %v1375 = vunpack.c.h.b16 %v767
        %v1376 = vunpack.c.l.b16 %v768
        %v1377 = vunpack.c.h.b16 %v768
        %v1378 = vunpack.c.l.b16 %v769
        %v1379 = vunpack.c.h.b16 %v769
        %v1380 = vunpack.c.l.b16 %v770
        %v1381 = vunpack.c.h.b16 %v770
        %v1382 = vunpack.c.l.b16 %v771
        %v1383 = vunpack.c.h.b16 %v771
        %v1384 = vunpack.c.l.b16 %v772
        %v1385 = vunpack.c.h.b16 %v772
        %v1386 = vunpack.c.l.b16 %v773
        %v1387 = vunpack.c.h.b16 %v773
        %v1388 = vunpack.c.l.b16 %v774
        %v1389 = vunpack.c.h.b16 %v774
        %v1390 = vunpack.c.l.b16 %v775
        %v1391 = vunpack.c.h.b16 %v775
        %v1392 = vunpack.c.l.b16 %v776
        %v1393 = vunpack.c.h.b16 %v776
        %v1394 = vunpack.c.l.b16 %v777
        %v1395 = vunpack.c.h.b16 %v777
        %v1396 = vunpack.c.l.b16 %v778
        %v1397 = vunpack.c.h.b16 %v778
        %v1398 = vunpack.c.l.b16 %v779
        %v1399 = vunpack.c.h.b16 %v779
        %v1400 = vunpack.c.l.b16 %v780
        %v1401 = vunpack.c.h.b16 %v780
        %v1402 = vunpack.c.l.b16 %v781
        %v1403 = vunpack.c.h.b16 %v781
        %v1404 = vunpack.c.l.b16 %v782
        %v1405 = vunpack.c.h.b16 %v782
        %v1406 = vunpack.c.l.b16 %v783
        %v1407 = vunpack.c.h.b16 %v783
        %v1408 = vunpack.c.l.b16 %v784
        %v1409 = vunpack.c.h.b16 %v784
        %v1410 = vunpack.c.l.b16 %v785
        %v1411 = vunpack.c.h.b16 %v785
        %v1412 = vunpack.c.l.b16 %v786
        %v1413 = vunpack.c.h.b16 %v786
        %v1414 = vunpack.c.l.b16 %v787
        %v1415 = vunpack.c.h.b16 %v787
        %v1416 = vunpack.c.l.b16 %v788
        %v1417 = vunpack.c.h.b16 %v788
        %v1418 = vunpack.c.l.b16 %v789
        %v1419 = vunpack.c.h.b16 %v789
        %v1420 = vunpack.c.l.b16 %v790
        %v1421 = vunpack.c.h.b16 %v790
        %v1422 = vunpack.c.l.b16 %v791
        %v1423 = vunpack.c.h.b16 %v791
        %v1424 = vunpack.c.l.b16 %v792
        %v1425 = vunpack.c.h.b16 %v792
        %v1426 = vunpack.c.l.b16 %v793
        %v1427 = vunpack.c.h.b16 %v793
        %v1428 = vunpack.c.l.b16 %v794
        %v1429 = vunpack.c.h.b16 %v794
        %v1430 = vunpack.c.l.b16 %v795
        %v1431 = vunpack.c.h.b16 %v795
        %v1432 = vunpack.c.l.b16 %v796
        %v1433 = vunpack.c.h.b16 %v796
        %v1434 = vunpack.c.l.b16 %v797
        %v1435 = vunpack.c.h.b16 %v797
        %v1436 = vunpack.c.l.b16 %v798
        %v1437 = vunpack.c.h.b16 %v798
        %v1438 = vunpack.c.l.b16 %v799
        %v1439 = vunpack.c.h.b16 %v799
        %v1440 = vunpack.c.l.b16 %v800
        %v1441 = vunpack.c.h.b16 %v800
        %v1442 = vunpack.c.l.b16 %v801
        %v1443 = vunpack.c.h.b16 %v801
        %v1444 = vunpack.c.l.b16 %v802
        %v1445 = vunpack.c.h.b16 %v802
        %v1446 = vunpack.c.l.b16 %v803
        %v1447 = vunpack.c.h.b16 %v803
        %v1448 = vunpack.c.l.b16 %v804
        %v1449 = vunpack.c.h.b16 %v804
        %v1450 = vunpack.c.l.b16 %v805
        %v1451 = vunpack.c.h.b16 %v805
        %v1452 = vunpack.c.l.b16 %v806
        %v1453 = vunpack.c.h.b16 %v806
        %v1454 = vunpack.c.l.b16 %v807
        %v1455 = vunpack.c.h.b16 %v807
        %v1456 = vunpack.c.l.b16 %v808
        %v1457 = vunpack.c.h.b16 %v808
        %v1458 = vunpack.c.l.b16 %v809
        %v1459 = vunpack.c.h.b16 %v809
        %v1460 = vunpack.c.l.b16 %v810
        %v1461 = vunpack.c.h.b16 %v810
        %v1462 = vunpack.c.l.b16 %v811
        %v1463 = vunpack.c.h.b16 %v811
        %v1464 = vunpack.c.l.b16 %v812
        %v1465 = vunpack.c.h.b16 %v812
        %v1466 = vunpack.c.l.b16 %v813
        %v1467 = vunpack.c.h.b16 %v813
        %v1468 = vpack.c.b16 %v1052, %v1036
        %v1469 = vpack.c.b16 %v1053, %v1037
        %v1470 = vpack.c.b16 %v1054, %v1038
        %v1471 = vpack.c.b16 %v1055, %v1039
        %v1472 = vpack.c.b16 %v1056, %v1040
        %v1473 = vpack.c.b16 %v1057, %v1041
        %v1474 = vpack.c.b16 %v1058, %v1042
        %v1475 = vpack.c.b16 %v1059, %v1043
        %v1476 = vpack.c.b16 %v1060, %v1044
        %v1477 = vpack.c.b16 %v1061, %v1045
        %v1478 = vpack.c.b16 %v1062, %v1046
        %v1479 = vpack.c.b16 %v1063, %v1047
        %v1480 = vpack.c.b16 %v1064, %v1048
        %v1481 = vpack.c.b16 %v1065, %v1049
        %v1482 = vpack.c.b16 %v1066, %v1050
        %v1483 = vpack.c.b16 %v1067, %v1051
        %v1484 = vpack.c.b16 %v1084, %v1068
        %v1485 = vpack.c.b16 %v1085, %v1069
        %v1486 = vpack.c.b16 %v1086, %v1070
        %v1487 = vpack.c.b16 %v1087, %v1071
        %v1488 = vpack.c.b16 %v1088, %v1072
        %v1489 = vpack.c.b16 %v1089, %v1073
        %v1490 = vpack.c.b16 %v1090, %v1074
        %v1491 = vpack.c.b16 %v1091, %v1075
        %v1492 = vpack.c.b16 %v1092, %v1076
        %v1493 = vpack.c.b16 %v1093, %v1077
        %v1494 = vpack.c.b16 %v1094, %v1078
        %v1495 = vpack.c.b16 %v1095, %v1079
        %v1496 = vpack.c.b16 %v1096, %v1080
        %v1497 = vpack.c.b16 %v1097, %v1081
        %v1498 = vpack.c.b16 %v1098, %v1082
        %v1499 = vpack.c.b16 %v1099, %v1083
        %v1500 = vpack.c.b16 %v1116, %v1100
        %v1501 = vpack.c.b16 %v1117, %v1101
        %v1502 = vpack.c.b16 %v1118, %v1102
        %v1503 = vpack.c.b16 %v1119, %v1103
        %v1504 = vpack.c.b16 %v1120, %v1104
        %v1505 = vpack.c.b16 %v1121, %v1105
        %v1506 = vpack.c.b16 %v1122, %v1106
        %v1507 = vpack.c.b16 %v1123, %v1107
        %v1508 = vpack.c.b16 %v1124, %v1108
        %v1509 = vpack.c.b16 %v1125, %v1109
        %v1510 = vpack.c.b16 %v1126, %v1110
        %v1511 = vpack.c.b16 %v1127, %v1111
        %v1512 = vpack.c.b16 %v1128, %v1112
        %v1513 = vpack.c.b16 %v1129, %v1113
        %v1514 = vpack.c.b16 %v1130, %v1114
        %v1515 = vpack.c.b16 %v1131, %v1115
        %v1516 = vpack.c.b16 %v1148, %v1132
        %v1517 = vpack.c.b16 %v1149, %v1133
        %v1518 = vpack.c.b16 %v1150, %v1134
        %v1519 = vpack.c.b16 %v1151, %v1135
        %v1520 = vpack.c.b16 %v1152, %v1136
        %v1521 = vpack.c.b16 %v1153, %v1137
        %v1522 = vpack.c.b16 %v1154, %v1138
        %v1523 = vpack.c.b16 %v1155, %v1139
        %v1524 = vpack.c.b16 %v1156, %v1140
        %v1525 = vpack.c.b16 %v1157, %v1141
        %v1526 = vpack.c.b16 %v1158, %v1142
        %v1527 = vpack.c.b16 %v1159, %v1143
        %v1528 = vpack.c.b16 %v1160, %v1144
        %v1529 = vpack.c.b16 %v1161, %v1145
        %v1530 = vpack.c.b16 %v1162, %v1146
        %v1531 = vpack.c.b16 %v1163, %v1147
        %v1532 = vpack.c.b16 %v1180, %v1164
        %v1533 = vpack.c.b16 %v1181, %v1165
        %v1534 = vpack.c.b16 %v1182, %v1166
        %v1535 = vpack.c.b16 %v1183, %v1167
        %v1536 = vpack.c.b16 %v1184, %v1168
        %v1537 = vpack.c.b16 %v1185, %v1169
        %v1538 = vpack.c.b16 %v1186, %v1170
        %v1539 = vpack.c.b16 %v1187, %v1171
        %v1540 = vpack.c.b16 %v1188, %v1172
        %v1541 = vpack.c.b16 %v1189, %v1173
        %v1542 = vpack.c.b16 %v1190, %v1174
        %v1543 = vpack.c.b16 %v1191, %v1175
        %v1544 = vpack.c.b16 %v1192, %v1176
        %v1545 = vpack.c.b16 %v1193, %v1177
        %v1546 = vpack.c.b16 %v1194, %v1178
        %v1547 = vpack.c.b16 %v1195, %v1179
        %v1548 = vpack.c.b16 %v1212, %v1196
        %v1549 = vpack.c.b16 %v1213, %v1197
        %v1550 = vpack.c.b16 %v1214, %v1198
        %v1551 = vpack.c.b16 %v1215, %v1199
        %v1552 = vpack.c.b16 %v1216, %v1200
        %v1553 = vpack.c.b16 %v1217, %v1201
        %v1554 = vpack.c.b16 %v1218, %v1202
        %v1555 = vpack.c.b16 %v1219, %v1203
        %v1556 = vpack.c.b16 %v1220, %v1204
        %v1557 = vpack.c.b16 %v1221, %v1205
        %v1558 = vpack.c.b16 %v1222, %v1206
        %v1559 = vpack.c.b16 %v1223, %v1207
        %v1560 = vpack.c.b16 %v1224, %v1208
        %v1561 = vpack.c.b16 %v1225, %v1209
        %v1562 = vpack.c.b16 %v1226, %v1210
        %v1563 = vpack.c.b16 %v1227, %v1211
        %v1564 = vpack.c.b16 %v1244, %v1228
        %v1565 = vpack.c.b16 %v1245, %v1229
        %v1566 = vpack.c.b16 %v1246, %v1230
        %v1567 = vpack.c.b16 %v1247, %v1231
        %v1568 = vpack.c.b16 %v1248, %v1232
        %v1569 = vpack.c.b16 %v1249, %v1233
        %v1570 = vpack.c.b16 %v1250, %v1234
        %v1571 = vpack.c.b16 %v1251, %v1235
        %v1572 = vpack.c.b16 %v1252, %v1236
        %v1573 = vpack.c.b16 %v1253, %v1237
        %v1574 = vpack.c.b16 %v1254, %v1238
        %v1575 = vpack.c.b16 %v1255, %v1239
        %v1576 = vpack.c.b16 %v1256, %v1240
        %v1577 = vpack.c.b16 %v1257, %v1241
        %v1578 = vpack.c.b16 %v1258, %v1242
        %v1579 = vpack.c.b16 %v1259, %v1243
        %v1580 = vpack.c.b16 %v1276, %v1260
        %v1581 = vpack.c.b16 %v1277, %v1261
        %v1582 = vpack.c.b16 %v1278, %v1262
        %v1583 = vpack.c.b16 %v1279, %v1263
        %v1584 = vpack.c.b16 %v1280, %v1264
        %v1585 = vpack.c.b16 %v1281, %v1265
        %v1586 = vpack.c.b16 %v1282, %v1266
        %v1587 = vpack.c.b16 %v1283, %v1267
        %v1588 = vpack.c.b16 %v1284, %v1268
        %v1589 = vpack.c.b16 %v1285, %v1269
        %v1590 = vpack.c.b16 %v1286, %v1270
        %v1591 = vpack.c.b16 %v1287, %v1271
        %v1592 = vpack.c.b16 %v1288, %v1272
        %v1593 = vpack.c.b16 %v1289, %v1273
        %v1594 = vpack.c.b16 %v1290, %v1274
        %v1595 = vpack.c.b16 %v1291, %v1275
        %v1596 = vpack.c.b16 %v1308, %v1292
        %v1597 = vpack.c.b16 %v1309, %v1293
        %v1598 = vpack.c.b16 %v1310, %v1294
        %v1599 = vpack.c.b16 %v1311, %v1295
        %v1600 = vpack.c.b16 %v1312, %v1296
        %v1601 = vpack.c.b16 %v1313, %v1297
        %v1602 = vpack.c.b16 %v1314, %v1298
        %v1603 = vpack.c.b16 %v1315, %v1299
        %v1604 = vpack.c.b16 %v1316, %v1300
        %v1605 = vpack.c.b16 %v1317, %v1301
        %v1606 = vpack.c.b16 %v1318, %v1302
        %v1607 = vpack.c.b16 %v1319, %v1303
        %v1608 = vpack.c.b16 %v1320, %v1304
        %v1609 = vpack.c.b16 %v1321, %v1305
        %v1610 = vpack.c.b16 %v1322, %v1306
        %v1611 = vpack.c.b16 %v1323, %v1307
        %v1612 = vpack.c.b16 %v1340, %v1324
        %v1613 = vpack.c.b16 %v1341, %v1325
        %v1614 = vpack.c.b16 %v1342, %v1326
        %v1615 = vpack.c.b16 %v1343, %v1327
        %v1616 = vpack.c.b16 %v1344, %v1328
        %v1617 = vpack.c.b16 %v1345, %v1329
        %v1618 = vpack.c.b16 %v1346, %v1330
        %v1619 = vpack.c.b16 %v1347, %v1331
        %v1620 = vpack.c.b16 %v1348, %v1332
        %v1621 = vpack.c.b16 %v1349, %v1333
        %v1622 = vpack.c.b16 %v1350, %v1334
        %v1623 = vpack.c.b16 %v1351, %v1335
        %v1624 = vpack.c.b16 %v1352, %v1336
        %v1625 = vpack.c.b16 %v1353, %v1337
        %v1626 = vpack.c.b16 %v1354, %v1338
        %v1627 = vpack.c.b16 %v1355, %v1339
        %v1628 = vpack.c.b16 %v1372, %v1356
        %v1629 = vpack.c.b16 %v1373, %v1357
        %v1630 = vpack.c.b16 %v1374, %v1358
        %v1631 = vpack.c.b16 %v1375, %v1359
        %v1632 = vpack.c.b16 %v1376, %v1360
        %v1633 = vpack.c.b16 %v1377, %v1361
        %v1634 = vpack.c.b16 %v1378, %v1362
        %v1635 = vpack.c.b16 %v1379, %v1363
        %v1636 = vpack.c.b16 %v1380, %v1364
        %v1637 = vpack.c.b16 %v1381, %v1365
        %v1638 = vpack.c.b16 %v1382, %v1366
        %v1639 = vpack.c.b16 %v1383, %v1367
        %v1640 = vpack.c.b16 %v1384, %v1368
        %v1641 = vpack.c.b16 %v1385, %v1369
        %v1642 = vpack.c.b16 %v1386, %v1370
        %v1643 = vpack.c.b16 %v1387, %v1371
        %v1644 = vpack.c.b16 %v1404, %v1388
        %v1645 = vpack.c.b16 %v1405, %v1389
        %v1646 = vpack.c.b16 %v1406, %v1390
        %v1647 = vpack.c.b16 %v1407, %v1391
        %v1648 = vpack.c.b16 %v1408, %v1392
        %v1649 = vpack.c.b16 %v1409, %v1393
        %v1650 = vpack.c.b16 %v1410, %v1394
        %v1651 = vpack.c.b16 %v1411, %v1395
        %v1652 = vpack.c.b16 %v1412, %v1396
        %v1653 = vpack.c.b16 %v1413, %v1397
        %v1654 = vpack.c.b16 %v1414, %v1398
        %v1655 = vpack.c.b16 %v1415, %v1399
        %v1656 = vpack.c.b16 %v1416, %v1400
        %v1657 = vpack.c.b16 %v1417, %v1401
        %v1658 = vpack.c.b16 %v1418, %v1402
        %v1659 = vpack.c.b16 %v1419, %v1403
        %v1660 = vpack.c.b16 %v1436, %v1420
        %v1661 = vpack.c.b16 %v1437, %v1421
        %v1662 = vpack.c.b16 %v1438, %v1422
        %v1663 = vpack.c.b16 %v1439, %v1423
        %v1664 = vpack.c.b16 %v1440, %v1424
        %v1665 = vpack.c.b16 %v1441, %v1425
        %v1666 = vpack.c.b16 %v1442, %v1426
        %v1667 = vpack.c.b16 %v1443, %v1427
        %v1668 = vpack.c.b16 %v1444, %v1428
        %v1669 = vpack.c.b16 %v1445, %v1429
        %v1670 = vpack.c.b16 %v1446, %v1430
        %v1671 = vpack.c.b16 %v1447, %v1431
        %v1672 = vpack.c.b16 %v1448, %v1432
        %v1673 = vpack.c.b16 %v1449, %v1433
        %v1674 = vpack.c.b16 %v1450, %v1434
        %v1675 = vpack.c.b16 %v1451, %v1435
        %v1676 = vpack.c.b16 %v1452, %v1452
        %v1677 = vpack.c.b16 %v1453, %v1453
        %v1678 = vpack.c.b16 %v1454, %v1454
        %v1679 = vpack.c.b16 %v1455, %v1455
        %v1680 = vpack.c.b16 %v1456, %v1456
        %v1681 = vpack.c.b16 %v1457, %v1457
        %v1682 = vpack.c.b16 %v1458, %v1458
        %v1683 = vpack.c.b16 %v1459, %v1459
        %v1684 = vpack.c.b16 %v1460, %v1460
        %v1685 = vpack.c.b16 %v1461, %v1461
        %v1686 = vpack.c.b16 %v1462, %v1462
        %v1687 = vpack.c.b16 %v1463, %v1463
        %v1688 = vpack.c.b16 %v1464, %v1464
        %v1689 = vpack.c.b16 %v1465, %v1465
        %v1690 = vpack.c.b16 %v1466, %v1466
        %v1691 = vpack.c.b16 %v1467, %v1467
        %vm1900 = vcmask 719872
        %v1902 = vsel %vm1900, %v818, 0
        %vm1904 = vcmask 1043456
        %v1906 = vsel %vm1904, %v1676, 0
        %v1909 = vsel %vm1904, %v1677, 0
        %v1912 = vsel %vm1904, %v1678, 0
        %v1915 = vsel %vm1904, %v1679, 0
        %v1918 = vsel %vm1904, %v1680, 0
        %v1921 = vsel %vm1904, %v1681, 0
        %v1924 = vsel %vm1904, %v1682, 0
        %v1927 = vsel %vm1904, %v1683, 0
        %v1930 = vsel %vm1904, %v1684, 0
        %v1933 = vsel %vm1904, %v1685, 0
        %v1936 = vsel %vm1904, %v1686, 0
        %v1939 = vsel %vm1904, %v1687, 0
        %v1942 = vsel %vm1904, %v1688, 0
        %v1945 = vsel %vm1904, %v1689, 0
        %v1948 = vsel %vm1904, %v1690, 0
        %v1951 = vsel %vm1904, %v1691, 0
        %1953 = vmatprep.subr.bf16.mxu0 %v1469
        %1954 = vmatpush1.bf16.msra.mxu0 %v1468
        %1955 = vmatprep.subr.bf16.mxu0 %v1485
        %1956 = vmatpush1.bf16.msra.mxu0 %v1484
        %1957 = vmatprep.subr.bf16.mxu0 %v1501
        %1958 = vmatpush1.bf16.msra.mxu0 %v1500
        %1959 = vmatprep.subr.bf16.mxu0 %v1517
        %1960 = vmatpush1.bf16.msra.mxu0 %v1516
        %1961 = vmatprep.subr.bf16.mxu0 %v1533
        %1962 = vmatpush1.bf16.msra.mxu0 %v1532
        %1963 = vmatprep.subr.bf16.mxu0 %v1549
        %1964 = vmatpush1.bf16.msra.mxu0 %v1548
        %1965 = vmatprep.subr.bf16.mxu0 %v1565
        %1966 = vmatpush1.bf16.msra.mxu0 %v1564
        %1967 = vmatprep.subr.bf16.mxu0 %v1581
        %1968 = vmatpush1.bf16.msra.mxu0 %v1580
        %1969 = vmatprep.subr.bf16.mxu0 %v1597
        %1970 = vmatpush1.bf16.msra.mxu0 %v1596
        %1971 = vmatprep.subr.bf16.mxu0 %v1613
        %1972 = vmatpush1.bf16.msra.mxu0 %v1612
        %1973 = vmatprep.subr.bf16.mxu0 %v1629
        %1974 = vmatpush1.bf16.msra.mxu0 %v1628
        %1975 = vmatprep.subr.bf16.mxu0 %v1645
        %1976 = vmatpush1.bf16.msra.mxu0 %v1644
        %1977 = vmatprep.subr.bf16.mxu0 %v1661
        %1978 = vmatpush1.bf16.msra.mxu0 %v1660
        %1979 = vmatprep.subr.bf16.mxu0 %v1909
        %1980 = vmatpush1.bf16.msra.mxu0 %v1906
        %1981 = vmatprep.subr.bf16.mxu0 0
        %1982 = vmatpush1.bf16.msra.mxu0 0
        %1983 = vmatprep.subr.bf16.mxu0 0
        %1984 = vmatpush1.bf16.msra.mxu0 0
        %1985 = vmatprep.mubr.bf16.mxu0 %v1902
        %1986 = vmatmul.mubr.bf16.gmra.mrb[0].mxu0 %v817
        %v1987 = vpop.f32.mrb[0].mxu0
        %v1988 = vadd.f32 0.0, %v1987
        %v1989 = vpop.f32.mrb[0].mxu0
        %v1990 = vadd.f32 0.0, %v1989
        %v1991 = vpop.f32.mrb[0].mxu0
        %v1992 = vpop.f32.mrb[0].mxu0
        %1993 = vdwg.mxu0
        %1994 = vmatprep.subr.bf16.mxu0 %v1471
        %1995 = vmatpush1.bf16.msra.mxu0 %v1470
        %1996 = vmatprep.subr.bf16.mxu0 %v1487
        %1997 = vmatpush1.bf16.msra.mxu0 %v1486
        %1998 = vmatprep.subr.bf16.mxu0 %v1503
        %1999 = vmatpush1.bf16.msra.mxu0 %v1502
        %2000 = vmatprep.subr.bf16.mxu0 %v1519
        %2001 = vmatpush1.bf16.msra.mxu0 %v1518
        %2002 = vmatprep.subr.bf16.mxu0 %v1535
        %2003 = vmatpush1.bf16.msra.mxu0 %v1534
        %2004 = vmatprep.subr.bf16.mxu0 %v1551
        %2005 = vmatpush1.bf16.msra.mxu0 %v1550
        %2006 = vmatprep.subr.bf16.mxu0 %v1567
        %2007 = vmatpush1.bf16.msra.mxu0 %v1566
        %2008 = vmatprep.subr.bf16.mxu0 %v1583
        %2009 = vmatpush1.bf16.msra.mxu0 %v1582
        %2010 = vmatprep.subr.bf16.mxu0 %v1599
        %2011 = vmatpush1.bf16.msra.mxu0 %v1598
        %2012 = vmatprep.subr.bf16.mxu0 %v1615
        %2013 = vmatpush1.bf16.msra.mxu0 %v1614
        %2014 = vmatprep.subr.bf16.mxu0 %v1631
        %2015 = vmatpush1.bf16.msra.mxu0 %v1630
        %2016 = vmatprep.subr.bf16.mxu0 %v1647
        %2017 = vmatpush1.bf16.msra.mxu0 %v1646
        %2018 = vmatprep.subr.bf16.mxu0 %v1663
        %2019 = vmatpush1.bf16.msra.mxu0 %v1662
        %2020 = vmatprep.subr.bf16.mxu0 %v1915
        %2021 = vmatpush1.bf16.msra.mxu0 %v1912
        %2022 = vmatprep.subr.bf16.mxu0 0
        %2023 = vmatpush1.bf16.msra.mxu0 0
        %2024 = vmatprep.subr.bf16.mxu0 0
        %2025 = vmatpush1.bf16.msra.mxu0 0
        %2026 = vmatprep.mubr.bf16.mxu0 %v1902
        %2027 = vmatmul.mubr.bf16.gmra.mrb[0].mxu0 %v817
        %v2028 = vpop.f32.mrb[0].mxu0
        %v2029 = vadd.f32 0.0, %v2028
        %v2030 = vpop.f32.mrb[0].mxu0
        %v2031 = vadd.f32 0.0, %v2030
        %v2032 = vpop.f32.mrb[0].mxu0
        %v2033 = vpop.f32.mrb[0].mxu0
        %2034 = vdwg.mxu0
        %2035 = vmatprep.subr.bf16.mxu0 %v1473
        %2036 = vmatpush1.bf16.msra.mxu0 %v1472
        %2037 = vmatprep.subr.bf16.mxu0 %v1489
        %2038 = vmatpush1.bf16.msra.mxu0 %v1488
        %2039 = vmatprep.subr.bf16.mxu0 %v1505
        %2040 = vmatpush1.bf16.msra.mxu0 %v1504
        %2041 = vmatprep.subr.bf16.mxu0 %v1521
        %2042 = vmatpush1.bf16.msra.mxu0 %v1520
        %2043 = vmatprep.subr.bf16.mxu0 %v1537
        %2044 = vmatpush1.bf16.msra.mxu0 %v1536
        %2045 = vmatprep.subr.bf16.mxu0 %v1553
        %2046 = vmatpush1.bf16.msra.mxu0 %v1552
        %2047 = vmatprep.subr.bf16.mxu0 %v1569
        %2048 = vmatpush1.bf16.msra.mxu0 %v1568
        %2049 = vmatprep.subr.bf16.mxu0 %v1585
        %2050 = vmatpush1.bf16.msra.mxu0 %v1584
        %2051 = vmatprep.subr.bf16.mxu0 %v1601
        %2052 = vmatpush1.bf16.msra.mxu0 %v1600
        %2053 = vmatprep.subr.bf16.mxu0 %v1617
        %2054 = vmatpush1.bf16.msra.mxu0 %v1616
        %2055 = vmatprep.subr.bf16.mxu0 %v1633
        %2056 = vmatpush1.bf16.msra.mxu0 %v1632
        %2057 = vmatprep.subr.bf16.mxu0 %v1649
        %2058 = vmatpush1.bf16.msra.mxu0 %v1648
        %2059 = vmatprep.subr.bf16.mxu0 %v1665
        %2060 = vmatpush1.bf16.msra.mxu0 %v1664
        %2061 = vmatprep.subr.bf16.mxu0 %v1921
        %2062 = vmatpush1.bf16.msra.mxu0 %v1918
        %2063 = vmatprep.subr.bf16.mxu0 0
        %2064 = vmatpush1.bf16.msra.mxu0 0
        %2065 = vmatprep.subr.bf16.mxu0 0
        %2066 = vmatpush1.bf16.msra.mxu0 0
        %2067 = vmatprep.mubr.bf16.mxu0 %v1902
        %2068 = vmatmul.mubr.bf16.gmra.mrb[0].mxu0 %v817
        %v2069 = vpop.f32.mrb[0].mxu0
        %v2070 = vadd.f32 0.0, %v2069
        %v2071 = vpop.f32.mrb[0].mxu0
        %v2072 = vadd.f32 0.0, %v2071
        %v2073 = vpop.f32.mrb[0].mxu0
        %v2074 = vpop.f32.mrb[0].mxu0
        %2075 = vdwg.mxu0
        %2076 = vmatprep.subr.bf16.mxu0 %v1475
        %2077 = vmatpush1.bf16.msra.mxu0 %v1474
        %2078 = vmatprep.subr.bf16.mxu0 %v1491
        %2079 = vmatpush1.bf16.msra.mxu0 %v1490
        %2080 = vmatprep.subr.bf16.mxu0 %v1507
        %2081 = vmatpush1.bf16.msra.mxu0 %v1506
        %2082 = vmatprep.subr.bf16.mxu0 %v1523
        %2083 = vmatpush1.bf16.msra.mxu0 %v1522
        %2084 = vmatprep.subr.bf16.mxu0 %v1539
        %2085 = vmatpush1.bf16.msra.mxu0 %v1538
        %2086 = vmatprep.subr.bf16.mxu0 %v1555
        %2087 = vmatpush1.bf16.msra.mxu0 %v1554
        %2088 = vmatprep.subr.bf16.mxu0 %v1571
        %2089 = vmatpush1.bf16.msra.mxu0 %v1570
        %2090 = vmatprep.subr.bf16.mxu0 %v1587
        %2091 = vmatpush1.bf16.msra.mxu0 %v1586
        %2092 = vmatprep.subr.bf16.mxu0 %v1603
        %2093 = vmatpush1.bf16.msra.mxu0 %v1602
        %2094 = vmatprep.subr.bf16.mxu0 %v1619
        %2095 = vmatpush1.bf16.msra.mxu0 %v1618
        %2096 = vmatprep.subr.bf16.mxu0 %v1635
        %2097 = vmatpush1.bf16.msra.mxu0 %v1634
        %2098 = vmatprep.subr.bf16.mxu0 %v1651
        %2099 = vmatpush1.bf16.msra.mxu0 %v1650
        %2100 = vmatprep.subr.bf16.mxu0 %v1667
        %2101 = vmatpush1.bf16.msra.mxu0 %v1666
        %2102 = vmatprep.subr.bf16.mxu0 %v1927
        %2103 = vmatpush1.bf16.msra.mxu0 %v1924
        %2104 = vmatprep.subr.bf16.mxu0 0
        %2105 = vmatpush1.bf16.msra.mxu0 0
        %2106 = vmatprep.subr.bf16.mxu0 0
        %2107 = vmatpush1.bf16.msra.mxu0 0
        %2108 = vmatprep.mubr.bf16.mxu0 %v1902
        %2109 = vmatmul.mubr.bf16.gmra.mrb[0].mxu0 %v817
        %v2110 = vpop.f32.mrb[0].mxu0
        %v2111 = vadd.f32 0.0, %v2110
        %v2112 = vpop.f32.mrb[0].mxu0
        %v2113 = vadd.f32 0.0, %v2112
        %v2114 = vpop.f32.mrb[0].mxu0
        %v2115 = vpop.f32.mrb[0].mxu0
        %2116 = vdwg.mxu0
        %2117 = vmatprep.subr.bf16.mxu0 %v1477
        %2118 = vmatpush1.bf16.msra.mxu0 %v1476
        %2119 = vmatprep.subr.bf16.mxu0 %v1493
        %2120 = vmatpush1.bf16.msra.mxu0 %v1492
        %2121 = vmatprep.subr.bf16.mxu0 %v1509
        %2122 = vmatpush1.bf16.msra.mxu0 %v1508
        %2123 = vmatprep.subr.bf16.mxu0 %v1525
        %2124 = vmatpush1.bf16.msra.mxu0 %v1524
        %2125 = vmatprep.subr.bf16.mxu0 %v1541
        %2126 = vmatpush1.bf16.msra.mxu0 %v1540
        %2127 = vmatprep.subr.bf16.mxu0 %v1557
        %2128 = vmatpush1.bf16.msra.mxu0 %v1556
        %2129 = vmatprep.subr.bf16.mxu0 %v1573
        %2130 = vmatpush1.bf16.msra.mxu0 %v1572
        %2131 = vmatprep.subr.bf16.mxu0 %v1589
        %2132 = vmatpush1.bf16.msra.mxu0 %v1588
        %2133 = vmatprep.subr.bf16.mxu0 %v1605
        %2134 = vmatpush1.bf16.msra.mxu0 %v1604
        %2135 = vmatprep.subr.bf16.mxu0 %v1621
        %2136 = vmatpush1.bf16.msra.mxu0 %v1620
        %2137 = vmatprep.subr.bf16.mxu0 %v1637
        %2138 = vmatpush1.bf16.msra.mxu0 %v1636
        %2139 = vmatprep.subr.bf16.mxu0 %v1653
        %2140 = vmatpush1.bf16.msra.mxu0 %v1652
        %2141 = vmatprep.subr.bf16.mxu0 %v1669
        %2142 = vmatpush1.bf16.msra.mxu0 %v1668
        %2143 = vmatprep.subr.bf16.mxu0 %v1933
        %2144 = vmatpush1.bf16.msra.mxu0 %v1930
        %2145 = vmatprep.subr.bf16.mxu0 0
        %2146 = vmatpush1.bf16.msra.mxu0 0
        %2147 = vmatprep.subr.bf16.mxu0 0
        %2148 = vmatpush1.bf16.msra.mxu0 0
        %2149 = vmatprep.mubr.bf16.mxu0 %v1902
        %2150 = vmatmul.mubr.bf16.gmra.mrb[0].mxu0 %v817
        %v2151 = vpop.f32.mrb[0].mxu0
        %v2152 = vadd.f32 0.0, %v2151
        %v2153 = vpop.f32.mrb[0].mxu0
        %v2154 = vadd.f32 0.0, %v2153
        %v2155 = vpop.f32.mrb[0].mxu0
        %v2156 = vpop.f32.mrb[0].mxu0
        %2157 = vdwg.mxu0
        %2158 = vmatprep.subr.bf16.mxu0 %v1479
        %2159 = vmatpush1.bf16.msra.mxu0 %v1478
        %2160 = vmatprep.subr.bf16.mxu0 %v1495
        %2161 = vmatpush1.bf16.msra.mxu0 %v1494
        %2162 = vmatprep.subr.bf16.mxu0 %v1511
        %2163 = vmatpush1.bf16.msra.mxu0 %v1510
        %2164 = vmatprep.subr.bf16.mxu0 %v1527
        %2165 = vmatpush1.bf16.msra.mxu0 %v1526
        %2166 = vmatprep.subr.bf16.mxu0 %v1543
        %2167 = vmatpush1.bf16.msra.mxu0 %v1542
        %2168 = vmatprep.subr.bf16.mxu0 %v1559
        %2169 = vmatpush1.bf16.msra.mxu0 %v1558
        %2170 = vmatprep.subr.bf16.mxu0 %v1575
        %2171 = vmatpush1.bf16.msra.mxu0 %v1574
        %2172 = vmatprep.subr.bf16.mxu0 %v1591
        %2173 = vmatpush1.bf16.msra.mxu0 %v1590
        %2174 = vmatprep.subr.bf16.mxu0 %v1607
        %2175 = vmatpush1.bf16.msra.mxu0 %v1606
        %2176 = vmatprep.subr.bf16.mxu0 %v1623
        %2177 = vmatpush1.bf16.msra.mxu0 %v1622
        %2178 = vmatprep.subr.bf16.mxu0 %v1639
        %2179 = vmatpush1.bf16.msra.mxu0 %v1638
        %2180 = vmatprep.subr.bf16.mxu0 %v1655
        %2181 = vmatpush1.bf16.msra.mxu0 %v1654
        %2182 = vmatprep.subr.bf16.mxu0 %v1671
        %2183 = vmatpush1.bf16.msra.mxu0 %v1670
        %2184 = vmatprep.subr.bf16.mxu0 %v1939
        %2185 = vmatpush1.bf16.msra.mxu0 %v1936
        %2186 = vmatprep.subr.bf16.mxu0 0
        %2187 = vmatpush1.bf16.msra.mxu0 0
        %2188 = vmatprep.subr.bf16.mxu0 0
        %2189 = vmatpush1.bf16.msra.mxu0 0
        %2190 = vmatprep.mubr.bf16.mxu0 %v1902
        %2191 = vmatmul.mubr.bf16.gmra.mrb[0].mxu0 %v817
        %v2192 = vpop.f32.mrb[0].mxu0
        %v2193 = vadd.f32 0.0, %v2192
        %v2194 = vpop.f32.mrb[0].mxu0
        %v2195 = vadd.f32 0.0, %v2194
        %v2196 = vpop.f32.mrb[0].mxu0
        %v2197 = vpop.f32.mrb[0].mxu0
        %2198 = vdwg.mxu0
        %2199 = vmatprep.subr.bf16.mxu0 %v1481
        %2200 = vmatpush1.bf16.msra.mxu0 %v1480
        %2201 = vmatprep.subr.bf16.mxu0 %v1497
        %2202 = vmatpush1.bf16.msra.mxu0 %v1496
        %2203 = vmatprep.subr.bf16.mxu0 %v1513
        %2204 = vmatpush1.bf16.msra.mxu0 %v1512
        %2205 = vmatprep.subr.bf16.mxu0 %v1529
        %2206 = vmatpush1.bf16.msra.mxu0 %v1528
        %2207 = vmatprep.subr.bf16.mxu0 %v1545
        %2208 = vmatpush1.bf16.msra.mxu0 %v1544
        %2209 = vmatprep.subr.bf16.mxu0 %v1561
        %2210 = vmatpush1.bf16.msra.mxu0 %v1560
        %2211 = vmatprep.subr.bf16.mxu0 %v1577
        %2212 = vmatpush1.bf16.msra.mxu0 %v1576
        %2213 = vmatprep.subr.bf16.mxu0 %v1593
        %2214 = vmatpush1.bf16.msra.mxu0 %v1592
        %2215 = vmatprep.subr.bf16.mxu0 %v1609
        %2216 = vmatpush1.bf16.msra.mxu0 %v1608
        %2217 = vmatprep.subr.bf16.mxu0 %v1625
        %2218 = vmatpush1.bf16.msra.mxu0 %v1624
        %2219 = vmatprep.subr.bf16.mxu0 %v1641
        %2220 = vmatpush1.bf16.msra.mxu0 %v1640
        %2221 = vmatprep.subr.bf16.mxu0 %v1657
        %2222 = vmatpush1.bf16.msra.mxu0 %v1656
        %2223 = vmatprep.subr.bf16.mxu0 %v1673
        %2224 = vmatpush1.bf16.msra.mxu0 %v1672
        %2225 = vmatprep.subr.bf16.mxu0 %v1945
        %2226 = vmatpush1.bf16.msra.mxu0 %v1942
        %2227 = vmatprep.subr.bf16.mxu0 0
        %2228 = vmatpush1.bf16.msra.mxu0 0
        %2229 = vmatprep.subr.bf16.mxu0 0
        %2230 = vmatpush1.bf16.msra.mxu0 0
        %2231 = vmatprep.mubr.bf16.mxu0 %v1902
        %2232 = vmatmul.mubr.bf16.gmra.mrb[0].mxu0 %v817
        %v2233 = vpop.f32.mrb[0].mxu0
        %v2234 = vadd.f32 0.0, %v2233
        %v2235 = vpop.f32.mrb[0].mxu0
        %v2236 = vadd.f32 0.0, %v2235
        %v2237 = vpop.f32.mrb[0].mxu0
        %v2238 = vpop.f32.mrb[0].mxu0
        %2239 = vdwg.mxu0
        %2240 = vmatprep.subr.bf16.mxu0 %v1483
        %2241 = vmatpush1.bf16.msra.mxu0 %v1482
        %2242 = vmatprep.subr.bf16.mxu0 %v1499
        %2243 = vmatpush1.bf16.msra.mxu0 %v1498
        %2244 = vmatprep.subr.bf16.mxu0 %v1515
        %2245 = vmatpush1.bf16.msra.mxu0 %v1514
        %2246 = vmatprep.subr.bf16.mxu0 %v1531
        %2247 = vmatpush1.bf16.msra.mxu0 %v1530
        %2248 = vmatprep.subr.bf16.mxu0 %v1547
        %2249 = vmatpush1.bf16.msra.mxu0 %v1546
        %2250 = vmatprep.subr.bf16.mxu0 %v1563
        %2251 = vmatpush1.bf16.msra.mxu0 %v1562
        %2252 = vmatprep.subr.bf16.mxu0 %v1579
        %2253 = vmatpush1.bf16.msra.mxu0 %v1578
        %2254 = vmatprep.subr.bf16.mxu0 %v1595
        %2255 = vmatpush1.bf16.msra.mxu0 %v1594
        %2256 = vmatprep.subr.bf16.mxu0 %v1611
        %2257 = vmatpush1.bf16.msra.mxu0 %v1610
        %2258 = vmatprep.subr.bf16.mxu0 %v1627
        %2259 = vmatpush1.bf16.msra.mxu0 %v1626
        %2260 = vmatprep.subr.bf16.mxu0 %v1643
        %2261 = vmatpush1.bf16.msra.mxu0 %v1642
        %2262 = vmatprep.subr.bf16.mxu0 %v1659
        %2263 = vmatpush1.bf16.msra.mxu0 %v1658
        %2264 = vmatprep.subr.bf16.mxu0 %v1675
        %2265 = vmatpush1.bf16.msra.mxu0 %v1674
        %2266 = vmatprep.subr.bf16.mxu0 %v1951
        %2267 = vmatpush1.bf16.msra.mxu0 %v1948
        %2268 = vmatprep.subr.bf16.mxu0 0
        %2269 = vmatpush1.bf16.msra.mxu0 0
        %2270 = vmatprep.subr.bf16.mxu0 0
        %2271 = vmatpush1.bf16.msra.mxu0 0
        %2272 = vmatprep.mubr.bf16.mxu0 %v1902
        %2273 = vmatmul.mubr.bf16.gmra.mrb[0].mxu0 %v817
        %v2274 = vpop.f32.mrb[0].mxu0
        %v2275 = vadd.f32 0.0, %v2274
        %v2276 = vpop.f32.mrb[0].mxu0
        %v2277 = vadd.f32 0.0, %v2276
        %v2278 = vpop.f32.mrb[0].mxu0
        %v2279 = vpop.f32.mrb[0].mxu0
        %2280 = vdwg.mxu0
        %2281 = vst [vmem:[%s594] sm:$0xff] %v1988
        %2282 = vst [vmem:[%s594 + $0x8] sm:$0xff] %v1990
        %2283 = vst [vmem:[%s594 + $0x10] sm:$0xff] %v2029
        %2284 = vst [vmem:[%s594 + $0x18] sm:$0xff] %v2031
        %2285 = vst [vmem:[%s594 + $0x20] sm:$0xff] %v2070
        %2286 = vst [vmem:[%s594 + $0x28] sm:$0xff] %v2072
        %2287 = vst [vmem:[%s594 + $0x30] sm:$0xff] %v2111
        %2288 = vst [vmem:[%s594 + $0x38] sm:$0xff] %v2113
        %2289 = vst [vmem:[%s594 + $0x40] sm:$0xff] %v2152
        %2290 = vst [vmem:[%s594 + $0x48] sm:$0xff] %v2154
        %2291 = vst [vmem:[%s594 + $0x50] sm:$0xff] %v2193
        %2292 = vst [vmem:[%s594 + $0x58] sm:$0xff] %v2195
        %2293 = vst [vmem:[%s594 + $0x60] sm:$0xff] %v2234
        %2294 = vst [vmem:[%s594 + $0x68] sm:$0xff] %v2236
        %2295 = vst [vmem:[%s594 + $0x70] sm:$0xff] %v2275
        %2296 = vst [vmem:[%s594 + $0x78] sm:$0xff] %v2277
        %s2297 = smul.u32 16, %s13
        %p2298 = scmp.lt.s32.totalorder %s2297, 31
        %s2299 = scalar_select %p2298, %s2297, 31
        %s2300 = smul.addr %s2299, 8
        %s2301 = scalar_lea.vmem %s2, %s2300
        // Predicated region
        $region52: #{a_call__.6} parent=46 // pred_check
          %p2302 = pneg %p78
        $region53: #{a_call__.6} parent=46 // pred_check_branch
          %2304 = sbr.rel (%p2302) target = $region55
        $region54: #{a_call__.6} parent=46 // pred_region
          %s2305 = smul.u32 16, %s13
        $region55: #{a_call__.6} parent=46 // pred_fallthru
          _
      $region47: #{a_call__.6} parent=5 // pred_fallthru
        _
      %p2306 = scmp.le.s32.totalorder 2, %s8
      // Predicated region
      $region56: #{a_call__.6} parent=5 // pred_check
        %p2307 = pneg %p2306
      $region57: #{a_call__.6} parent=5 // pred_check_branch
        %2309 = sbr.rel (%p2307) target = $region59
      $region58: #{a_call__.6} parent=5 // pred_region
        %s2310 = ssub.s32 %s8, 2
        // Predicated region
        $region60: #{a_call__.6} parent=58 // pred_check
          %p2311 = pneg %p84
        $region61: #{a_call__.6} parent=58 // pred_check_branch
          %2313 = sbr.rel (%p2311) target = $region63
        $region62: #{a_call__.6} parent=58 // pred_region
          %s2314 = smul.u32 16, %s14
          %p2315 = scmp.lt.s32.totalorder %s2314, 31
          %s2316 = scalar_select %p2315, %s2314, 31
          %s2317 = smul.addr %s2316, 8
          %s2318 = scalar_lea.vmem %s2, %s2317
        $region63: #{a_call__.6} parent=58 // pred_fallthru
          _
      $region59: #{a_call__.6} parent=5 // pred_fallthru
        _
    $region6: #{a_call__.6} parent=1 // loop_footer
      %s12 = sadd.s32 1, %s8
    $region7: #{a_call__.6} parent=1 // loop_footer_branch
      %7 = sbr.rel target = $region3
    $region8: #{a_call__.6} parent=1 // loop_exit
      _

</llo_original>
